<compile_context>
chip_gen: v5e
topology: v5e:2x2
jax: 0.10.0
libtpu: 0.0.40
codegen_flags: <defaults>
</compile_context>

<pallas_src>
import functools

import jax
import jax.numpy as jnp
import numpy as np
from jax.experimental import pallas as pl
from jax.experimental.pallas import tpu as pltpu


def _detect_kernel(x_ref, w_ref, bias_ref, axy_ref, bwh_ref, mx_ref, my_ref,
                   gx_ref, gy_ref, raw_ref, dec_ref):
    """One (batch, spatial-tile) block; writes raw head output and decoded boxes.

    x_ref   : (1, cin, Ts)  activations (channels on sublanes, spatial on lanes)
    w_ref   : (N, cin)      1x1-conv weight (PyTorch layout, no transpose)
    bias_ref: (N, 1)        conv bias
    axy_ref : (N, 1)        linear coeff: 2*stride on xy rows, 1 on conf, 0 on wh
    bwh_ref : (N, 1)        quadratic coeff: 4*anchor*stride on wh rows, else 0
    mx_ref  : (N, 1)        1 on the x channel of each anchor, else 0
    my_ref  : (N, 1)        1 on the y channel of each anchor, else 0
    gx_ref  : (1, Ts)       (x_grid - 0.5) * stride per spatial position
    gy_ref  : (1, Ts)       (y_grid - 0.5) * stride per spatial position
    raw_ref : (1, N, Ts)    pre-sigmoid head output (torch x[i] before permute)
    dec_ref : (1, N, Ts)    decoded boxes / conf
    """
    # 1x1 conv over channels == (N, cin) @ (cin, Ts) on the MXU, f32 accumulate.
    t = jnp.dot(w_ref[...], x_ref[0], preferred_element_type=jnp.float32)
    t = t + bias_ref[...]
    raw_ref[0] = t.astype(raw_ref.dtype)

    sig = jax.nn.sigmoid(t)                                   # exp/recip on EUP
    gterm = mx_ref[...] * gx_ref[...] + my_ref[...] * gy_ref[...]
    # xy: sig*2*stride + (grid-0.5)*stride ; wh: sig^2*4*anchor*stride ; conf: sig
    dec_ref[0] = (sig * (axy_ref[...] + sig * bwh_ref[...]) + gterm
                  ).astype(dec_ref.dtype)


def _detect_kernel_dec_only(x_ref, w_ref, bias_ref, axy_ref, bwh_ref, mx_ref,
                            my_ref, gx_ref, gy_ref, dec_ref):
    """Export-mode variant: decoded boxes only, raw head output never written."""
    t = jnp.dot(w_ref[...], x_ref[0], preferred_element_type=jnp.float32)
    t = t + bias_ref[...]
    sig = jax.nn.sigmoid(t)
    gterm = mx_ref[...] * gx_ref[...] + my_ref[...] * gy_ref[...]
    dec_ref[0] = (sig * (axy_ref[...] + sig * bwh_ref[...]) + gterm
                  ).astype(dec_ref.dtype)


def _round_up(x, m):
    return -(-x // m) * m


# Measured store-bound tile efficiency vs lane width (mem-bound f32, v6e) —
# used only as a heuristic to trade tile width against padding bytes.
_TILE_EFF = {128: 0.30, 256: 0.63, 384: 0.75, 512: 0.85, 640: 0.86, 768: 0.86,
             896: 0.86}


def _plan_spatial(S, bs, cap=1024):
    """Pick (S_pad, tile_s): S_pad multiple of tile_s, tile_s multiple of 128.

    Pads the spatial extent so every output tile is lane-dense (unmasked vst),
    trading tile width vs padded bytes for non-128-multiple extents (real YOLO
    levels 40x40=1600, 20x20=400).  Also guarantees >= 2 grid programs when
    bs == 1 so both v7x TensorCores get work.
    """
    cap = max(128, cap - cap % 128)
    s128 = _round_up(S, 128)
    if s128 <= cap:
        s_pad, tile = s128, s128
    else:
        best_score, s_pad, tile = -1.0, s128, 128
        t = 128
        while t <= cap:
            pad = _round_up(S, t)
            score = _TILE_EFF.get(t, 0.87) * (S / pad)
            if score > best_score:
                best_score, s_pad, tile = score, pad, t
            t += 128
    # v7x megacore: both grid axes are "parallel"; need >= 2 programs total.
    if bs * (s_pad // tile) < 2 and s_pad % 256 == 0:
        tile = s_pad // 2
    return s_pad, tile


def detect_level(x_nchw, w_mat, bias, anchors_i, stride_i, na, no, *,
                 dec_dtype=jnp.float32, raw_dtype=None, want_raw=True,
                 weight_dtype=None, tile_cap=1024):
    """One detection level.

    x_nchw: (bs, cin, ny, nx) activations, used directly in PyTorch NCHW layout
            and in their incoming dtype (feed bf16 upstream to halve HBM reads;
            no wrapper-side cast pass is inserted here).
    w_mat : (na*no, cin) 1x1-conv weight (PyTorch layout, used directly).
    Returns (z, raw5); raw5 is None when want_raw=False (export mode).
    """
    bs, cin, ny, nx = x_nchw.shape
    N = na * no
    S = ny * nx
    f32 = jnp.float32
    if weight_dtype is None:
        weight_dtype = x_nchw.dtype
    if raw_dtype is None:
        raw_dtype = x_nchw.dtype

    S_pad, tile_s = _plan_spatial(S, bs, cap=tile_cap)

    x3 = x_nchw.reshape(bs, cin, S)
    if S_pad != S:
        # One extra activation pass, but it buys lane-dense (unmasked) output
        # stores and > 1 pipelined spatial step for non-128-multiple levels.
        x3 = jnp.pad(x3, ((0, 0), (0, 0), (0, S_pad - S)))
    w = w_mat.astype(weight_dtype)                        # (N, cin)

    # --- per-channel constants (channel masks folded into scale coefficients) ---
    o_idx = jnp.arange(N) % no
    bias_c = bias.reshape(N, 1).astype(f32)
    axy_c = jnp.where(o_idx < 2, 2.0 * stride_i,
                      jnp.where(o_idx < 4, 0.0, 1.0)).astype(f32).reshape(N, 1)
    anchor_grid = anchors_i.astype(f32) * stride_i        # (na, 2)
    bwh_c = jnp.concatenate(
        [jnp.zeros((na, 2), f32), 4.0 * anchor_grid,
         jnp.zeros((na, no - 4), f32)], axis=1).reshape(N, 1)
    mx_c = (o_idx == 0).astype(f32).reshape(N, 1)
    my_c = (o_idx == 1).astype(f32).reshape(N, 1)

    # --- grid offsets as two tiny (1, S_pad) row vectors (Detect._make_grid) ---
    s_idx = jnp.arange(S_pad, dtype=jnp.int32)
    gx = (((s_idx % nx).astype(f32)) - 0.5) * stride_i
    gy = (((s_idx // nx).astype(f32)) - 0.5) * stride_i    # pad region unused
    gx = gx.reshape(1, S_pad)
    gy = gy.reshape(1, S_pad)

    rep = lambda shape: pl.BlockSpec(shape, lambda b, s: (0, 0))
    in_specs = [pl.BlockSpec((1, cin, tile_s), lambda b, s: (b, 0, s)),
                rep((N, cin)),                     # conv weight
                rep((N, 1)),                       # bias
                rep((N, 1)),                       # linear coeff
                rep((N, 1)),                       # quadratic coeff
                rep((N, 1)),                       # x-channel mask
                rep((N, 1)),                       # y-channel mask
                pl.BlockSpec((1, tile_s), lambda b, s: (0, s)),   # gx
                pl.BlockSpec((1, tile_s), lambda b, s: (0, s))]   # gy
    out_spec = pl.BlockSpec((1, N, tile_s), lambda b, s: (b, 0, s))
    operands = (x3, w, bias_c, axy_c, bwh_c, mx_c, my_c, gx, gy)
    cparams = pltpu.CompilerParams(
        dimension_semantics=("parallel", "parallel"),
        vmem_limit_bytes=32 * 1024 * 1024)   # fits v7x 64 MiB/TC with headroom
    grid = (bs, S_pad // tile_s)

    if want_raw:
        raw, dec = pl.pallas_call(
            _detect_kernel,
            out_shape=(jax.ShapeDtypeStruct((bs, N, S_pad), raw_dtype),
                       jax.ShapeDtypeStruct((bs, N, S_pad), dec_dtype)),
            grid=grid, in_specs=in_specs, out_specs=(out_spec, out_spec),
            compiler_params=cparams,
        )(*operands)
    else:
        dec = pl.pallas_call(
            _detect_kernel_dec_only,
            out_shape=jax.ShapeDtypeStruct((bs, N, S_pad), dec_dtype),
            grid=grid, in_specs=in_specs, out_specs=out_spec,
            compiler_params=cparams,
        )(*operands)
        raw = None

    if S_pad != S:
        dec = dec[:, :, :S]
    # (bs, na*no, S) -> (bs, na*S, no); under jit this permute fuses with the
    # cross-level concat.  raw is untouched in export mode.
    z = dec.reshape(bs, na, no, S).transpose(0, 1, 3, 2).reshape(bs, na * S, no)

    raw5 = None
    if want_raw:
        if S_pad != S:
            raw = raw[:, :, :S]
        # matches torch x[i].view(bs, na, no, ny, nx).permute(0, 1, 3, 4, 2)
        raw5 = raw.reshape(bs, na, no, ny, nx).transpose(0, 1, 3, 4, 2)
    return z, raw5


def detect_forward(xs_nchw, weights, biases, anchors, strides, na, no, *,
                   export=False, dec_dtype=jnp.float32, weight_dtype=None,
                   tile_cap=1024):
    """Detect.forward in eval mode: (cat(z,1), x); export mode: (cat(z,1),)."""
    # TODO(synk): training-mode / maskd raw-only return, the Segment Proto/mask
    # branch, and the stateful self.grid caching / dynamic-shape branch are
    # host-side control flow; grids are recomputed deterministically here.
    # TODO(synk): a single fused pallas_call over all levels (scalar-prefetch
    # per-level offset/stride/anchor tables) would cut per-call launch latency
    # at bs=1; kept as separate calls per level for clarity.
    zs, raws = [], []
    for i, x_nchw in enumerate(xs_nchw):
        z, raw5 = detect_level(x_nchw, weights[i], biases[i], anchors[i],
                               strides[i], na, no, dec_dtype=dec_dtype,
                               want_raw=not export, weight_dtype=weight_dtype,
                               tile_cap=tile_cap)
        zs.append(z)
        raws.append(raw5)
    z_all = jnp.concatenate(zs, axis=1)
    return (z_all,) if export else (z_all, raws)


def _reference_level(x_nchw, w, b, anchors_i, stride_i, na, no):
    """Pure-JAX reference mirroring the PyTorch Detect math."""
    bs, cin, ny, nx = x_nchw.shape
    t = jnp.einsum('bchw,oc->bohw', x_nchw, w) + b[None, :, None, None]
    t = t.reshape(bs, na, no, ny, nx).transpose(0, 1, 3, 4, 2)
    yv, xv = jnp.meshgrid(jnp.arange(ny, dtype=jnp.float32),
                          jnp.arange(nx, dtype=jnp.float32), indexing='ij')
    grid = jnp.stack([xv, yv], -1) - 0.5
    anchor_grid = (anchors_i * stride_i).reshape(1, na, 1, 1, 2)
    sig = jax.nn.sigmoid(t)
    xy = (sig[..., 0:2] * 2 + grid[None, None]) * stride_i
    wh = (sig[..., 2:4] * 2) ** 2 * anchor_grid
    y = jnp.concatenate([xy, wh, sig[..., 4:]], -1)
    return y.reshape(bs, na * ny * nx, no), t


if __name__ == "__main__":
    key = jax.random.PRNGKey(0)

    # Small Detect-consistent config: 3 levels / 3 anchors, spatial extents that
    # exercise all tiling paths: 40x40=1600 (pad to 1792, 2 lane-dense tiles),
    # 16x16=256 (exact tile), 8x8=64 (pad to 128).
    nc = 3
    no = nc + 5
    anchors_raw = np.array([[10, 13, 16, 30, 33, 23],
                            [30, 61, 62, 45, 59, 119],
                            [116, 90, 156, 198, 373, 326]], dtype=np.float32)
    nl = anchors_raw.shape[0]
    na = anchors_raw.shape[1] // 2
    anchors = jnp.asarray(anchors_raw).reshape(nl, na, 2)   # registered buffer
    ch = (16, 32, 64)
    strides = (8.0, 16.0, 32.0)
    spatial = [(40, 40), (16, 16), (8, 8)]
    bs = 2

    keys = jax.random.split(key, 2 * nl)
    xs, weights, biases = [], [], []
    for i in range(nl):
        ny, nx = spatial[i]
        xs.append(jax.random.normal(keys[i], (bs, ch[i], ny, nx), jnp.float32))
        # Conv2d(ch[i], no*na, 1): weight (no*na, ch[i], 1, 1) -> (no*na, ch[i])
        weights.append(0.1 * jax.random.normal(keys[nl + i],
                                               (no * na, ch[i]), jnp.float32))
        biases.append(jnp.linspace(-0.5, 0.5, no * na, dtype=jnp.float32))

    # Pure-JAX reference.
    z_refs, t_refs = [], []
    for i in range(nl):
        z_ref, t_ref = _reference_level(xs[i], weights[i], biases[i],
                                        anchors[i], strides[i], na, no)
        z_refs.append(z_ref)
        t_refs.append(t_ref)
    z_ref_all = jnp.concatenate(z_refs, axis=1)

    # f32 eval (non-export) path: returns (cat(z,1), x) like the PyTorch module.
    fwd_eval = jax.jit(functools.partial(detect_forward, na=na, no=no,
                                         export=False))
    z_all, raws = fwd_eval(xs, weights, biases, anchors, strides)
    jax.block_until_ready((z_all, raws))
    for i in range(nl):
        np.testing.assert_allclose(np.asarray(raws[i]), np.asarray(t_refs[i]),
                                   rtol=2e-4, atol=2e-4)
    np.testing.assert_allclose(np.asarray(z_all), np.asarray(z_ref_all),
                               rtol=2e-4, atol=2e-4)

    # bf16 export path: upstream emits bf16 activations (no wrapper cast pass),
    # weights follow, dec is written in bf16, raw is never materialized.
    xs_bf = [x.astype(jnp.bfloat16) for x in xs]
    fwd_export = jax.jit(functools.partial(detect_forward, na=na, no=no,
                                           export=True,
                                           dec_dtype=jnp.bfloat16))
    (z_bf,) = fwd_export(xs_bf, weights, biases, anchors, strides)
    jax.block_until_ready(z_bf)
    np.testing.assert_allclose(np.asarray(z_bf.astype(jnp.float32)),
                               np.asarray(z_ref_all), rtol=5e-2, atol=5e-2)

    print("KERNEL_OK")
</pallas_src>

<mosaic_0001>
module attributes {stable_mosaic.version = 11 : i64} {
  func.func @_detect_kernel(%arg0: i32, %arg1: i32, %arg2: memref<1x16x896xf32, #tpu.memory_space<vmem>>, %arg3: memref<24x16xf32, #tpu.memory_space<vmem>>, %arg4: memref<24x1xf32, #tpu.memory_space<vmem>>, %arg5: memref<24x1xf32, #tpu.memory_space<vmem>>, %arg6: memref<24x1xf32, #tpu.memory_space<vmem>>, %arg7: memref<24x1xf32, #tpu.memory_space<vmem>>, %arg8: memref<24x1xf32, #tpu.memory_space<vmem>>, %arg9: memref<1x896xf32, #tpu.memory_space<vmem>>, %arg10: memref<1x896xf32, #tpu.memory_space<vmem>>, %arg11: memref<1x24x896xf32, #tpu.memory_space<vmem>>, %arg12: memref<1x24x896xf32, #tpu.memory_space<vmem>>) attributes {dimension_semantics = [#tpu.dimension_semantics<parallel>, #tpu.dimension_semantics<parallel>], iteration_bounds = array<i64: 2, 2>, scalar_prefetch = 0 : i64, scratch_operands = 0 : i64, tpu.core_type = #tpu.core_type<tc>, window_params = [{transform_indices = @transform_0, window_bounds = array<i64: 1, 16, 896>}, {pipeline_mode = #tpu.pipeline_mode<synchronous>, transform_indices = @transform_1, window_bounds = array<i64: 24, 16>}, {pipeline_mode = #tpu.pipeline_mode<synchronous>, transform_indices = @transform_2, window_bounds = array<i64: 24, 1>}, {pipeline_mode = #tpu.pipeline_mode<synchronous>, transform_indices = @transform_3, window_bounds = array<i64: 24, 1>}, {pipeline_mode = #tpu.pipeline_mode<synchronous>, transform_indices = @transform_4, window_bounds = array<i64: 24, 1>}, {pipeline_mode = #tpu.pipeline_mode<synchronous>, transform_indices = @transform_5, window_bounds = array<i64: 24, 1>}, {pipeline_mode = #tpu.pipeline_mode<synchronous>, transform_indices = @transform_6, window_bounds = array<i64: 24, 1>}, {transform_indices = @transform_7, window_bounds = array<i64: 1, 896>}, {transform_indices = @transform_8, window_bounds = array<i64: 1, 896>}, {transform_indices = @transform_9, window_bounds = array<i64: 1, 24, 896>}, {transform_indices = @transform_10, window_bounds = array<i64: 1, 24, 896>}]} {
    %c0 = arith.constant 0 : index
    %c0_0 = arith.constant 0 : index
    %0 = vector.load %arg3[%c0, %c0_0] : memref<24x16xf32, #tpu.memory_space<vmem>>, vector<24x16xf32>
    %c0_1 = arith.constant 0 : index
    %c0_2 = arith.constant 0 : index
    %c0_3 = arith.constant 0 : index
    %1 = vector.load %arg2[%c0_1, %c0_2, %c0_3] : memref<1x16x896xf32, #tpu.memory_space<vmem>>, vector<1x16x896xf32>
    %2 = vector.shape_cast %1 : vector<1x16x896xf32> to vector<16x896xf32>
    %cst = arith.constant dense<0.000000e+00> : vector<24x896xf32>
    %3 = tpu.matmul %0, %2, %cst {dimension_numbers = #tpu.dot_dimension_numbers<[1], [0], [0], [1], [0, 0, 1, 1], [], []>} : vector<24x16xf32>, vector<16x896xf32>, vector<24x896xf32> -> vector<24x896xf32>
    %c0_4 = arith.constant 0 : index
    %c0_5 = arith.constant 0 : index
    %4 = vector.load %arg4[%c0_4, %c0_5] : memref<24x1xf32, #tpu.memory_space<vmem>>, vector<24x1xf32>
    %5 = vector.broadcast %4 : vector<24x1xf32> to vector<24x896xf32>
    %6 = arith.addf %3, %5 : vector<24x896xf32>
    %c0_6 = arith.constant 0 : index
    %c0_7 = arith.constant 0 : index
    %c0_8 = arith.constant 0 : index
    %7 = vector.load %arg11[%c0_6, %c0_7, %c0_8] : memref<1x24x896xf32, #tpu.memory_space<vmem>>, vector<1x24x896xf32>
    %8 = vector.shape_cast %7 : vector<1x24x896xf32> to vector<24x896xf32>
    %9 = vector.shape_cast %6 : vector<24x896xf32> to vector<1x24x896xf32>
    tpu.vector_store %arg11[%c0_6, %c0_7, %c0_8], %9 {strides = array<i32>} : memref<1x24x896xf32, #tpu.memory_space<vmem>>, vector<1x24x896xf32>,
    %10 = arith.negf %6 : vector<24x896xf32>
    %11 = math.exp %10 : vector<24x896xf32>
    %cst_9 = arith.constant 1.000000e+00 : f32
    %12 = vector.broadcast %cst_9 : f32 to vector<24x896xf32>
    %13 = arith.addf %12, %11 : vector<24x896xf32>
    %14 = arith.divf %12, %13 : vector<24x896xf32>
    %c0_10 = arith.constant 0 : index
    %c0_11 = arith.constant 0 : index
    %15 = vector.load %arg7[%c0_10, %c0_11] : memref<24x1xf32, #tpu.memory_space<vmem>>, vector<24x1xf32>
    %c0_12 = arith.constant 0 : index
    %c0_13 = arith.constant 0 : index
    %16 = vector.load %arg9[%c0_12, %c0_13] : memref<1x896xf32, #tpu.memory_space<vmem>>, vector<1x896xf32>
    %17 = vector.broadcast %15 : vector<24x1xf32> to vector<24x896xf32>
    %18 = vector.broadcast %16 : vector<1x896xf32> to vector<24x896xf32>
    %19 = arith.mulf %17, %18 : vector<24x896xf32>
    %c0_14 = arith.constant 0 : index
    %c0_15 = arith.constant 0 : index
    %20 = vector.load %arg8[%c0_14, %c0_15] : memref<24x1xf32, #tpu.memory_space<vmem>>, vector<24x1xf32>
    %c0_16 = arith.constant 0 : index
    %c0_17 = arith.constant 0 : index
    %21 = vector.load %arg10[%c0_16, %c0_17] : memref<1x896xf32, #tpu.memory_space<vmem>>, vector<1x896xf32>
    %22 = vector.broadcast %20 : vector<24x1xf32> to vector<24x896xf32>
    %23 = vector.broadcast %21 : vector<1x896xf32> to vector<24x896xf32>
    %24 = arith.mulf %22, %23 : vector<24x896xf32>
    %25 = arith.addf %19, %24 : vector<24x896xf32>
    %c0_18 = arith.constant 0 : index
    %c0_19 = arith.constant 0 : index
    %26 = vector.load %arg5[%c0_18, %c0_19] : memref<24x1xf32, #tpu.memory_space<vmem>>, vector<24x1xf32>
    %c0_20 = arith.constant 0 : index
    %c0_21 = arith.constant 0 : index
    %27 = vector.load %arg6[%c0_20, %c0_21] : memref<24x1xf32, #tpu.memory_space<vmem>>, vector<24x1xf32>
    %28 = vector.broadcast %27 : vector<24x1xf32> to vector<24x896xf32>
    %29 = arith.mulf %14, %28 : vector<24x896xf32>
    %30 = vector.broadcast %26 : vector<24x1xf32> to vector<24x896xf32>
    %31 = arith.addf %30, %29 : vector<24x896xf32>
    %32 = arith.mulf %14, %31 : vector<24x896xf32>
    %33 = arith.addf %32, %25 : vector<24x896xf32>
    %c0_22 = arith.constant 0 : index
    %c0_23 = arith.constant 0 : index
    %c0_24 = arith.constant 0 : index
    %34 = vector.load %arg12[%c0_22, %c0_23, %c0_24] : memref<1x24x896xf32, #tpu.memory_space<vmem>>, vector<1x24x896xf32>
    %35 = vector.shape_cast %34 : vector<1x24x896xf32> to vector<24x896xf32>
    %36 = vector.shape_cast %33 : vector<24x896xf32> to vector<1x24x896xf32>
    tpu.vector_store %arg12[%c0_22, %c0_23, %c0_24], %36 {strides = array<i32>} : memref<1x24x896xf32, #tpu.memory_space<vmem>>, vector<1x24x896xf32>,
    return
  }
  func.func @transform_0(%arg0: i32, %arg1: i32) -> (i32, i32, i32) {
    %c0_i32 = arith.constant 0 : i32
    %c0_i32_0 = arith.constant 0 : i32
    return %arg0, %c0_i32, %arg1 : i32, i32, i32
  }
  func.func @transform_1(%arg0: i32, %arg1: i32) -> (i32, i32) {
    %c0_i32 = arith.constant 0 : i32
    %c0_i32_0 = arith.constant 0 : i32
    %c0_i32_1 = arith.constant 0 : i32
    return %c0_i32, %c0_i32_0 : i32, i32
  }
  func.func @transform_2(%arg0: i32, %arg1: i32) -> (i32, i32) {
    %c0_i32 = arith.constant 0 : i32
    %c0_i32_0 = arith.constant 0 : i32
    %c0_i32_1 = arith.constant 0 : i32
    return %c0_i32, %c0_i32_0 : i32, i32
  }
  func.func @transform_3(%arg0: i32, %arg1: i32) -> (i32, i32) {
    %c0_i32 = arith.constant 0 : i32
    %c0_i32_0 = arith.constant 0 : i32
    %c0_i32_1 = arith.constant 0 : i32
    return %c0_i32, %c0_i32_0 : i32, i32
  }
  func.func @transform_4(%arg0: i32, %arg1: i32) -> (i32, i32) {
    %c0_i32 = arith.constant 0 : i32
    %c0_i32_0 = arith.constant 0 : i32
    %c0_i32_1 = arith.constant 0 : i32
    return %c0_i32, %c0_i32_0 : i32, i32
  }
  func.func @transform_5(%arg0: i32, %arg1: i32) -> (i32, i32) {
    %c0_i32 = arith.constant 0 : i32
    %c0_i32_0 = arith.constant 0 : i32
    %c0_i32_1 = arith.constant 0 : i32
    return %c0_i32, %c0_i32_0 : i32, i32
  }
  func.func @transform_6(%arg0: i32, %arg1: i32) -> (i32, i32) {
    %c0_i32 = arith.constant 0 : i32
    %c0_i32_0 = arith.constant 0 : i32
    %c0_i32_1 = arith.constant 0 : i32
    return %c0_i32, %c0_i32_0 : i32, i32
  }
  func.func @transform_7(%arg0: i32, %arg1: i32) -> (i32, i32) {
    %c0_i32 = arith.constant 0 : i32
    %c0_i32_0 = arith.constant 0 : i32
    return %c0_i32, %arg1 : i32, i32
  }
  func.func @transform_8(%arg0: i32, %arg1: i32) -> (i32, i32) {
    %c0_i32 = arith.constant 0 : i32
    %c0_i32_0 = arith.constant 0 : i32
    return %c0_i32, %arg1 : i32, i32
  }
  func.func @transform_9(%arg0: i32, %arg1: i32) -> (i32, i32, i32) {
    %c0_i32 = arith.constant 0 : i32
    %c0_i32_0 = arith.constant 0 : i32
    return %arg0, %c0_i32, %arg1 : i32, i32, i32
  }
  func.func @transform_10(%arg0: i32, %arg1: i32) -> (i32, i32, i32) {
    %c0_i32 = arith.constant 0 : i32
    %c0_i32_0 = arith.constant 0 : i32
    return %arg0, %c0_i32, %arg1 : i32, i32, i32
  }
}

module attributes {stable_mosaic.version = 11 : i64} {
  func.func @_detect_kernel(%arg0: i32, %arg1: i32, %arg2: memref<1x64x128xf32, #tpu.memory_space<vmem>>, %arg3: memref<24x64xf32, #tpu.memory_space<vmem>>, %arg4: memref<24x1xf32, #tpu.memory_space<vmem>>, %arg5: memref<24x1xf32, #tpu.memory_space<vmem>>, %arg6: memref<24x1xf32, #tpu.memory_space<vmem>>, %arg7: memref<24x1xf32, #tpu.memory_space<vmem>>, %arg8: memref<24x1xf32, #tpu.memory_space<vmem>>, %arg9: memref<1x128xf32, #tpu.memory_space<vmem>>, %arg10: memref<1x128xf32, #tpu.memory_space<vmem>>, %arg11: memref<1x24x128xf32, #tpu.memory_space<vmem>>, %arg12: memref<1x24x128xf32, #tpu.memory_space<vmem>>) attributes {dimension_semantics = [#tpu.dimension_semantics<parallel>, #tpu.dimension_semantics<parallel>], iteration_bounds = array<i64: 2, 1>, scalar_prefetch = 0 : i64, scratch_operands = 0 : i64, tpu.core_type = #tpu.core_type<tc>, window_params = [{transform_indices = @transform_0, window_bounds = array<i64: 1, 64, 128>}, {pipeline_mode = #tpu.pipeline_mode<synchronous>, transform_indices = @transform_1, window_bounds = array<i64: 24, 64>}, {pipeline_mode = #tpu.pipeline_mode<synchronous>, transform_indices = @transform_2, window_bounds = array<i64: 24, 1>}, {pipeline_mode = #tpu.pipeline_mode<synchronous>, transform_indices = @transform_3, window_bounds = array<i64: 24, 1>}, {pipeline_mode = #tpu.pipeline_mode<synchronous>, transform_indices = @transform_4, window_bounds = array<i64: 24, 1>}, {pipeline_mode = #tpu.pipeline_mode<synchronous>, transform_indices = @transform_5, window_bounds = array<i64: 24, 1>}, {pipeline_mode = #tpu.pipeline_mode<synchronous>, transform_indices = @transform_6, window_bounds = array<i64: 24, 1>}, {transform_indices = @transform_7, window_bounds = array<i64: 1, 128>}, {transform_indices = @transform_8, window_bounds = array<i64: 1, 128>}, {transform_indices = @transform_9, window_bounds = array<i64: 1, 24, 128>}, {transform_indices = @transform_10, window_bounds = array<i64: 1, 24, 128>}]} {
    %c0 = arith.constant 0 : index
    %c0_0 = arith.constant 0 : index
    %0 = vector.load %arg3[%c0, %c0_0] : memref<24x64xf32, #tpu.memory_space<vmem>>, vector<24x64xf32>
    %c0_1 = arith.constant 0 : index
    %c0_2 = arith.constant 0 : index
    %c0_3 = arith.constant 0 : index
    %1 = vector.load %arg2[%c0_1, %c0_2, %c0_3] : memref<1x64x128xf32, #tpu.memory_space<vmem>>, vector<1x64x128xf32>
    %2 = vector.shape_cast %1 : vector<1x64x128xf32> to vector<64x128xf32>
    %cst = arith.constant dense<0.000000e+00> : vector<24x128xf32>
    %3 = tpu.matmul %0, %2, %cst {dimension_numbers = #tpu.dot_dimension_numbers<[1], [0], [0], [1], [0, 0, 1, 1], [], []>} : vector<24x64xf32>, vector<64x128xf32>, vector<24x128xf32> -> vector<24x128xf32>
    %c0_4 = arith.constant 0 : index
    %c0_5 = arith.constant 0 : index
    %4 = vector.load %arg4[%c0_4, %c0_5] : memref<24x1xf32, #tpu.memory_space<vmem>>, vector<24x1xf32>
    %5 = vector.broadcast %4 : vector<24x1xf32> to vector<24x128xf32>
    %6 = arith.addf %3, %5 : vector<24x128xf32>
    %c0_6 = arith.constant 0 : index
    %c0_7 = arith.constant 0 : index
    %c0_8 = arith.constant 0 : index
    %7 = vector.load %arg11[%c0_6, %c0_7, %c0_8] : memref<1x24x128xf32, #tpu.memory_space<vmem>>, vector<1x24x128xf32>
    %8 = vector.shape_cast %7 : vector<1x24x128xf32> to vector<24x128xf32>
    %9 = vector.shape_cast %6 : vector<24x128xf32> to vector<1x24x128xf32>
    tpu.vector_store %arg11[%c0_6, %c0_7, %c0_8], %9 {strides = array<i32>} : memref<1x24x128xf32, #tpu.memory_space<vmem>>, vector<1x24x128xf32>,
    %10 = arith.negf %6 : vector<24x128xf32>
    %11 = math.exp %10 : vector<24x128xf32>
    %cst_9 = arith.constant 1.000000e+00 : f32
    %12 = vector.broadcast %cst_9 : f32 to vector<24x128xf32>
    %13 = arith.addf %12, %11 : vector<24x128xf32>
    %14 = arith.divf %12, %13 : vector<24x128xf32>
    %c0_10 = arith.constant 0 : index
    %c0_11 = arith.constant 0 : index
    %15 = vector.load %arg7[%c0_10, %c0_11] : memref<24x1xf32, #tpu.memory_space<vmem>>, vector<24x1xf32>
    %c0_12 = arith.constant 0 : index
    %c0_13 = arith.constant 0 : index
    %16 = vector.load %arg9[%c0_12, %c0_13] : memref<1x128xf32, #tpu.memory_space<vmem>>, vector<1x128xf32>
    %17 = vector.broadcast %15 : vector<24x1xf32> to vector<24x128xf32>
    %18 = vector.broadcast %16 : vector<1x128xf32> to vector<24x128xf32>
    %19 = arith.mulf %17, %18 : vector<24x128xf32>
    %c0_14 = arith.constant 0 : index
    %c0_15 = arith.constant 0 : index
    %20 = vector.load %arg8[%c0_14, %c0_15] : memref<24x1xf32, #tpu.memory_space<vmem>>, vector<24x1xf32>
    %c0_16 = arith.constant 0 : index
    %c0_17 = arith.constant 0 : index
    %21 = vector.load %arg10[%c0_16, %c0_17] : memref<1x128xf32, #tpu.memory_space<vmem>>, vector<1x128xf32>
    %22 = vector.broadcast %20 : vector<24x1xf32> to vector<24x128xf32>
    %23 = vector.broadcast %21 : vector<1x128xf32> to vector<24x128xf32>
    %24 = arith.mulf %22, %23 : vector<24x128xf32>
    %25 = arith.addf %19, %24 : vector<24x128xf32>
    %c0_18 = arith.constant 0 : index
    %c0_19 = arith.constant 0 : index
    %26 = vector.load %arg5[%c0_18, %c0_19] : memref<24x1xf32, #tpu.memory_space<vmem>>, vector<24x1xf32>
    %c0_20 = arith.constant 0 : index
    %c0_21 = arith.constant 0 : index
    %27 = vector.load %arg6[%c0_20, %c0_21] : memref<24x1xf32, #tpu.memory_space<vmem>>, vector<24x1xf32>
    %28 = vector.broadcast %27 : vector<24x1xf32> to vector<24x128xf32>
    %29 = arith.mulf %14, %28 : vector<24x128xf32>
    %30 = vector.broadcast %26 : vector<24x1xf32> to vector<24x128xf32>
    %31 = arith.addf %30, %29 : vector<24x128xf32>
    %32 = arith.mulf %14, %31 : vector<24x128xf32>
    %33 = arith.addf %32, %25 : vector<24x128xf32>
    %c0_22 = arith.constant 0 : index
    %c0_23 = arith.constant 0 : index
    %c0_24 = arith.constant 0 : index
    %34 = vector.load %arg12[%c0_22, %c0_23, %c0_24] : memref<1x24x128xf32, #tpu.memory_space<vmem>>, vector<1x24x128xf32>
    %35 = vector.shape_cast %34 : vector<1x24x128xf32> to vector<24x128xf32>
    %36 = vector.shape_cast %33 : vector<24x128xf32> to vector<1x24x128xf32>
    tpu.vector_store %arg12[%c0_22, %c0_23, %c0_24], %36 {strides = array<i32>} : memref<1x24x128xf32, #tpu.memory_space<vmem>>, vector<1x24x128xf32>,
    return
  }
  func.func @transform_0(%arg0: i32, %arg1: i32) -> (i32, i32, i32) {
    %c0_i32 = arith.constant 0 : i32
    %c0_i32_0 = arith.constant 0 : i32
    return %arg0, %c0_i32, %arg1 : i32, i32, i32
  }
  func.func @transform_1(%arg0: i32, %arg1: i32) -> (i32, i32) {
    %c0_i32 = arith.constant 0 : i32
    %c0_i32_0 = arith.constant 0 : i32
    %c0_i32_1 = arith.constant 0 : i32
    return %c0_i32, %c0_i32_0 : i32, i32
  }
  func.func @transform_2(%arg0: i32, %arg1: i32) -> (i32, i32) {
    %c0_i32 = arith.constant 0 : i32
    %c0_i32_0 = arith.constant 0 : i32
    %c0_i32_1 = arith.constant 0 : i32
    return %c0_i32, %c0_i32_0 : i32, i32
  }
  func.func @transform_3(%arg0: i32, %arg1: i32) -> (i32, i32) {
    %c0_i32 = arith.constant 0 : i32
    %c0_i32_0 = arith.constant 0 : i32
    %c0_i32_1 = arith.constant 0 : i32
    return %c0_i32, %c0_i32_0 : i32, i32
  }
  func.func @transform_4(%arg0: i32, %arg1: i32) -> (i32, i32) {
    %c0_i32 = arith.constant 0 : i32
    %c0_i32_0 = arith.constant 0 : i32
    %c0_i32_1 = arith.constant 0 : i32
    return %c0_i32, %c0_i32_0 : i32, i32
  }
  func.func @transform_5(%arg0: i32, %arg1: i32) -> (i32, i32) {
    %c0_i32 = arith.constant 0 : i32
    %c0_i32_0 = arith.constant 0 : i32
    %c0_i32_1 = arith.constant 0 : i32
    return %c0_i32, %c0_i32_0 : i32, i32
  }
  func.func @transform_6(%arg0: i32, %arg1: i32) -> (i32, i32) {
    %c0_i32 = arith.constant 0 : i32
    %c0_i32_0 = arith.constant 0 : i32
    %c0_i32_1 = arith.constant 0 : i32
    return %c0_i32, %c0_i32_0 : i32, i32
  }
  func.func @transform_7(%arg0: i32, %arg1: i32) -> (i32, i32) {
    %c0_i32 = arith.constant 0 : i32
    %c0_i32_0 = arith.constant 0 : i32
    return %c0_i32, %arg1 : i32, i32
  }
  func.func @transform_8(%arg0: i32, %arg1: i32) -> (i32, i32) {
    %c0_i32 = arith.constant 0 : i32
    %c0_i32_0 = arith.constant 0 : i32
    return %c0_i32, %arg1 : i32, i32
  }
  func.func @transform_9(%arg0: i32, %arg1: i32) -> (i32, i32, i32) {
    %c0_i32 = arith.constant 0 : i32
    %c0_i32_0 = arith.constant 0 : i32
    return %arg0, %c0_i32, %arg1 : i32, i32, i32
  }
  func.func @transform_10(%arg0: i32, %arg1: i32) -> (i32, i32, i32) {
    %c0_i32 = arith.constant 0 : i32
    %c0_i32_0 = arith.constant 0 : i32
    return %arg0, %c0_i32, %arg1 : i32, i32, i32
  }
}

module attributes {stable_mosaic.version = 11 : i64} {
  func.func @_detect_kernel(%arg0: i32, %arg1: i32, %arg2: memref<1x32x256xf32, #tpu.memory_space<vmem>>, %arg3: memref<24x32xf32, #tpu.memory_space<vmem>>, %arg4: memref<24x1xf32, #tpu.memory_space<vmem>>, %arg5: memref<24x1xf32, #tpu.memory_space<vmem>>, %arg6: memref<24x1xf32, #tpu.memory_space<vmem>>, %arg7: memref<24x1xf32, #tpu.memory_space<vmem>>, %arg8: memref<24x1xf32, #tpu.memory_space<vmem>>, %arg9: memref<1x256xf32, #tpu.memory_space<vmem>>, %arg10: memref<1x256xf32, #tpu.memory_space<vmem>>, %arg11: memref<1x24x256xf32, #tpu.memory_space<vmem>>, %arg12: memref<1x24x256xf32, #tpu.memory_space<vmem>>) attributes {dimension_semantics = [#tpu.dimension_semantics<parallel>, #tpu.dimension_semantics<parallel>], iteration_bounds = array<i64: 2, 1>, scalar_prefetch = 0 : i64, scratch_operands = 0 : i64, tpu.core_type = #tpu.core_type<tc>, window_params = [{transform_indices = @transform_0, window_bounds = array<i64: 1, 32, 256>}, {pipeline_mode = #tpu.pipeline_mode<synchronous>, transform_indices = @transform_1, window_bounds = array<i64: 24, 32>}, {pipeline_mode = #tpu.pipeline_mode<synchronous>, transform_indices = @transform_2, window_bounds = array<i64: 24, 1>}, {pipeline_mode = #tpu.pipeline_mode<synchronous>, transform_indices = @transform_3, window_bounds = array<i64: 24, 1>}, {pipeline_mode = #tpu.pipeline_mode<synchronous>, transform_indices = @transform_4, window_bounds = array<i64: 24, 1>}, {pipeline_mode = #tpu.pipeline_mode<synchronous>, transform_indices = @transform_5, window_bounds = array<i64: 24, 1>}, {pipeline_mode = #tpu.pipeline_mode<synchronous>, transform_indices = @transform_6, window_bounds = array<i64: 24, 1>}, {transform_indices = @transform_7, window_bounds = array<i64: 1, 256>}, {transform_indices = @transform_8, window_bounds = array<i64: 1, 256>}, {transform_indices = @transform_9, window_bounds = array<i64: 1, 24, 256>}, {transform_indices = @transform_10, window_bounds = array<i64: 1, 24, 256>}]} {
    %c0 = arith.constant 0 : index
    %c0_0 = arith.constant 0 : index
    %0 = vector.load %arg3[%c0, %c0_0] : memref<24x32xf32, #tpu.memory_space<vmem>>, vector<24x32xf32>
    %c0_1 = arith.constant 0 : index
    %c0_2 = arith.constant 0 : index
    %c0_3 = arith.constant 0 : index
    %1 = vector.load %arg2[%c0_1, %c0_2, %c0_3] : memref<1x32x256xf32, #tpu.memory_space<vmem>>, vector<1x32x256xf32>
    %2 = vector.shape_cast %1 : vector<1x32x256xf32> to vector<32x256xf32>
    %cst = arith.constant dense<0.000000e+00> : vector<24x256xf32>
    %3 = tpu.matmul %0, %2, %cst {dimension_numbers = #tpu.dot_dimension_numbers<[1], [0], [0], [1], [0, 0, 1, 1], [], []>} : vector<24x32xf32>, vector<32x256xf32>, vector<24x256xf32> -> vector<24x256xf32>
    %c0_4 = arith.constant 0 : index
    %c0_5 = arith.constant 0 : index
    %4 = vector.load %arg4[%c0_4, %c0_5] : memref<24x1xf32, #tpu.memory_space<vmem>>, vector<24x1xf32>
    %5 = vector.broadcast %4 : vector<24x1xf32> to vector<24x256xf32>
    %6 = arith.addf %3, %5 : vector<24x256xf32>
    %c0_6 = arith.constant 0 : index
    %c0_7 = arith.constant 0 : index
    %c0_8 = arith.constant 0 : index
    %7 = vector.load %arg11[%c0_6, %c0_7, %c0_8] : memref<1x24x256xf32, #tpu.memory_space<vmem>>, vector<1x24x256xf32>
    %8 = vector.shape_cast %7 : vector<1x24x256xf32> to vector<24x256xf32>
    %9 = vector.shape_cast %6 : vector<24x256xf32> to vector<1x24x256xf32>
    tpu.vector_store %arg11[%c0_6, %c0_7, %c0_8], %9 {strides = array<i32>} : memref<1x24x256xf32, #tpu.memory_space<vmem>>, vector<1x24x256xf32>,
    %10 = arith.negf %6 : vector<24x256xf32>
    %11 = math.exp %10 : vector<24x256xf32>
    %cst_9 = arith.constant 1.000000e+00 : f32
    %12 = vector.broadcast %cst_9 : f32 to vector<24x256xf32>
    %13 = arith.addf %12, %11 : vector<24x256xf32>
    %14 = arith.divf %12, %13 : vector<24x256xf32>
    %c0_10 = arith.constant 0 : index
    %c0_11 = arith.constant 0 : index
    %15 = vector.load %arg7[%c0_10, %c0_11] : memref<24x1xf32, #tpu.memory_space<vmem>>, vector<24x1xf32>
    %c0_12 = arith.constant 0 : index
    %c0_13 = arith.constant 0 : index
    %16 = vector.load %arg9[%c0_12, %c0_13] : memref<1x256xf32, #tpu.memory_space<vmem>>, vector<1x256xf32>
    %17 = vector.broadcast %15 : vector<24x1xf32> to vector<24x256xf32>
    %18 = vector.broadcast %16 : vector<1x256xf32> to vector<24x256xf32>
    %19 = arith.mulf %17, %18 : vector<24x256xf32>
    %c0_14 = arith.constant 0 : index
    %c0_15 = arith.constant 0 : index
    %20 = vector.load %arg8[%c0_14, %c0_15] : memref<24x1xf32, #tpu.memory_space<vmem>>, vector<24x1xf32>
    %c0_16 = arith.constant 0 : index
    %c0_17 = arith.constant 0 : index
    %21 = vector.load %arg10[%c0_16, %c0_17] : memref<1x256xf32, #tpu.memory_space<vmem>>, vector<1x256xf32>
    %22 = vector.broadcast %20 : vector<24x1xf32> to vector<24x256xf32>
    %23 = vector.broadcast %21 : vector<1x256xf32> to vector<24x256xf32>
    %24 = arith.mulf %22, %23 : vector<24x256xf32>
    %25 = arith.addf %19, %24 : vector<24x256xf32>
    %c0_18 = arith.constant 0 : index
    %c0_19 = arith.constant 0 : index
    %26 = vector.load %arg5[%c0_18, %c0_19] : memref<24x1xf32, #tpu.memory_space<vmem>>, vector<24x1xf32>
    %c0_20 = arith.constant 0 : index
    %c0_21 = arith.constant 0 : index
    %27 = vector.load %arg6[%c0_20, %c0_21] : memref<24x1xf32, #tpu.memory_space<vmem>>, vector<24x1xf32>
    %28 = vector.broadcast %27 : vector<24x1xf32> to vector<24x256xf32>
    %29 = arith.mulf %14, %28 : vector<24x256xf32>
    %30 = vector.broadcast %26 : vector<24x1xf32> to vector<24x256xf32>
    %31 = arith.addf %30, %29 : vector<24x256xf32>
    %32 = arith.mulf %14, %31 : vector<24x256xf32>
    %33 = arith.addf %32, %25 : vector<24x256xf32>
    %c0_22 = arith.constant 0 : index
    %c0_23 = arith.constant 0 : index
    %c0_24 = arith.constant 0 : index
    %34 = vector.load %arg12[%c0_22, %c0_23, %c0_24] : memref<1x24x256xf32, #tpu.memory_space<vmem>>, vector<1x24x256xf32>
    %35 = vector.shape_cast %34 : vector<1x24x256xf32> to vector<24x256xf32>
    %36 = vector.shape_cast %33 : vector<24x256xf32> to vector<1x24x256xf32>
    tpu.vector_store %arg12[%c0_22, %c0_23, %c0_24], %36 {strides = array<i32>} : memref<1x24x256xf32, #tpu.memory_space<vmem>>, vector<1x24x256xf32>,
    return
  }
  func.func @transform_0(%arg0: i32, %arg1: i32) -> (i32, i32, i32) {
    %c0_i32 = arith.constant 0 : i32
    %c0_i32_0 = arith.constant 0 : i32
    return %arg0, %c0_i32, %arg1 : i32, i32, i32
  }
  func.func @transform_1(%arg0: i32, %arg1: i32) -> (i32, i32) {
    %c0_i32 = arith.constant 0 : i32
    %c0_i32_0 = arith.constant 0 : i32
    %c0_i32_1 = arith.constant 0 : i32
    return %c0_i32, %c0_i32_0 : i32, i32
  }
  func.func @transform_2(%arg0: i32, %arg1: i32) -> (i32, i32) {
    %c0_i32 = arith.constant 0 : i32
    %c0_i32_0 = arith.constant 0 : i32
    %c0_i32_1 = arith.constant 0 : i32
    return %c0_i32, %c0_i32_0 : i32, i32
  }
  func.func @transform_3(%arg0: i32, %arg1: i32) -> (i32, i32) {
    %c0_i32 = arith.constant 0 : i32
    %c0_i32_0 = arith.constant 0 : i32
    %c0_i32_1 = arith.constant 0 : i32
    return %c0_i32, %c0_i32_0 : i32, i32
  }
  func.func @transform_4(%arg0: i32, %arg1: i32) -> (i32, i32) {
    %c0_i32 = arith.constant 0 : i32
    %c0_i32_0 = arith.constant 0 : i32
    %c0_i32_1 = arith.constant 0 : i32
    return %c0_i32, %c0_i32_0 : i32, i32
  }
  func.func @transform_5(%arg0: i32, %arg1: i32) -> (i32, i32) {
    %c0_i32 = arith.constant 0 : i32
    %c0_i32_0 = arith.constant 0 : i32
    %c0_i32_1 = arith.constant 0 : i32
    return %c0_i32, %c0_i32_0 : i32, i32
  }
  func.func @transform_6(%arg0: i32, %arg1: i32) -> (i32, i32) {
    %c0_i32 = arith.constant 0 : i32
    %c0_i32_0 = arith.constant 0 : i32
    %c0_i32_1 = arith.constant 0 : i32
    return %c0_i32, %c0_i32_0 : i32, i32
  }
  func.func @transform_7(%arg0: i32, %arg1: i32) -> (i32, i32) {
    %c0_i32 = arith.constant 0 : i32
    %c0_i32_0 = arith.constant 0 : i32
    return %c0_i32, %arg1 : i32, i32
  }
  func.func @transform_8(%arg0: i32, %arg1: i32) -> (i32, i32) {
    %c0_i32 = arith.constant 0 : i32
    %c0_i32_0 = arith.constant 0 : i32
    return %c0_i32, %arg1 : i32, i32
  }
  func.func @transform_9(%arg0: i32, %arg1: i32) -> (i32, i32, i32) {
    %c0_i32 = arith.constant 0 : i32
    %c0_i32_0 = arith.constant 0 : i32
    return %arg0, %c0_i32, %arg1 : i32, i32, i32
  }
  func.func @transform_10(%arg0: i32, %arg1: i32) -> (i32, i32, i32) {
    %c0_i32 = arith.constant 0 : i32
    %c0_i32_0 = arith.constant 0 : i32
    return %arg0, %c0_i32, %arg1 : i32, i32, i32
  }
}

</mosaic_0001>

<llo_original>
// kernel: detect_forward.5
$region0: #{detect_forward.5}
  #allocation0 [shape = 'u32[]', space=smem, size = 0x4, offset = 0x4, fixed_abs, tag = 'smem constant byte address 0x4 - core index']
  #allocation1 [shape = 'u32[72,128]{1,0:T(1,128)}', space=vmem, size = 0x9000, scoped, tag = 'internal scratch']
  %s0 = inlined_call_operand.vmem [shape: f32[2,64,128], index: 0, kind: input, shape index: {}]
  %s1 = inlined_call_operand.vmem [shape: f32[24,64], index: 1, kind: input, shape index: {}]
  %s2 = inlined_call_operand.vmem [shape: f32[24,1], index: 2, kind: input, shape index: {}]
  %s3 = inlined_call_operand.vmem [shape: f32[24,1], index: 3, kind: input, shape index: {}]
  %s4 = inlined_call_operand.vmem [shape: f32[24,1], index: 4, kind: input, shape index: {}]
  %s5 = inlined_call_operand.vmem [shape: f32[24,1], index: 5, kind: input, shape index: {}]
  %s6 = inlined_call_operand.vmem [shape: f32[24,1], index: 6, kind: input, shape index: {}]
  %s7 = inlined_call_operand.vmem [shape: f32[1,128], index: 7, kind: input, shape index: {}]
  %s8 = inlined_call_operand.vmem [shape: f32[1,128], index: 8, kind: input, shape index: {}]
  %s9 = inlined_call_operand.vmem [shape: f32[2,24,128], index: 9, kind: output, shape index: {0}]
  %s10 = inlined_call_operand.vmem [shape: f32[2,24,128], index: 10, kind: output, shape index: {1}]
  %11 = xla_tuple %s9, %s10
  %s12 = sld [smem:[#allocation0]]
  $region77: #{detect_forward.5} parent=0
    _
  %s14 = ssub.s32 1, %s12
  %s15 = scalar_select 0, %s14, %s12
  loop: start=0, step=1, limit=4
  $region2: #{detect_forward.5} parent=0 // loop_pre_header
    _
  $region3: #{detect_forward.5} parent=0 // loop_header
    %s17 = sphi 0, %s21
    %p18 = scmp.ge.s32.totalorder %s17, 4
    %s24 = sphi 0, %s36
    %s25 = sphi 0, %s32
    %s26 = sphi 0, %s24
    %s27 = sphi 0, %s25
    %s28 = sphi 0, %s26
    %s29 = sphi 0, %s27
    %s41 = sphi 0, %s43
    %s44 = sphi 0, %s41
    %s45 = sphi 0, %s44
    %s61 = sphi 0, %s45
    %s65 = sphi 0, %s65
    %s67 = sphi 0, %s65
    %s68 = sphi 0, %s67
    %s82 = sphi 0, %s68
    %s86 = sphi 0, %s86
    %s88 = sphi 0, %s86
    %s89 = sphi 0, %s88
    %s103 = sphi 0, %s89
    %s107 = sphi 0, %s107
    %s109 = sphi 0, %s107
    %s110 = sphi 0, %s109
    %s124 = sphi 0, %s110
    %s128 = sphi 0, %s128
    %s130 = sphi 0, %s128
    %s131 = sphi 0, %s130
    %s145 = sphi 0, %s131
    %s149 = sphi 0, %s149
    %s151 = sphi 0, %s149
    %s152 = sphi 0, %s151
    %s166 = sphi 0, %s152
    %s170 = sphi 0, %s170
    %s172 = sphi 0, %s170
    %s173 = sphi 0, %s172
    %s187 = sphi 0, %s173
    %s193 = sphi 0, %s195
    %s196 = sphi 0, %s193
    %s197 = sphi 0, %s196
    %s213 = sphi 0, %s197
    %s219 = sphi 0, %s221
    %s222 = sphi 0, %s219
    %s223 = sphi 0, %s222
    %s239 = sphi 0, %s223
    %s247 = sphi 0, %s249
    %s250 = sphi 0, %s247
    %s251 = sphi 0, %s250
    %s267 = sphi 0, %s251
    %s275 = sphi 0, %s277
    %s278 = sphi 0, %s275
    %s279 = sphi 0, %s278
    %s295 = sphi 0, %s279
  $region4: #{detect_forward.5} parent=0 // loop_header_branch
    %20 = sbr.rel (%p18) target = $region8
  $region5: #{detect_forward.5} parent=0 // loop_body
    %s22 = ssub.s32 %s17, 1
    %s23 = ssub.s32 %s17, 2
    %s30 = sadd.s32 1, %s25
    %p31 = scmp.ge.s32.totalorder %s30, 1
    %s32 = scalar_select %p31, 0, %s30
    %s33 = sadd.s32 1, %s24
    %s34 = scalar_select %p31, %s33, %s24
    %p35 = scmp.ge.s32.totalorder %s34, 2
    %s36 = scalar_select %p35, 0, %s34
    %s37 = ssub.s32 %s24, %s36
    %s38 = ssub.s32 %s25, %s32
    %s39 = sor.u32 %s37, %s38
    %p40 = scmp.eq.s32.totalorder %s39, 0
    %s42 = sadd.s32 %s41, 1
    %s43 = scalar_select %p40, %s41, %s42
    %p46 = pneg %p40
    %p47 = scmp.eq.s32.totalorder %s17, 1
    %p48 = por %p46, %p47
    %p49 = scmp.ne.s32.totalorder %s41, %s44
    %p50 = scmp.eq.s32.totalorder %s17, 0
    %p51 = por %p49, %p50
    %p52 = scmp.ne.s32.totalorder %s41, %s44
    %p53 = scmp.eq.s32.totalorder %s22, 1
    %p54 = por %p52, %p53
    %p55 = scmp.ne.s32.totalorder %s44, %s45
    %p56 = scmp.eq.s32.totalorder %s22, 0
    %p57 = por %p55, %p56
    %p58 = scmp.ne.s32.totalorder %s44, %s45
    %p59 = scmp.eq.s32.totalorder %s23, 1
    %p60 = por %p58, %p59
    %p62 = scmp.ne.s32.totalorder %s45, %s61
    %p63 = scmp.eq.s32.totalorder %s23, 0
    %p64 = por %p62, %p63
    %s66 = sadd.s32 %s65, 1
    %p69 = scmp.eq.s32.totalorder %s17, 1
    %p70 = scmp.ne.s32.totalorder %s65, %s67
    %p71 = scmp.eq.s32.totalorder %s17, 0
    %p72 = por %p70, %p71
    %p73 = scmp.ne.s32.totalorder %s65, %s67
    %p74 = scmp.eq.s32.totalorder %s22, 1
    %p75 = por %p73, %p74
    %p76 = scmp.ne.s32.totalorder %s67, %s68
    %p77 = scmp.eq.s32.totalorder %s22, 0
    %p78 = por %p76, %p77
    %p79 = scmp.ne.s32.totalorder %s67, %s68
    %p80 = scmp.eq.s32.totalorder %s23, 1
    %p81 = por %p79, %p80
    %p83 = scmp.ne.s32.totalorder %s68, %s82
    %p84 = scmp.eq.s32.totalorder %s23, 0
    %p85 = por %p83, %p84
    %s87 = sadd.s32 %s86, 1
    %p90 = scmp.eq.s32.totalorder %s17, 1
    %p91 = scmp.ne.s32.totalorder %s86, %s88
    %p92 = scmp.eq.s32.totalorder %s17, 0
    %p93 = por %p91, %p92
    %p94 = scmp.ne.s32.totalorder %s86, %s88
    %p95 = scmp.eq.s32.totalorder %s22, 1
    %p96 = por %p94, %p95
    %p97 = scmp.ne.s32.totalorder %s88, %s89
    %p98 = scmp.eq.s32.totalorder %s22, 0
    %p99 = por %p97, %p98
    %p100 = scmp.ne.s32.totalorder %s88, %s89
    %p101 = scmp.eq.s32.totalorder %s23, 1
    %p102 = por %p100, %p101
    %p104 = scmp.ne.s32.totalorder %s89, %s103
    %p105 = scmp.eq.s32.totalorder %s23, 0
    %p106 = por %p104, %p105
    %s108 = sadd.s32 %s107, 1
    %p111 = scmp.eq.s32.totalorder %s17, 1
    %p112 = scmp.ne.s32.totalorder %s107, %s109
    %p113 = scmp.eq.s32.totalorder %s17, 0
    %p114 = por %p112, %p113
    %p115 = scmp.ne.s32.totalorder %s107, %s109
    %p116 = scmp.eq.s32.totalorder %s22, 1
    %p117 = por %p115, %p116
    %p118 = scmp.ne.s32.totalorder %s109, %s110
    %p119 = scmp.eq.s32.totalorder %s22, 0
    %p120 = por %p118, %p119
    %p121 = scmp.ne.s32.totalorder %s109, %s110
    %p122 = scmp.eq.s32.totalorder %s23, 1
    %p123 = por %p121, %p122
    %p125 = scmp.ne.s32.totalorder %s110, %s124
    %p126 = scmp.eq.s32.totalorder %s23, 0
    %p127 = por %p125, %p126
    %s129 = sadd.s32 %s128, 1
    %p132 = scmp.eq.s32.totalorder %s17, 1
    %p133 = scmp.ne.s32.totalorder %s128, %s130
    %p134 = scmp.eq.s32.totalorder %s17, 0
    %p135 = por %p133, %p134
    %p136 = scmp.ne.s32.totalorder %s128, %s130
    %p137 = scmp.eq.s32.totalorder %s22, 1
    %p138 = por %p136, %p137
    %p139 = scmp.ne.s32.totalorder %s130, %s131
    %p140 = scmp.eq.s32.totalorder %s22, 0
    %p141 = por %p139, %p140
    %p142 = scmp.ne.s32.totalorder %s130, %s131
    %p143 = scmp.eq.s32.totalorder %s23, 1
    %p144 = por %p142, %p143
    %p146 = scmp.ne.s32.totalorder %s131, %s145
    %p147 = scmp.eq.s32.totalorder %s23, 0
    %p148 = por %p146, %p147
    %s150 = sadd.s32 %s149, 1
    %p153 = scmp.eq.s32.totalorder %s17, 1
    %p154 = scmp.ne.s32.totalorder %s149, %s151
    %p155 = scmp.eq.s32.totalorder %s17, 0
    %p156 = por %p154, %p155
    %p157 = scmp.ne.s32.totalorder %s149, %s151
    %p158 = scmp.eq.s32.totalorder %s22, 1
    %p159 = por %p157, %p158
    %p160 = scmp.ne.s32.totalorder %s151, %s152
    %p161 = scmp.eq.s32.totalorder %s22, 0
    %p162 = por %p160, %p161
    %p163 = scmp.ne.s32.totalorder %s151, %s152
    %p164 = scmp.eq.s32.totalorder %s23, 1
    %p165 = por %p163, %p164
    %p167 = scmp.ne.s32.totalorder %s152, %s166
    %p168 = scmp.eq.s32.totalorder %s23, 0
    %p169 = por %p167, %p168
    %s171 = sadd.s32 %s170, 1
    %p174 = scmp.eq.s32.totalorder %s17, 1
    %p175 = scmp.ne.s32.totalorder %s170, %s172
    %p176 = scmp.eq.s32.totalorder %s17, 0
    %p177 = por %p175, %p176
    %p178 = scmp.ne.s32.totalorder %s170, %s172
    %p179 = scmp.eq.s32.totalorder %s22, 1
    %p180 = por %p178, %p179
    %p181 = scmp.ne.s32.totalorder %s172, %s173
    %p182 = scmp.eq.s32.totalorder %s22, 0
    %p183 = por %p181, %p182
    %p184 = scmp.ne.s32.totalorder %s172, %s173
    %p185 = scmp.eq.s32.totalorder %s23, 1
    %p186 = por %p184, %p185
    %p188 = scmp.ne.s32.totalorder %s173, %s187
    %p189 = scmp.eq.s32.totalorder %s23, 0
    %p190 = por %p188, %p189
    %s191 = ssub.s32 %s25, %s32
    %p192 = scmp.eq.s32.totalorder %s191, 0
    %s194 = sadd.s32 %s193, 1
    %s195 = scalar_select %p192, %s193, %s194
    %p198 = pneg %p192
    %p199 = scmp.eq.s32.totalorder %s17, 1
    %p200 = por %p198, %p199
    %p201 = scmp.ne.s32.totalorder %s193, %s196
    %p202 = scmp.eq.s32.totalorder %s17, 0
    %p203 = por %p201, %p202
    %p204 = scmp.ne.s32.totalorder %s193, %s196
    %p205 = scmp.eq.s32.totalorder %s22, 1
    %p206 = por %p204, %p205
    %p207 = scmp.ne.s32.totalorder %s196, %s197
    %p208 = scmp.eq.s32.totalorder %s22, 0
    %p209 = por %p207, %p208
    %p210 = scmp.ne.s32.totalorder %s196, %s197
    %p211 = scmp.eq.s32.totalorder %s23, 1
    %p212 = por %p210, %p211
    %p214 = scmp.ne.s32.totalorder %s197, %s213
    %p215 = scmp.eq.s32.totalorder %s23, 0
    %p216 = por %p214, %p215
    %s217 = ssub.s32 %s25, %s32
    %p218 = scmp.eq.s32.totalorder %s217, 0
    %s220 = sadd.s32 %s219, 1
    %s221 = scalar_select %p218, %s219, %s220
    %p224 = pneg %p218
    %p225 = scmp.eq.s32.totalorder %s17, 1
    %p226 = por %p224, %p225
    %p227 = scmp.ne.s32.totalorder %s219, %s222
    %p228 = scmp.eq.s32.totalorder %s17, 0
    %p229 = por %p227, %p228
    %p230 = scmp.ne.s32.totalorder %s219, %s222
    %p231 = scmp.eq.s32.totalorder %s22, 1
    %p232 = por %p230, %p231
    %p233 = scmp.ne.s32.totalorder %s222, %s223
    %p234 = scmp.eq.s32.totalorder %s22, 0
    %p235 = por %p233, %p234
    %p236 = scmp.ne.s32.totalorder %s222, %s223
    %p237 = scmp.eq.s32.totalorder %s23, 1
    %p238 = por %p236, %p237
    %p240 = scmp.ne.s32.totalorder %s223, %s239
    %p241 = scmp.eq.s32.totalorder %s23, 0
    %p242 = por %p240, %p241
    %s243 = ssub.s32 %s24, %s36
    %s244 = ssub.s32 %s25, %s32
    %s245 = sor.u32 %s243, %s244
    %p246 = scmp.eq.s32.totalorder %s245, 0
    %s248 = sadd.s32 %s247, 1
    %s249 = scalar_select %p246, %s247, %s248
    %p252 = pneg %p246
    %p253 = scmp.eq.s32.totalorder %s17, 1
    %p254 = por %p252, %p253
    %p255 = scmp.ne.s32.totalorder %s247, %s250
    %p256 = scmp.eq.s32.totalorder %s17, 0
    %p257 = por %p255, %p256
    %p258 = scmp.ne.s32.totalorder %s247, %s250
    %p259 = scmp.eq.s32.totalorder %s22, 1
    %p260 = por %p258, %p259
    %p261 = scmp.ne.s32.totalorder %s250, %s251
    %p262 = scmp.eq.s32.totalorder %s22, 0
    %p263 = por %p261, %p262
    %p264 = scmp.ne.s32.totalorder %s250, %s251
    %p265 = scmp.eq.s32.totalorder %s23, 1
    %p266 = por %p264, %p265
    %p268 = scmp.ne.s32.totalorder %s251, %s267
    %p269 = scmp.eq.s32.totalorder %s23, 0
    %p270 = por %p268, %p269
    %s271 = ssub.s32 %s24, %s36
    %s272 = ssub.s32 %s25, %s32
    %s273 = sor.u32 %s271, %s272
    %p274 = scmp.eq.s32.totalorder %s273, 0
    %s276 = sadd.s32 %s275, 1
    %s277 = scalar_select %p274, %s275, %s276
    %p280 = pneg %p274
    %p281 = scmp.eq.s32.totalorder %s17, 1
    %p282 = por %p280, %p281
    %p283 = scmp.ne.s32.totalorder %s275, %s278
    %p284 = scmp.eq.s32.totalorder %s17, 0
    %p285 = por %p283, %p284
    %p286 = scmp.ne.s32.totalorder %s275, %s278
    %p287 = scmp.eq.s32.totalorder %s22, 1
    %p288 = por %p286, %p287
    %p289 = scmp.ne.s32.totalorder %s278, %s279
    %p290 = scmp.eq.s32.totalorder %s22, 0
    %p291 = por %p289, %p290
    %p292 = scmp.ne.s32.totalorder %s278, %s279
    %p293 = scmp.eq.s32.totalorder %s23, 1
    %p294 = por %p292, %p293
    %p296 = scmp.ne.s32.totalorder %s279, %s295
    %p297 = scmp.eq.s32.totalorder %s23, 0
    %p298 = por %p296, %p297
    %p299 = scmp.le.s32.totalorder 1, %s17
    %p300 = scmp.lt.s32.totalorder %s17, 3
    %p301 = pnand %p299, %p300
    %p302 = pneg %p301
    // Predicated region
    $region9: #{detect_forward.5} parent=5 // pred_check
      _
    $region10: #{detect_forward.5} parent=5 // pred_check_branch
      %304 = sbr.rel (%p301) target = $region12
    $region11: #{detect_forward.5} parent=5 // pred_region
      %s305 = ssub.s32 %s17, 1
      // Predicated region
      $region13: #{detect_forward.5} parent=11 // pred_check
        %p306 = pneg %p78
      $region14: #{detect_forward.5} parent=11 // pred_check_branch
        %308 = sbr.rel (%p306) target = $region16
      $region15: #{detect_forward.5} parent=11 // pred_region
        _
      $region16: #{detect_forward.5} parent=11 // pred_fallthru
        _
      // Predicated region
      $region17: #{detect_forward.5} parent=11 // pred_check
        %p309 = pneg %p99
      $region18: #{detect_forward.5} parent=11 // pred_check_branch
        %311 = sbr.rel (%p309) target = $region20
      $region19: #{detect_forward.5} parent=11 // pred_region
        _
      $region20: #{detect_forward.5} parent=11 // pred_fallthru
        _
      // Predicated region
      $region21: #{detect_forward.5} parent=11 // pred_check
        %p312 = pneg %p120
      $region22: #{detect_forward.5} parent=11 // pred_check_branch
        %314 = sbr.rel (%p312) target = $region24
      $region23: #{detect_forward.5} parent=11 // pred_region
        _
      $region24: #{detect_forward.5} parent=11 // pred_fallthru
        _
      // Predicated region
      $region25: #{detect_forward.5} parent=11 // pred_check
        %p315 = pneg %p141
      $region26: #{detect_forward.5} parent=11 // pred_check_branch
        %317 = sbr.rel (%p315) target = $region28
      $region27: #{detect_forward.5} parent=11 // pred_region
        _
      $region28: #{detect_forward.5} parent=11 // pred_fallthru
        _
      // Predicated region
      $region29: #{detect_forward.5} parent=11 // pred_check
        %p318 = pneg %p162
      $region30: #{detect_forward.5} parent=11 // pred_check_branch
        %320 = sbr.rel (%p318) target = $region32
      $region31: #{detect_forward.5} parent=11 // pred_region
        _
      $region32: #{detect_forward.5} parent=11 // pred_fallthru
        _
      // Predicated region
      $region33: #{detect_forward.5} parent=11 // pred_check
        %p321 = pneg %p183
      $region34: #{detect_forward.5} parent=11 // pred_check_branch
        %323 = sbr.rel (%p321) target = $region36
      $region35: #{detect_forward.5} parent=11 // pred_region
        _
      $region36: #{detect_forward.5} parent=11 // pred_fallthru
        _
      // Predicated region
      $region37: #{detect_forward.5} parent=11 // pred_check
        %p324 = pneg %p209
      $region38: #{detect_forward.5} parent=11 // pred_check_branch
        %326 = sbr.rel (%p324) target = $region40
      $region39: #{detect_forward.5} parent=11 // pred_region
        %p327 = scmp.lt.s32.totalorder %s27, 0
        %s328 = scalar_select %p327, %s27, 0
        %s329 = scalar_lea.vmem %s7, %s328
      $region40: #{detect_forward.5} parent=11 // pred_fallthru
        _
      // Predicated region
      $region41: #{detect_forward.5} parent=11 // pred_check
        %p330 = pneg %p235
      $region42: #{detect_forward.5} parent=11 // pred_check_branch
        %332 = sbr.rel (%p330) target = $region44
      $region43: #{detect_forward.5} parent=11 // pred_region
        %p333 = scmp.lt.s32.totalorder %s27, 0
        %s334 = scalar_select %p333, %s27, 0
        %s335 = scalar_lea.vmem %s8, %s334
      $region44: #{detect_forward.5} parent=11 // pred_fallthru
        _
    $region12: #{detect_forward.5} parent=5 // pred_fallthru
      _
    %p336 = scmp.lt.s32.totalorder %s17, 2
    // Predicated region
    $region45: #{detect_forward.5} parent=5 // pred_check
      %p337 = pneg %p336
    $region46: #{detect_forward.5} parent=5 // pred_check_branch
      %339 = sbr.rel (%p337) target = $region48
    $region47: #{detect_forward.5} parent=5 // pred_region
      // Predicated region
      $region49: #{detect_forward.5} parent=47 // pred_check
        %p340 = pneg %p51
      $region50: #{detect_forward.5} parent=47 // pred_check_branch
        %342 = sbr.rel (%p340) target = $region52
      $region51: #{detect_forward.5} parent=47 // pred_region
        %p343 = scmp.lt.s32.totalorder %s24, 1
        %s344 = scalar_select %p343, %s24, 1
        %p345 = scmp.lt.s32.totalorder %s25, 0
        %s346 = scalar_select %p345, %s25, 0
        %s347 = smul.addr %s344, 8
        %s348 = sadd.s32 %s346, %s347
        %s349 = smul.addr %s348, 8
        %s350 = scalar_lea.vmem %s0, %s349
      $region52: #{detect_forward.5} parent=47 // pred_fallthru
        _
    $region48: #{detect_forward.5} parent=5 // pred_fallthru
      _
    %p351 = scmp.le.s32.totalorder 1, %s17
    %p352 = scmp.lt.s32.totalorder %s17, 3
    %p353 = pnand %p351, %p352
    %p354 = pneg %p353
    // Predicated region
    $region53: #{detect_forward.5} parent=5 // pred_check
      _
    $region54: #{detect_forward.5} parent=5 // pred_check_branch
      %356 = sbr.rel (%p353) target = $region56
    $region55: #{detect_forward.5} parent=5 // pred_region
      %s357 = ssub.s32 %s17, 1
      %p358 = scmp.lt.s32.totalorder %s26, 1
      %s359 = scalar_select %p358, %s26, 1
      %p360 = scmp.lt.s32.totalorder %s27, 0
      %s361 = scalar_select %p360, %s27, 0
      %s362 = smul.addr %s359, 8
      %s363 = sadd.s32 %s361, %s362
      %s364 = smul.addr %s363, 8
      %s365 = scalar_lea.vmem %s0, %s364
      %p366 = pneg %p57
      %p367 = pneg %p54
      %p368 = pneg %p78
      %p369 = pneg %p75
      %p370 = pneg %p99
      %p371 = pneg %p96
      %p372 = pneg %p120
      %p373 = pneg %p117
      %p374 = pneg %p141
      %p375 = pneg %p138
      %p376 = pneg %p162
      %p377 = pneg %p159
      %p378 = pneg %p183
      %p379 = pneg %p180
      %p380 = scmp.lt.s32.totalorder %s27, 0
      %s381 = scalar_select %p380, %s27, 0
      %s382 = scalar_lea.vmem %s7, %s381
      %p383 = pneg %p209
      %p384 = pneg %p206
      %p385 = scmp.lt.s32.totalorder %s27, 0
      %s386 = scalar_select %p385, %s27, 0
      %s387 = scalar_lea.vmem %s8, %s386
      %p388 = pneg %p235
      %p389 = pneg %p232
      %p390 = pneg %p263
      %p391 = pneg %p260
      %p392 = scmp.lt.s32.totalorder %s26, 1
      %s393 = scalar_select %p392, %s26, 1
      %p394 = scmp.lt.s32.totalorder %s27, 0
      %s395 = scalar_select %p394, %s27, 0
      %s396 = smul.addr %s393, 3
      %s397 = sadd.s32 %s395, %s396
      %s398 = smul.addr %s397, 8
      %s399 = scalar_lea.vmem %s9, %s398
      %p400 = pneg %p291
      %p401 = pneg %p288
      %p402 = scmp.lt.s32.totalorder %s26, 1
      %s403 = scalar_select %p402, %s26, 1
      %p404 = scmp.lt.s32.totalorder %s27, 0
      %s405 = scalar_select %p404, %s27, 0
      %s406 = smul.addr %s403, 3
      %s407 = sadd.s32 %s405, %s406
      %s408 = smul.addr %s407, 8
      %s409 = scalar_lea.vmem %s10, %s408
      %p410 = scmp.lt.s32.totalorder %s26, 1
      %s411 = scalar_select %p410, %s26, 1
      %p412 = scmp.lt.s32.totalorder %s27, 0
      %s413 = scalar_select %p412, %s27, 0
      %s414 = smul.addr %s411, 8
      %s415 = sadd.s32 %s413, %s414
      %s416 = smul.addr %s415, 8
      %s417 = scalar_lea.vmem %s0, %s416
      %p418 = scmp.lt.s32.totalorder %s27, 0
      %s419 = scalar_select %p418, %s27, 0
      %s420 = scalar_lea.vmem %s7, %s419
      %p421 = scmp.lt.s32.totalorder %s27, 0
      %s422 = scalar_select %p421, %s27, 0
      %s423 = scalar_lea.vmem %s8, %s422
      %p424 = scmp.lt.s32.totalorder %s26, 1
      %s425 = scalar_select %p424, %s26, 1
      %p426 = scmp.lt.s32.totalorder %s27, 0
      %s427 = scalar_select %p426, %s27, 0
      %s428 = smul.addr %s425, 3
      %s429 = sadd.s32 %s427, %s428
      %s430 = smul.addr %s429, 8
      %s431 = scalar_lea.vmem %s9, %s430
      %p432 = scmp.lt.s32.totalorder %s26, 1
      %s433 = scalar_select %p432, %s26, 1
      %p434 = scmp.lt.s32.totalorder %s27, 0
      %s435 = scalar_select %p434, %s27, 0
      %s436 = smul.addr %s433, 3
      %s437 = sadd.s32 %s435, %s436
      %s438 = smul.addr %s437, 8
      %s439 = scalar_lea.vmem %s10, %s438
      %v440 = vld [vmem:[%s1] sm:$0xff]
      %v441 = vld [vmem:[%s1 + $0x8] sm:$0xff]
      %v442 = vld [vmem:[%s1 + $0x10] sm:$0xff]
      %v443 = vld [vmem:[%s417] sm:$0xff]
      %v444 = vld [vmem:[%s417 + $0x8] sm:$0xff]
      %v445 = vld [vmem:[%s417 + $0x10] sm:$0xff]
      %v446 = vld [vmem:[%s417 + $0x18] sm:$0xff]
      %v447 = vld [vmem:[%s417 + $0x20] sm:$0xff]
      %v448 = vld [vmem:[%s417 + $0x28] sm:$0xff]
      %v449 = vld [vmem:[%s417 + $0x30] sm:$0xff]
      %v450 = vld [vmem:[%s417 + $0x38] sm:$0xff]
      %v451 = vld [vmem:[%s2] sm:$0xff]
      %v452 = vld [vmem:[%s2 + $0x8] sm:$0xff]
      %v453 = vld [vmem:[%s2 + $0x10] sm:$0xff]
      %455 = vset.pattern.permute.xlu0 0
      %456 = vperm.xlu0 %455, %v451
      %v457 = vpop.permute.xlu0 %456
      %460 = vset.pattern.permute.xlu0 0
      %461 = vperm.xlu0 %460, %v452
      %v462 = vpop.permute.xlu0 %461
      %465 = vset.pattern.permute.xlu0 0
      %466 = vperm.xlu0 %465, %v453
      %v467 = vpop.permute.xlu0 %466
      %vm469 = vcmask 523264
      %v471 = vsel %vm469, %v440, 0
      %v474 = vsel %vm469, %v441, 0
      %v477 = vsel %vm469, %v442, 0
      %479 = vmatpush.msra.mxu0 0.0
      %480 = vmatpush.msra.mxu0 0.0
      %481 = vmatpush.msra.mxu0 0.0
      %482 = vmatpush.msra.mxu0 0.0
      %483 = vmatpush.msra.mxu0 0.0
      %484 = vmatpush.msra.mxu0 0.0
      %485 = vmatpush.msra.mxu0 0.0
      %486 = vmatpush.msra.mxu0 0.0
      %487 = vmatpush.msra.mxu0 %v450
      %488 = vmatpush.msra.mxu0 %v449
      %489 = vmatpush.msra.mxu0 %v448
      %490 = vmatpush.msra.mxu0 %v447
      %491 = vmatpush.msra.mxu0 %v446
      %492 = vmatpush.msra.mxu0 %v445
      %493 = vmatpush.msra.mxu0 %v444
      %494 = vmatpush.msra.mxu0 %v443
      %495 = vmatmul.f32.gmra.mxu0 %v471
      %v496 = vpop.f32.mrf.mxu0
      %v497 = vadd.f32 %v457, %v496
      %498 = vmatmul.f32.gmra.mxu0 %v474
      %v499 = vpop.f32.mrf.mxu0
      %v500 = vadd.f32 %v462, %v499
      %501 = vmatmul.f32.gmra.mxu0 %v477
      %v502 = vpop.f32.mrf.mxu0
      %v503 = vadd.f32 %v467, %v502
      %504 = vdwg.mxu0
      %505 = vst [vmem:[%s431] sm:$0xff] %v497
      %506 = vst [vmem:[%s431 + $0x8] sm:$0xff] %v500
      %507 = vst [vmem:[%s431 + $0x10] sm:$0xff] %v503
      %v508 = vxor.u32 %v497, 2147483648
      %v509 = vxor.u32 %v500, 2147483648
      %v510 = vxor.u32 %v503, 2147483648
      %v511 = vmul.f32 %v508, 1.442695
      %v512 = vpow.pop %v511
      %v513 = vmul.f32 %v509, 1.442695
      %v514 = vpow.pop %v513
      %v515 = vmul.f32 %v510, 1.442695
      %v516 = vpow.pop %v515
      %v517 = vadd.f32 %v512, 1.0
      %v518 = vadd.f32 %v514, 1.0
      %v519 = vadd.f32 %v516, 1.0
      %v520 = vrcp.pop %v517
      %v521 = vmul.f32 %v517, %v520
      %v522 = vsub.f32 1.0, %v521
      %v523 = vmul.f32 %v520, %v522
      %v524 = vadd.f32 %v520, %v523
      %vm525 = vweird.f32 %v517
      %vm526 = vweird.f32 %v520
      %vm527 = vmor %vm525, %vm526
      %v528 = vsel %vm527, %v520, %v524
      %v529 = vand.u32 2147483647, %v517
      %vm530 = vcmp.eq.f32.partialorder %v529, 8.507059e+37
      %v531 = vand.u32 %v517, 2147483648
      %v532 = vor.u32 1.1754944e-38, %v531
      %v533 = vsel %vm530, %v532, %v528
      %v534 = vmul.f32 1.0, %v533
      %v535 = vrcp.pop %v518
      %v536 = vmul.f32 %v518, %v535
      %v537 = vsub.f32 1.0, %v536
      %v538 = vmul.f32 %v535, %v537
      %v539 = vadd.f32 %v535, %v538
      %vm540 = vweird.f32 %v518
      %vm541 = vweird.f32 %v535
      %vm542 = vmor %vm540, %vm541
      %v543 = vsel %vm542, %v535, %v539
      %v544 = vand.u32 2147483647, %v518
      %vm545 = vcmp.eq.f32.partialorder %v544, 8.507059e+37
      %v546 = vand.u32 %v518, 2147483648
      %v547 = vor.u32 1.1754944e-38, %v546
      %v548 = vsel %vm545, %v547, %v543
      %v549 = vmul.f32 1.0, %v548
      %v550 = vrcp.pop %v519
      %v551 = vmul.f32 %v519, %v550
      %v552 = vsub.f32 1.0, %v551
      %v553 = vmul.f32 %v550, %v552
      %v554 = vadd.f32 %v550, %v553
      %vm555 = vweird.f32 %v519
      %vm556 = vweird.f32 %v550
      %vm557 = vmor %vm555, %vm556
      %v558 = vsel %vm557, %v550, %v554
      %v559 = vand.u32 2147483647, %v519
      %vm560 = vcmp.eq.f32.partialorder %v559, 8.507059e+37
      %v561 = vand.u32 %v519, 2147483648
      %v562 = vor.u32 1.1754944e-38, %v561
      %v563 = vsel %vm560, %v562, %v558
      %v564 = vmul.f32 1.0, %v563
      %v565 = vld [vmem:[%s5] sm:$0xff]
      %v566 = vld [vmem:[%s5 + $0x8] sm:$0xff]
      %v567 = vld [vmem:[%s5 + $0x10] sm:$0xff]
      %v568 = vld [vmem:[%s420] sm:$0x1]
      %570 = vset.pattern.permute.xlu0 0
      %571 = vperm.xlu0 %570, %v565
      %v572 = vpop.permute.xlu0 %571
      %575 = vset.pattern.permute.xlu0 0
      %576 = vperm.xlu0 %575, %v566
      %v577 = vpop.permute.xlu0 %576
      %580 = vset.pattern.permute.xlu0 0
      %581 = vperm.xlu0 %580, %v567
      %v582 = vpop.permute.xlu0 %581
      %v585 = vperm.slane %v568, 0
      %v587 = vmul.f32 %v572, %v585
      %v588 = vmul.f32 %v577, %v585
      %v589 = vmul.f32 %v582, %v585
      %v590 = vld [vmem:[%s6] sm:$0xff]
      %v591 = vld [vmem:[%s6 + $0x8] sm:$0xff]
      %v592 = vld [vmem:[%s6 + $0x10] sm:$0xff]
      %v593 = vld [vmem:[%s423] sm:$0x1]
      %595 = vset.pattern.permute.xlu0 0
      %596 = vperm.xlu0 %595, %v590
      %v597 = vpop.permute.xlu0 %596
      %600 = vset.pattern.permute.xlu0 0
      %601 = vperm.xlu0 %600, %v591
      %v602 = vpop.permute.xlu0 %601
      %605 = vset.pattern.permute.xlu0 0
      %606 = vperm.xlu0 %605, %v592
      %v607 = vpop.permute.xlu0 %606
      %v610 = vperm.slane %v593, 0
      %v612 = vmul.f32 %v597, %v610
      %v613 = vmul.f32 %v602, %v610
      %v614 = vmul.f32 %v607, %v610
      %v615 = vadd.f32 %v587, %v612
      %v616 = vadd.f32 %v588, %v613
      %v617 = vadd.f32 %v589, %v614
      %v618 = vld [vmem:[%s3] sm:$0xff]
      %v619 = vld [vmem:[%s3 + $0x8] sm:$0xff]
      %v620 = vld [vmem:[%s3 + $0x10] sm:$0xff]
      %v621 = vld [vmem:[%s4] sm:$0xff]
      %v622 = vld [vmem:[%s4 + $0x8] sm:$0xff]
      %v623 = vld [vmem:[%s4 + $0x10] sm:$0xff]
      %625 = vset.pattern.permute.xlu0 0
      %626 = vperm.xlu0 %625, %v621
      %v627 = vpop.permute.xlu0 %626
      %630 = vset.pattern.permute.xlu0 0
      %631 = vperm.xlu0 %630, %v622
      %v632 = vpop.permute.xlu0 %631
      %635 = vset.pattern.permute.xlu0 0
      %636 = vperm.xlu0 %635, %v623
      %v637 = vpop.permute.xlu0 %636
      %v639 = vmul.f32 %v534, %v627
      %v640 = vmul.f32 %v549, %v632
      %v641 = vmul.f32 %v564, %v637
      %643 = vset.pattern.permute.xlu0 0
      %644 = vperm.xlu0 %643, %v618
      %v645 = vpop.permute.xlu0 %644
      %648 = vset.pattern.permute.xlu0 0
      %649 = vperm.xlu0 %648, %v619
      %v650 = vpop.permute.xlu0 %649
      %653 = vset.pattern.permute.xlu0 0
      %654 = vperm.xlu0 %653, %v620
      %v655 = vpop.permute.xlu0 %654
      %v657 = vadd.f32 %v645, %v639
      %v658 = vadd.f32 %v650, %v640
      %v659 = vadd.f32 %v655, %v641
      %v660 = vmul.f32 %v534, %v657
      %v661 = vmul.f32 %v549, %v658
      %v662 = vmul.f32 %v564, %v659
      %v663 = vadd.f32 %v660, %v615
      %v664 = vadd.f32 %v661, %v616
      %v665 = vadd.f32 %v662, %v617
      %666 = vst [vmem:[%s439] sm:$0xff] %v663
      %667 = vst [vmem:[%s439 + $0x8] sm:$0xff] %v664
      %668 = vst [vmem:[%s439 + $0x10] sm:$0xff] %v665
      %p669 = scmp.lt.s32.totalorder %s26, 1
      %s670 = scalar_select %p669, %s26, 1
      %p671 = scmp.lt.s32.totalorder %s27, 0
      %s672 = scalar_select %p671, %s27, 0
      %s673 = smul.addr %s670, 3
      %s674 = sadd.s32 %s672, %s673
      %s675 = smul.addr %s674, 8
      %s676 = scalar_lea.vmem %s9, %s675
      %p677 = scmp.lt.s32.totalorder %s26, 1
      %s678 = scalar_select %p677, %s26, 1
      %p679 = scmp.lt.s32.totalorder %s27, 0
      %s680 = scalar_select %p679, %s27, 0
      %s681 = smul.addr %s678, 3
      %s682 = sadd.s32 %s680, %s681
      %s683 = smul.addr %s682, 8
      %s684 = scalar_lea.vmem %s10, %s683
      // Predicated region
      $region57: #{detect_forward.5} parent=55 // pred_check
        %p685 = pneg %p260
      $region58: #{detect_forward.5} parent=55 // pred_check_branch
        %687 = sbr.rel (%p685) target = $region60
      $region59: #{detect_forward.5} parent=55 // pred_region
        _
      $region60: #{detect_forward.5} parent=55 // pred_fallthru
        _
      // Predicated region
      $region61: #{detect_forward.5} parent=55 // pred_check
        %p688 = pneg %p288
      $region62: #{detect_forward.5} parent=55 // pred_check_branch
        %690 = sbr.rel (%p688) target = $region64
      $region63: #{detect_forward.5} parent=55 // pred_region
        _
      $region64: #{detect_forward.5} parent=55 // pred_fallthru
        _
    $region56: #{detect_forward.5} parent=5 // pred_fallthru
      _
    %p691 = scmp.le.s32.totalorder 2, %s17
    // Predicated region
    $region65: #{detect_forward.5} parent=5 // pred_check
      %p692 = pneg %p691
    $region66: #{detect_forward.5} parent=5 // pred_check_branch
      %694 = sbr.rel (%p692) target = $region68
    $region67: #{detect_forward.5} parent=5 // pred_region
      %s695 = ssub.s32 %s17, 2
      // Predicated region
      $region69: #{detect_forward.5} parent=67 // pred_check
        %p696 = pneg %p266
      $region70: #{detect_forward.5} parent=67 // pred_check_branch
        %698 = sbr.rel (%p696) target = $region72
      $region71: #{detect_forward.5} parent=67 // pred_region
        %p699 = scmp.lt.s32.totalorder %s28, 1
        %s700 = scalar_select %p699, %s28, 1
        %p701 = scmp.lt.s32.totalorder %s29, 0
        %s702 = scalar_select %p701, %s29, 0
        %s703 = smul.addr %s700, 3
        %s704 = sadd.s32 %s702, %s703
        %s705 = smul.addr %s704, 8
        %s706 = scalar_lea.vmem %s9, %s705
      $region72: #{detect_forward.5} parent=67 // pred_fallthru
        _
      // Predicated region
      $region73: #{detect_forward.5} parent=67 // pred_check
        %p707 = pneg %p294
      $region74: #{detect_forward.5} parent=67 // pred_check_branch
        %709 = sbr.rel (%p707) target = $region76
      $region75: #{detect_forward.5} parent=67 // pred_region
        %p710 = scmp.lt.s32.totalorder %s28, 1
        %s711 = scalar_select %p710, %s28, 1
        %p712 = scmp.lt.s32.totalorder %s29, 0
        %s713 = scalar_select %p712, %s29, 0
        %s714 = smul.addr %s711, 3
        %s715 = sadd.s32 %s713, %s714
        %s716 = smul.addr %s715, 8
        %s717 = scalar_lea.vmem %s10, %s716
      $region76: #{detect_forward.5} parent=67 // pred_fallthru
        _
    $region68: #{detect_forward.5} parent=5 // pred_fallthru
      _
  $region6: #{detect_forward.5} parent=0 // loop_footer
    %s21 = sadd.s32 1, %s17
  $region7: #{detect_forward.5} parent=0 // loop_footer_branch
    %16 = sbr.rel target = $region3
  $region8: #{detect_forward.5} parent=0 // loop_exit
    _

// kernel: detect_forward.3
$region0: #{detect_forward.3}
  #allocation0 [shape = 'u32[]', space=smem, size = 0x4, offset = 0x4, fixed_abs, tag = 'smem constant byte address 0x4 - core index']
  #allocation1 [shape = 'u32[72,128]{1,0:T(1,128)}', space=vmem, size = 0x9000, scoped, tag = 'internal scratch']
  %s0 = inlined_call_operand.vmem [shape: f32[2,16,1792], index: 0, kind: input, shape index: {}]
  %s1 = inlined_call_operand.vmem [shape: f32[24,16], index: 1, kind: input, shape index: {}]
  %s2 = inlined_call_operand.vmem [shape: f32[24,1], index: 2, kind: input, shape index: {}]
  %s3 = inlined_call_operand.vmem [shape: f32[24,1], index: 3, kind: input, shape index: {}]
  %s4 = inlined_call_operand.vmem [shape: f32[24,1], index: 4, kind: input, shape index: {}]
  %s5 = inlined_call_operand.vmem [shape: f32[24,1], index: 5, kind: input, shape index: {}]
  %s6 = inlined_call_operand.vmem [shape: f32[24,1], index: 6, kind: input, shape index: {}]
  %s7 = inlined_call_operand.vmem [shape: f32[1,1792], index: 7, kind: input, shape index: {}]
  %s8 = inlined_call_operand.vmem [shape: f32[1,1792], index: 8, kind: input, shape index: {}]
  %s9 = inlined_call_operand.vmem [shape: f32[2,24,1792], index: 9, kind: output, shape index: {0}]
  %s10 = inlined_call_operand.vmem [shape: f32[2,24,1792], index: 10, kind: output, shape index: {1}]
  %11 = xla_tuple %s9, %s10
  %s12 = sld [smem:[#allocation0]]
  $region138: #{detect_forward.3} parent=0
    _
  %s14 = ssub.s32 1, %s12
  %s15 = scalar_select 0, %s14, %s12
  $region1: #{detect_forward.3} parent=0
    #allocation2 [shape = 'u8[114688]{0}', space=vmem, size = 0x1c000, scoped, tag = 'input window, operand 0']
    #allocation3 [shape = 'u8[172032]{0}', space=vmem, size = 0x2a000, scoped, tag = 'output window, operand 0']
    #allocation4 [shape = 'u8[172032]{0}', space=vmem, size = 0x2a000, scoped, tag = 'output window, operand 1']
    loop: start=0, step=1, limit=6
    $region2: #{detect_forward.3} parent=1 // loop_pre_header
      _
    $region3: #{detect_forward.3} parent=1 // loop_header
      %s17 = sphi 0, %s21
      %p18 = scmp.ge.s32.totalorder %s17, 6
      %s24 = sphi 0, %s36
      %s25 = sphi 0, %s32
      %s26 = sphi 0, %s24
      %s27 = sphi 0, %s25
      %s28 = sphi 0, %s26
      %s29 = sphi 0, %s27
      %s41 = sphi 0, %s43
      %s44 = sphi 0, %s41
      %s45 = sphi 0, %s44
      %s61 = sphi 0, %s45
      %s65 = sphi 0, %s65
      %s67 = sphi 0, %s65
      %s68 = sphi 0, %s67
      %s82 = sphi 0, %s68
      %s86 = sphi 0, %s86
      %s88 = sphi 0, %s86
      %s89 = sphi 0, %s88
      %s103 = sphi 0, %s89
      %s107 = sphi 0, %s107
      %s109 = sphi 0, %s107
      %s110 = sphi 0, %s109
      %s124 = sphi 0, %s110
      %s128 = sphi 0, %s128
      %s130 = sphi 0, %s128
      %s131 = sphi 0, %s130
      %s145 = sphi 0, %s131
      %s149 = sphi 0, %s149
      %s151 = sphi 0, %s149
      %s152 = sphi 0, %s151
      %s166 = sphi 0, %s152
      %s170 = sphi 0, %s170
      %s172 = sphi 0, %s170
      %s173 = sphi 0, %s172
      %s187 = sphi 0, %s173
      %s193 = sphi 0, %s195
      %s196 = sphi 0, %s193
      %s197 = sphi 0, %s196
      %s213 = sphi 0, %s197
      %s219 = sphi 0, %s221
      %s222 = sphi 0, %s219
      %s223 = sphi 0, %s222
      %s239 = sphi 0, %s223
      %s247 = sphi 0, %s249
      %s250 = sphi 0, %s247
      %s251 = sphi 0, %s250
      %s267 = sphi 0, %s251
      %s275 = sphi 0, %s277
      %s278 = sphi 0, %s275
      %s279 = sphi 0, %s278
      %s295 = sphi 0, %s279
    $region4: #{detect_forward.3} parent=1 // loop_header_branch
      %20 = sbr.rel (%p18) target = $region8
    $region5: #{detect_forward.3} parent=1 // loop_body
      %s22 = ssub.s32 %s17, 1
      %s23 = ssub.s32 %s17, 2
      %s30 = sadd.s32 1, %s25
      %p31 = scmp.ge.s32.totalorder %s30, 2
      %s32 = scalar_select %p31, 0, %s30
      %s33 = sadd.s32 1, %s24
      %s34 = scalar_select %p31, %s33, %s24
      %p35 = scmp.ge.s32.totalorder %s34, 2
      %s36 = scalar_select %p35, 0, %s34
      %s37 = ssub.s32 %s24, %s36
      %s38 = ssub.s32 %s25, %s32
      %s39 = sor.u32 %s37, %s38
      %p40 = scmp.eq.s32.totalorder %s39, 0
      %s42 = sadd.s32 %s41, 1
      %s43 = scalar_select %p40, %s41, %s42
      %p46 = pneg %p40
      %p47 = scmp.eq.s32.totalorder %s17, 3
      %p48 = por %p46, %p47
      %p49 = scmp.ne.s32.totalorder %s41, %s44
      %p50 = scmp.eq.s32.totalorder %s17, 0
      %p51 = por %p49, %p50
      %p52 = scmp.ne.s32.totalorder %s41, %s44
      %p53 = scmp.eq.s32.totalorder %s22, 3
      %p54 = por %p52, %p53
      %p55 = scmp.ne.s32.totalorder %s44, %s45
      %p56 = scmp.eq.s32.totalorder %s22, 0
      %p57 = por %p55, %p56
      %p58 = scmp.ne.s32.totalorder %s44, %s45
      %p59 = scmp.eq.s32.totalorder %s23, 3
      %p60 = por %p58, %p59
      %p62 = scmp.ne.s32.totalorder %s45, %s61
      %p63 = scmp.eq.s32.totalorder %s23, 0
      %p64 = por %p62, %p63
      %s66 = sadd.s32 %s65, 1
      %p69 = scmp.eq.s32.totalorder %s17, 3
      %p70 = scmp.ne.s32.totalorder %s65, %s67
      %p71 = scmp.eq.s32.totalorder %s17, 0
      %p72 = por %p70, %p71
      %p73 = scmp.ne.s32.totalorder %s65, %s67
      %p74 = scmp.eq.s32.totalorder %s22, 3
      %p75 = por %p73, %p74
      %p76 = scmp.ne.s32.totalorder %s67, %s68
      %p77 = scmp.eq.s32.totalorder %s22, 0
      %p78 = por %p76, %p77
      %p79 = scmp.ne.s32.totalorder %s67, %s68
      %p80 = scmp.eq.s32.totalorder %s23, 3
      %p81 = por %p79, %p80
      %p83 = scmp.ne.s32.totalorder %s68, %s82
      %p84 = scmp.eq.s32.totalorder %s23, 0
      %p85 = por %p83, %p84
      %s87 = sadd.s32 %s86, 1
      %p90 = scmp.eq.s32.totalorder %s17, 3
      %p91 = scmp.ne.s32.totalorder %s86, %s88
      %p92 = scmp.eq.s32.totalorder %s17, 0
      %p93 = por %p91, %p92
      %p94 = scmp.ne.s32.totalorder %s86, %s88
      %p95 = scmp.eq.s32.totalorder %s22, 3
      %p96 = por %p94, %p95
      %p97 = scmp.ne.s32.totalorder %s88, %s89
      %p98 = scmp.eq.s32.totalorder %s22, 0
      %p99 = por %p97, %p98
      %p100 = scmp.ne.s32.totalorder %s88, %s89
      %p101 = scmp.eq.s32.totalorder %s23, 3
      %p102 = por %p100, %p101
      %p104 = scmp.ne.s32.totalorder %s89, %s103
      %p105 = scmp.eq.s32.totalorder %s23, 0
      %p106 = por %p104, %p105
      %s108 = sadd.s32 %s107, 1
      %p111 = scmp.eq.s32.totalorder %s17, 3
      %p112 = scmp.ne.s32.totalorder %s107, %s109
      %p113 = scmp.eq.s32.totalorder %s17, 0
      %p114 = por %p112, %p113
      %p115 = scmp.ne.s32.totalorder %s107, %s109
      %p116 = scmp.eq.s32.totalorder %s22, 3
      %p117 = por %p115, %p116
      %p118 = scmp.ne.s32.totalorder %s109, %s110
      %p119 = scmp.eq.s32.totalorder %s22, 0
      %p120 = por %p118, %p119
      %p121 = scmp.ne.s32.totalorder %s109, %s110
      %p122 = scmp.eq.s32.totalorder %s23, 3
      %p123 = por %p121, %p122
      %p125 = scmp.ne.s32.totalorder %s110, %s124
      %p126 = scmp.eq.s32.totalorder %s23, 0
      %p127 = por %p125, %p126
      %s129 = sadd.s32 %s128, 1
      %p132 = scmp.eq.s32.totalorder %s17, 3
      %p133 = scmp.ne.s32.totalorder %s128, %s130
      %p134 = scmp.eq.s32.totalorder %s17, 0
      %p135 = por %p133, %p134
      %p136 = scmp.ne.s32.totalorder %s128, %s130
      %p137 = scmp.eq.s32.totalorder %s22, 3
      %p138 = por %p136, %p137
      %p139 = scmp.ne.s32.totalorder %s130, %s131
      %p140 = scmp.eq.s32.totalorder %s22, 0
      %p141 = por %p139, %p140
      %p142 = scmp.ne.s32.totalorder %s130, %s131
      %p143 = scmp.eq.s32.totalorder %s23, 3
      %p144 = por %p142, %p143
      %p146 = scmp.ne.s32.totalorder %s131, %s145
      %p147 = scmp.eq.s32.totalorder %s23, 0
      %p148 = por %p146, %p147
      %s150 = sadd.s32 %s149, 1
      %p153 = scmp.eq.s32.totalorder %s17, 3
      %p154 = scmp.ne.s32.totalorder %s149, %s151
      %p155 = scmp.eq.s32.totalorder %s17, 0
      %p156 = por %p154, %p155
      %p157 = scmp.ne.s32.totalorder %s149, %s151
      %p158 = scmp.eq.s32.totalorder %s22, 3
      %p159 = por %p157, %p158
      %p160 = scmp.ne.s32.totalorder %s151, %s152
      %p161 = scmp.eq.s32.totalorder %s22, 0
      %p162 = por %p160, %p161
      %p163 = scmp.ne.s32.totalorder %s151, %s152
      %p164 = scmp.eq.s32.totalorder %s23, 3
      %p165 = por %p163, %p164
      %p167 = scmp.ne.s32.totalorder %s152, %s166
      %p168 = scmp.eq.s32.totalorder %s23, 0
      %p169 = por %p167, %p168
      %s171 = sadd.s32 %s170, 1
      %p174 = scmp.eq.s32.totalorder %s17, 3
      %p175 = scmp.ne.s32.totalorder %s170, %s172
      %p176 = scmp.eq.s32.totalorder %s17, 0
      %p177 = por %p175, %p176
      %p178 = scmp.ne.s32.totalorder %s170, %s172
      %p179 = scmp.eq.s32.totalorder %s22, 3
      %p180 = por %p178, %p179
      %p181 = scmp.ne.s32.totalorder %s172, %s173
      %p182 = scmp.eq.s32.totalorder %s22, 0
      %p183 = por %p181, %p182
      %p184 = scmp.ne.s32.totalorder %s172, %s173
      %p185 = scmp.eq.s32.totalorder %s23, 3
      %p186 = por %p184, %p185
      %p188 = scmp.ne.s32.totalorder %s173, %s187
      %p189 = scmp.eq.s32.totalorder %s23, 0
      %p190 = por %p188, %p189
      %s191 = ssub.s32 %s25, %s32
      %p192 = scmp.eq.s32.totalorder %s191, 0
      %s194 = sadd.s32 %s193, 1
      %s195 = scalar_select %p192, %s193, %s194
      %p198 = pneg %p192
      %p199 = scmp.eq.s32.totalorder %s17, 3
      %p200 = por %p198, %p199
      %p201 = scmp.ne.s32.totalorder %s193, %s196
      %p202 = scmp.eq.s32.totalorder %s17, 0
      %p203 = por %p201, %p202
      %p204 = scmp.ne.s32.totalorder %s193, %s196
      %p205 = scmp.eq.s32.totalorder %s22, 3
      %p206 = por %p204, %p205
      %p207 = scmp.ne.s32.totalorder %s196, %s197
      %p208 = scmp.eq.s32.totalorder %s22, 0
      %p209 = por %p207, %p208
      %p210 = scmp.ne.s32.totalorder %s196, %s197
      %p211 = scmp.eq.s32.totalorder %s23, 3
      %p212 = por %p210, %p211
      %p214 = scmp.ne.s32.totalorder %s197, %s213
      %p215 = scmp.eq.s32.totalorder %s23, 0
      %p216 = por %p214, %p215
      %s217 = ssub.s32 %s25, %s32
      %p218 = scmp.eq.s32.totalorder %s217, 0
      %s220 = sadd.s32 %s219, 1
      %s221 = scalar_select %p218, %s219, %s220
      %p224 = pneg %p218
      %p225 = scmp.eq.s32.totalorder %s17, 3
      %p226 = por %p224, %p225
      %p227 = scmp.ne.s32.totalorder %s219, %s222
      %p228 = scmp.eq.s32.totalorder %s17, 0
      %p229 = por %p227, %p228
      %p230 = scmp.ne.s32.totalorder %s219, %s222
      %p231 = scmp.eq.s32.totalorder %s22, 3
      %p232 = por %p230, %p231
      %p233 = scmp.ne.s32.totalorder %s222, %s223
      %p234 = scmp.eq.s32.totalorder %s22, 0
      %p235 = por %p233, %p234
      %p236 = scmp.ne.s32.totalorder %s222, %s223
      %p237 = scmp.eq.s32.totalorder %s23, 3
      %p238 = por %p236, %p237
      %p240 = scmp.ne.s32.totalorder %s223, %s239
      %p241 = scmp.eq.s32.totalorder %s23, 0
      %p242 = por %p240, %p241
      %s243 = ssub.s32 %s24, %s36
      %s244 = ssub.s32 %s25, %s32
      %s245 = sor.u32 %s243, %s244
      %p246 = scmp.eq.s32.totalorder %s245, 0
      %s248 = sadd.s32 %s247, 1
      %s249 = scalar_select %p246, %s247, %s248
      %p252 = pneg %p246
      %p253 = scmp.eq.s32.totalorder %s17, 3
      %p254 = por %p252, %p253
      %p255 = scmp.ne.s32.totalorder %s247, %s250
      %p256 = scmp.eq.s32.totalorder %s17, 0
      %p257 = por %p255, %p256
      %p258 = scmp.ne.s32.totalorder %s247, %s250
      %p259 = scmp.eq.s32.totalorder %s22, 3
      %p260 = por %p258, %p259
      %p261 = scmp.ne.s32.totalorder %s250, %s251
      %p262 = scmp.eq.s32.totalorder %s22, 0
      %p263 = por %p261, %p262
      %p264 = scmp.ne.s32.totalorder %s250, %s251
      %p265 = scmp.eq.s32.totalorder %s23, 3
      %p266 = por %p264, %p265
      %p268 = scmp.ne.s32.totalorder %s251, %s267
      %p269 = scmp.eq.s32.totalorder %s23, 0
      %p270 = por %p268, %p269
      %s271 = ssub.s32 %s24, %s36
      %s272 = ssub.s32 %s25, %s32
      %s273 = sor.u32 %s271, %s272
      %p274 = scmp.eq.s32.totalorder %s273, 0
      %s276 = sadd.s32 %s275, 1
      %s277 = scalar_select %p274, %s275, %s276
      %p280 = pneg %p274
      %p281 = scmp.eq.s32.totalorder %s17, 3
      %p282 = por %p280, %p281
      %p283 = scmp.ne.s32.totalorder %s275, %s278
      %p284 = scmp.eq.s32.totalorder %s17, 0
      %p285 = por %p283, %p284
      %p286 = scmp.ne.s32.totalorder %s275, %s278
      %p287 = scmp.eq.s32.totalorder %s22, 3
      %p288 = por %p286, %p287
      %p289 = scmp.ne.s32.totalorder %s278, %s279
      %p290 = scmp.eq.s32.totalorder %s22, 0
      %p291 = por %p289, %p290
      %p292 = scmp.ne.s32.totalorder %s278, %s279
      %p293 = scmp.eq.s32.totalorder %s23, 3
      %p294 = por %p292, %p293
      %p296 = scmp.ne.s32.totalorder %s279, %s295
      %p297 = scmp.eq.s32.totalorder %s23, 0
      %p298 = por %p296, %p297
      %p299 = scmp.le.s32.totalorder 1, %s17
      %p300 = scmp.lt.s32.totalorder %s17, 5
      %p301 = pnand %p299, %p300
      %p302 = pneg %p301
      // Predicated region
      $region9: #{detect_forward.3} parent=5 // pred_check
        _
      $region10: #{detect_forward.3} parent=5 // pred_check_branch
        %304 = sbr.rel (%p301) target = $region12
      $region11: #{detect_forward.3} parent=5 // pred_region
        %s305 = ssub.s32 %s17, 1
        // Predicated region
        $region13: #{detect_forward.3} parent=11 // pred_check
          %p306 = pneg %p78
        $region14: #{detect_forward.3} parent=11 // pred_check_branch
          %308 = sbr.rel (%p306) target = $region16
        $region15: #{detect_forward.3} parent=11 // pred_region
          _
        $region16: #{detect_forward.3} parent=11 // pred_fallthru
          _
        // Predicated region
        $region17: #{detect_forward.3} parent=11 // pred_check
          %p309 = pneg %p99
        $region18: #{detect_forward.3} parent=11 // pred_check_branch
          %311 = sbr.rel (%p309) target = $region20
        $region19: #{detect_forward.3} parent=11 // pred_region
          _
        $region20: #{detect_forward.3} parent=11 // pred_fallthru
          _
        // Predicated region
        $region21: #{detect_forward.3} parent=11 // pred_check
          %p312 = pneg %p120
        $region22: #{detect_forward.3} parent=11 // pred_check_branch
          %314 = sbr.rel (%p312) target = $region24
        $region23: #{detect_forward.3} parent=11 // pred_region
          _
        $region24: #{detect_forward.3} parent=11 // pred_fallthru
          _
        // Predicated region
        $region25: #{detect_forward.3} parent=11 // pred_check
          %p315 = pneg %p141
        $region26: #{detect_forward.3} parent=11 // pred_check_branch
          %317 = sbr.rel (%p315) target = $region28
        $region27: #{detect_forward.3} parent=11 // pred_region
          _
        $region28: #{detect_forward.3} parent=11 // pred_fallthru
          _
        // Predicated region
        $region29: #{detect_forward.3} parent=11 // pred_check
          %p318 = pneg %p162
        $region30: #{detect_forward.3} parent=11 // pred_check_branch
          %320 = sbr.rel (%p318) target = $region32
        $region31: #{detect_forward.3} parent=11 // pred_region
          _
        $region32: #{detect_forward.3} parent=11 // pred_fallthru
          _
        // Predicated region
        $region33: #{detect_forward.3} parent=11 // pred_check
          %p321 = pneg %p183
        $region34: #{detect_forward.3} parent=11 // pred_check_branch
          %323 = sbr.rel (%p321) target = $region36
        $region35: #{detect_forward.3} parent=11 // pred_region
          _
        $region36: #{detect_forward.3} parent=11 // pred_fallthru
          _
      $region12: #{detect_forward.3} parent=5 // pred_fallthru
        _
      %p324 = scmp.lt.s32.totalorder %s17, 4
      // Predicated region
      $region37: #{detect_forward.3} parent=5 // pred_check
        %p325 = pneg %p324
      $region38: #{detect_forward.3} parent=5 // pred_check_branch
        %327 = sbr.rel (%p325) target = $region40
      $region39: #{detect_forward.3} parent=5 // pred_region
        // Predicated region
        $region41: #{detect_forward.3} parent=39 // pred_check
          %p328 = pneg %p51
        $region42: #{detect_forward.3} parent=39 // pred_check_branch
          %330 = sbr.rel (%p328) target = $region44
        $region43: #{detect_forward.3} parent=39 // pred_region
          %s331 = sand.u32 %s41, 1
          %s332 = sand.u32 %s41, 1
          %s333 = smul.addr %s332, 112
          %s334 = scalar_lea.vmem [#allocation2], %s333
          %s335 = smul.u32 7, %s25
          %s336 = smul.addr %s24, 28
          %s337 = sadd.s32 %s335, %s336
          %s338 = smul.addr %s337, 8
          %s339 = scalar_lea.vmem %s0, %s338
          // Predicated region
          $region45: #{detect_forward.3} parent=43 // pred_check
            _
          $region46: #{detect_forward.3} parent=43 // pred_check_branch
            %341 = sbr.rel (0) target = $region48
          $region47: #{detect_forward.3} parent=43 // pred_region
            // Predicated region
            $region49: #{detect_forward.3} parent=47 // pred_check
              _
            $region50: #{detect_forward.3} parent=47 // pred_check_branch
              %343 = sbr.rel (0) target = $region52
            $region51: #{detect_forward.3} parent=47 // pred_region
              loop: start=0, step=1, limit=1
              $region53: #{detect_forward.3} parent=51 // loop_pre_header
                _
              $region54: #{detect_forward.3} parent=51 // loop_header
                %s345 = sphi 0, %s349
                %p346 = scmp.ge.s32.totalorder %s345, 1
                %s350 = sphi %s339, %s339
                %s351 = sphi %s334, %s334
              $region55: #{detect_forward.3} parent=51 // loop_header_branch
                %348 = sbr.rel (%p346) target = $region59
              $region56: #{detect_forward.3} parent=51 // loop_body
                %v352 = vld [vmem:[%s350] sm:$0xff]
                %353 = vst [vmem:[%s351] sm:$0xff] %v352
                %v354 = vld [vmem:[%s350 + $0x8] sm:$0xff]
                %355 = vst [vmem:[%s351 + $0x8] sm:$0xff] %v354
                %v356 = vld [vmem:[%s350 + $0x10] sm:$0xff]
                %357 = vst [vmem:[%s351 + $0x10] sm:$0xff] %v356
                %v358 = vld [vmem:[%s350 + $0x18] sm:$0xff]
                %359 = vst [vmem:[%s351 + $0x18] sm:$0xff] %v358
                %v360 = vld [vmem:[%s350 + $0x20] sm:$0xff]
                %361 = vst [vmem:[%s351 + $0x20] sm:$0xff] %v360
                %v362 = vld [vmem:[%s350 + $0x28] sm:$0xff]
                %363 = vst [vmem:[%s351 + $0x28] sm:$0xff] %v362
                %v364 = vld [vmem:[%s350 + $0x30] sm:$0xff]
                %365 = vst [vmem:[%s351 + $0x30] sm:$0xff] %v364
                %v366 = vld [vmem:[%s350 + $0x70] sm:$0xff]
                %367 = vst [vmem:[%s351 + $0x38] sm:$0xff] %v366
                %v368 = vld [vmem:[%s350 + $0x78] sm:$0xff]
                %369 = vst [vmem:[%s351 + $0x40] sm:$0xff] %v368
                %v370 = vld [vmem:[%s350 + $0x80] sm:$0xff]
                %371 = vst [vmem:[%s351 + $0x48] sm:$0xff] %v370
                %v372 = vld [vmem:[%s350 + $0x88] sm:$0xff]
                %373 = vst [vmem:[%s351 + $0x50] sm:$0xff] %v372
                %v374 = vld [vmem:[%s350 + $0x90] sm:$0xff]
                %375 = vst [vmem:[%s351 + $0x58] sm:$0xff] %v374
                %v376 = vld [vmem:[%s350 + $0x98] sm:$0xff]
                %377 = vst [vmem:[%s351 + $0x60] sm:$0xff] %v376
                %v378 = vld [vmem:[%s350 + $0xa0] sm:$0xff]
                %379 = vst [vmem:[%s351 + $0x68] sm:$0xff] %v378
              $region57: #{detect_forward.3} parent=51 // loop_footer
                %s349 = sadd.s32 1, %s345
              $region58: #{detect_forward.3} parent=51 // loop_footer_branch
                %344 = sbr.rel target = $region54
              $region59: #{detect_forward.3} parent=51 // loop_exit
                _
            $region52: #{detect_forward.3} parent=47 // pred_fallthru
              _
            // Predicated region
            $region60: #{detect_forward.3} parent=47 // pred_check
              _
            $region61: #{detect_forward.3} parent=47 // pred_check_branch
              %381 = sbr.rel target = $region63
            $region62: #{detect_forward.3} parent=47 // pred_region
              _
            $region63: #{detect_forward.3} parent=47 // pred_fallthru
              _
          $region48: #{detect_forward.3} parent=43 // pred_fallthru
            _
          %382 = vnop
        $region44: #{detect_forward.3} parent=39 // pred_fallthru
          _
        // Predicated region
        $region64: #{detect_forward.3} parent=39 // pred_check
          %p383 = pneg %p203
        $region65: #{detect_forward.3} parent=39 // pred_check_branch
          %385 = sbr.rel (%p383) target = $region67
        $region66: #{detect_forward.3} parent=39 // pred_region
          %s386 = smul.u32 7, %s25
          %p387 = scmp.lt.s32.totalorder %s386, 13
          %s388 = scalar_select %p387, %s386, 13
          %s389 = scalar_lea.vmem %s7, %s388
          %s390 = smul.u32 7, %s25
        $region67: #{detect_forward.3} parent=39 // pred_fallthru
          _
        // Predicated region
        $region68: #{detect_forward.3} parent=39 // pred_check
          %p391 = pneg %p229
        $region69: #{detect_forward.3} parent=39 // pred_check_branch
          %393 = sbr.rel (%p391) target = $region71
        $region70: #{detect_forward.3} parent=39 // pred_region
          %s394 = smul.u32 7, %s25
          %p395 = scmp.lt.s32.totalorder %s394, 13
          %s396 = scalar_select %p395, %s394, 13
          %s397 = scalar_lea.vmem %s8, %s396
          %s398 = smul.u32 7, %s25
        $region71: #{detect_forward.3} parent=39 // pred_fallthru
          _
      $region40: #{detect_forward.3} parent=5 // pred_fallthru
        _
      %p399 = scmp.le.s32.totalorder 1, %s17
      %p400 = scmp.lt.s32.totalorder %s17, 5
      %p401 = pnand %p399, %p400
      %p402 = pneg %p401
      // Predicated region
      $region72: #{detect_forward.3} parent=5 // pred_check
        _
      $region73: #{detect_forward.3} parent=5 // pred_check_branch
        %404 = sbr.rel (%p401) target = $region75
      $region74: #{detect_forward.3} parent=5 // pred_region
        %s405 = ssub.s32 %s17, 1
        %s406 = sand.u32 %s44, 1
        %s407 = sand.u32 %s44, 1
        %s408 = smul.addr %s407, 112
        %s409 = scalar_lea.vmem [#allocation2], %s408
        // Predicated region
        $region76: #{detect_forward.3} parent=74 // pred_check
          %p410 = pneg %p57
        $region77: #{detect_forward.3} parent=74 // pred_check_branch
          %412 = sbr.rel (%p410) target = $region79
        $region78: #{detect_forward.3} parent=74 // pred_region
          _
        $region79: #{detect_forward.3} parent=74 // pred_fallthru
          _
        %s413 = sand.u32 %s44, 1
        %s414 = sand.u32 %s44, 1
        %s415 = smul.addr %s414, 112
        %s416 = scalar_lea.vmem [#allocation2], %s415
        %p417 = pneg %p57
        %p418 = pneg %p54
        %p419 = pneg %p78
        %p420 = pneg %p75
        %p421 = pneg %p99
        %p422 = pneg %p96
        %p423 = pneg %p120
        %p424 = pneg %p117
        %p425 = pneg %p141
        %p426 = pneg %p138
        %p427 = pneg %p162
        %p428 = pneg %p159
        %p429 = pneg %p183
        %p430 = pneg %p180
        %s431 = smul.u32 7, %s27
        %p432 = scmp.lt.s32.totalorder %s431, 13
        %s433 = scalar_select %p432, %s431, 13
        %s434 = scalar_lea.vmem %s7, %s433
        %p435 = pneg %p209
        %p436 = pneg %p206
        %s437 = smul.u32 7, %s27
        %p438 = scmp.lt.s32.totalorder %s437, 13
        %s439 = scalar_select %p438, %s437, 13
        %s440 = scalar_lea.vmem %s8, %s439
        %p441 = pneg %p235
        %p442 = pneg %p232
        %p443 = pneg %p263
        %p444 = pneg %p260
        %s445 = sand.u32 %s250, 1
        %s446 = sand.u32 %s250, 1
        %s447 = smul.addr %s446, 168
        %s448 = scalar_lea.vmem [#allocation3], %s447
        %p449 = pneg %p291
        %p450 = pneg %p288
        %s451 = sand.u32 %s278, 1
        %s452 = sand.u32 %s278, 1
        %s453 = smul.addr %s452, 168
        %s454 = scalar_lea.vmem [#allocation4], %s453
        %s455 = smul.u32 7, %s27
        %s456 = smul.u32 7, %s27
        %p457 = scmp.lt.s32.totalorder %s456, 13
        %s458 = scalar_select %p457, %s456, 13
        %s459 = scalar_lea.vmem %s7, %s458
        %s460 = smul.u32 7, %s27
        %s461 = smul.u32 7, %s27
        %p462 = scmp.lt.s32.totalorder %s461, 13
        %s463 = scalar_select %p462, %s461, 13
        %s464 = scalar_lea.vmem %s8, %s463
        %s465 = smul.u32 7, %s27
        %s466 = smul.u32 7, %s27
        %s467 = smul.u32 7, %s27
        %v468 = vld [vmem:[%s1] sm:$0xff]
        %v469 = vld [vmem:[%s1 + $0x8] sm:$0xff]
        %v470 = vld [vmem:[%s1 + $0x10] sm:$0xff]
        %v471 = vld [vmem:[%s409] sm:$0xff]
        %v472 = vld [vmem:[%s409 + $0x8] sm:$0xff]
        %v473 = vld [vmem:[%s409 + $0x10] sm:$0xff]
        %v474 = vld [vmem:[%s409 + $0x18] sm:$0xff]
        %v475 = vld [vmem:[%s409 + $0x20] sm:$0xff]
        %v476 = vld [vmem:[%s409 + $0x28] sm:$0xff]
        %v477 = vld [vmem:[%s409 + $0x30] sm:$0xff]
        %v478 = vld [vmem:[%s409 + $0x38] sm:$0xff]
        %v479 = vld [vmem:[%s409 + $0x40] sm:$0xff]
        %v480 = vld [vmem:[%s409 + $0x48] sm:$0xff]
        %v481 = vld [vmem:[%s409 + $0x50] sm:$0xff]
        %v482 = vld [vmem:[%s409 + $0x58] sm:$0xff]
        %v483 = vld [vmem:[%s409 + $0x60] sm:$0xff]
        %v484 = vld [vmem:[%s409 + $0x68] sm:$0xff]
        %v485 = vld [vmem:[%s2] sm:$0xff]
        %v486 = vld [vmem:[%s2 + $0x8] sm:$0xff]
        %v487 = vld [vmem:[%s2 + $0x10] sm:$0xff]
        %489 = vset.pattern.permute.xlu0 0
        %490 = vperm.xlu0 %489, %v485
        %v491 = vpop.permute.xlu0 %490
        %494 = vset.pattern.permute.xlu0 0
        %495 = vperm.xlu0 %494, %v486
        %v496 = vpop.permute.xlu0 %495
        %499 = vset.pattern.permute.xlu0 0
        %500 = vperm.xlu0 %499, %v487
        %v501 = vpop.permute.xlu0 %500
        %vm503 = vcmask 130048
        %v505 = vsel %vm503, %v468, 0
        %v508 = vsel %vm503, %v469, 0
        %v511 = vsel %vm503, %v470, 0
        %513 = vmatpush.msra.mxu0 0.0
        %514 = vmatpush.msra.mxu0 0.0
        %515 = vmatpush.msra.mxu0 0.0
        %516 = vmatpush.msra.mxu0 0.0
        %517 = vmatpush.msra.mxu0 0.0
        %518 = vmatpush.msra.mxu0 0.0
        %519 = vmatpush.msra.mxu0 0.0
        %520 = vmatpush.msra.mxu0 0.0
        %521 = vmatpush.msra.mxu0 0.0
        %522 = vmatpush.msra.mxu0 0.0
        %523 = vmatpush.msra.mxu0 0.0
        %524 = vmatpush.msra.mxu0 0.0
        %525 = vmatpush.msra.mxu0 0.0
        %526 = vmatpush.msra.mxu0 0.0
        %527 = vmatpush.msra.mxu0 %v478
        %528 = vmatpush.msra.mxu0 %v471
        %529 = vmatmul.f32.gmra.mxu0 %v505
        %v530 = vpop.f32.mrf.mxu0
        %v531 = vadd.f32 %v491, %v530
        %532 = vmatmul.f32.gmra.mxu0 %v508
        %v533 = vpop.f32.mrf.mxu0
        %v534 = vadd.f32 %v496, %v533
        %535 = vmatmul.f32.gmra.mxu0 %v511
        %v536 = vpop.f32.mrf.mxu0
        %v537 = vadd.f32 %v501, %v536
        %538 = vdwg.mxu0
        %539 = vmatpush.msra.mxu0 0.0
        %540 = vmatpush.msra.mxu0 0.0
        %541 = vmatpush.msra.mxu0 0.0
        %542 = vmatpush.msra.mxu0 0.0
        %543 = vmatpush.msra.mxu0 0.0
        %544 = vmatpush.msra.mxu0 0.0
        %545 = vmatpush.msra.mxu0 0.0
        %546 = vmatpush.msra.mxu0 0.0
        %547 = vmatpush.msra.mxu0 0.0
        %548 = vmatpush.msra.mxu0 0.0
        %549 = vmatpush.msra.mxu0 0.0
        %550 = vmatpush.msra.mxu0 0.0
        %551 = vmatpush.msra.mxu0 0.0
        %552 = vmatpush.msra.mxu0 0.0
        %553 = vmatpush.msra.mxu0 %v479
        %554 = vmatpush.msra.mxu0 %v472
        %555 = vmatmul.f32.gmra.mxu0 %v505
        %v556 = vpop.f32.mrf.mxu0
        %v557 = vadd.f32 %v491, %v556
        %558 = vmatmul.f32.gmra.mxu0 %v508
        %v559 = vpop.f32.mrf.mxu0
        %v560 = vadd.f32 %v496, %v559
        %561 = vmatmul.f32.gmra.mxu0 %v511
        %v562 = vpop.f32.mrf.mxu0
        %v563 = vadd.f32 %v501, %v562
        %564 = vdwg.mxu0
        %565 = vmatpush.msra.mxu0 0.0
        %566 = vmatpush.msra.mxu0 0.0
        %567 = vmatpush.msra.mxu0 0.0
        %568 = vmatpush.msra.mxu0 0.0
        %569 = vmatpush.msra.mxu0 0.0
        %570 = vmatpush.msra.mxu0 0.0
        %571 = vmatpush.msra.mxu0 0.0
        %572 = vmatpush.msra.mxu0 0.0
        %573 = vmatpush.msra.mxu0 0.0
        %574 = vmatpush.msra.mxu0 0.0
        %575 = vmatpush.msra.mxu0 0.0
        %576 = vmatpush.msra.mxu0 0.0
        %577 = vmatpush.msra.mxu0 0.0
        %578 = vmatpush.msra.mxu0 0.0
        %579 = vmatpush.msra.mxu0 %v480
        %580 = vmatpush.msra.mxu0 %v473
        %581 = vmatmul.f32.gmra.mxu0 %v505
        %v582 = vpop.f32.mrf.mxu0
        %v583 = vadd.f32 %v491, %v582
        %584 = vmatmul.f32.gmra.mxu0 %v508
        %v585 = vpop.f32.mrf.mxu0
        %v586 = vadd.f32 %v496, %v585
        %587 = vmatmul.f32.gmra.mxu0 %v511
        %v588 = vpop.f32.mrf.mxu0
        %v589 = vadd.f32 %v501, %v588
        %590 = vdwg.mxu0
        %591 = vmatpush.msra.mxu0 0.0
        %592 = vmatpush.msra.mxu0 0.0
        %593 = vmatpush.msra.mxu0 0.0
        %594 = vmatpush.msra.mxu0 0.0
        %595 = vmatpush.msra.mxu0 0.0
        %596 = vmatpush.msra.mxu0 0.0
        %597 = vmatpush.msra.mxu0 0.0
        %598 = vmatpush.msra.mxu0 0.0
        %599 = vmatpush.msra.mxu0 0.0
        %600 = vmatpush.msra.mxu0 0.0
        %601 = vmatpush.msra.mxu0 0.0
        %602 = vmatpush.msra.mxu0 0.0
        %603 = vmatpush.msra.mxu0 0.0
        %604 = vmatpush.msra.mxu0 0.0
        %605 = vmatpush.msra.mxu0 %v481
        %606 = vmatpush.msra.mxu0 %v474
        %607 = vmatmul.f32.gmra.mxu0 %v505
        %v608 = vpop.f32.mrf.mxu0
        %v609 = vadd.f32 %v491, %v608
        %610 = vmatmul.f32.gmra.mxu0 %v508
        %v611 = vpop.f32.mrf.mxu0
        %v612 = vadd.f32 %v496, %v611
        %613 = vmatmul.f32.gmra.mxu0 %v511
        %v614 = vpop.f32.mrf.mxu0
        %v615 = vadd.f32 %v501, %v614
        %616 = vdwg.mxu0
        %617 = vmatpush.msra.mxu0 0.0
        %618 = vmatpush.msra.mxu0 0.0
        %619 = vmatpush.msra.mxu0 0.0
        %620 = vmatpush.msra.mxu0 0.0
        %621 = vmatpush.msra.mxu0 0.0
        %622 = vmatpush.msra.mxu0 0.0
        %623 = vmatpush.msra.mxu0 0.0
        %624 = vmatpush.msra.mxu0 0.0
        %625 = vmatpush.msra.mxu0 0.0
        %626 = vmatpush.msra.mxu0 0.0
        %627 = vmatpush.msra.mxu0 0.0
        %628 = vmatpush.msra.mxu0 0.0
        %629 = vmatpush.msra.mxu0 0.0
        %630 = vmatpush.msra.mxu0 0.0
        %631 = vmatpush.msra.mxu0 %v482
        %632 = vmatpush.msra.mxu0 %v475
        %633 = vmatmul.f32.gmra.mxu0 %v505
        %v634 = vpop.f32.mrf.mxu0
        %v635 = vadd.f32 %v491, %v634
        %636 = vmatmul.f32.gmra.mxu0 %v508
        %v637 = vpop.f32.mrf.mxu0
        %v638 = vadd.f32 %v496, %v637
        %639 = vmatmul.f32.gmra.mxu0 %v511
        %v640 = vpop.f32.mrf.mxu0
        %v641 = vadd.f32 %v501, %v640
        %642 = vdwg.mxu0
        %643 = vmatpush.msra.mxu0 0.0
        %644 = vmatpush.msra.mxu0 0.0
        %645 = vmatpush.msra.mxu0 0.0
        %646 = vmatpush.msra.mxu0 0.0
        %647 = vmatpush.msra.mxu0 0.0
        %648 = vmatpush.msra.mxu0 0.0
        %649 = vmatpush.msra.mxu0 0.0
        %650 = vmatpush.msra.mxu0 0.0
        %651 = vmatpush.msra.mxu0 0.0
        %652 = vmatpush.msra.mxu0 0.0
        %653 = vmatpush.msra.mxu0 0.0
        %654 = vmatpush.msra.mxu0 0.0
        %655 = vmatpush.msra.mxu0 0.0
        %656 = vmatpush.msra.mxu0 0.0
        %657 = vmatpush.msra.mxu0 %v483
        %658 = vmatpush.msra.mxu0 %v476
        %659 = vmatmul.f32.gmra.mxu0 %v505
        %v660 = vpop.f32.mrf.mxu0
        %v661 = vadd.f32 %v491, %v660
        %662 = vmatmul.f32.gmra.mxu0 %v508
        %v663 = vpop.f32.mrf.mxu0
        %v664 = vadd.f32 %v496, %v663
        %665 = vmatmul.f32.gmra.mxu0 %v511
        %v666 = vpop.f32.mrf.mxu0
        %v667 = vadd.f32 %v501, %v666
        %668 = vdwg.mxu0
        %669 = vmatpush.msra.mxu0 0.0
        %670 = vmatpush.msra.mxu0 0.0
        %671 = vmatpush.msra.mxu0 0.0
        %672 = vmatpush.msra.mxu0 0.0
        %673 = vmatpush.msra.mxu0 0.0
        %674 = vmatpush.msra.mxu0 0.0
        %675 = vmatpush.msra.mxu0 0.0
        %676 = vmatpush.msra.mxu0 0.0
        %677 = vmatpush.msra.mxu0 0.0
        %678 = vmatpush.msra.mxu0 0.0
        %679 = vmatpush.msra.mxu0 0.0
        %680 = vmatpush.msra.mxu0 0.0
        %681 = vmatpush.msra.mxu0 0.0
        %682 = vmatpush.msra.mxu0 0.0
        %683 = vmatpush.msra.mxu0 %v484
        %684 = vmatpush.msra.mxu0 %v477
        %685 = vmatmul.f32.gmra.mxu0 %v505
        %v686 = vpop.f32.mrf.mxu0
        %v687 = vadd.f32 %v491, %v686
        %688 = vmatmul.f32.gmra.mxu0 %v508
        %v689 = vpop.f32.mrf.mxu0
        %v690 = vadd.f32 %v496, %v689
        %691 = vmatmul.f32.gmra.mxu0 %v511
        %v692 = vpop.f32.mrf.mxu0
        %v693 = vadd.f32 %v501, %v692
        %694 = vdwg.mxu0
        %695 = vst [vmem:[%s448] sm:$0xff] %v531
        %696 = vst [vmem:[%s448 + $0x8] sm:$0xff] %v557
        %697 = vst [vmem:[%s448 + $0x10] sm:$0xff] %v583
        %698 = vst [vmem:[%s448 + $0x18] sm:$0xff] %v609
        %699 = vst [vmem:[%s448 + $0x20] sm:$0xff] %v635
        %700 = vst [vmem:[%s448 + $0x28] sm:$0xff] %v661
        %701 = vst [vmem:[%s448 + $0x30] sm:$0xff] %v687
        %702 = vst [vmem:[%s448 + $0x38] sm:$0xff] %v534
        %703 = vst [vmem:[%s448 + $0x40] sm:$0xff] %v560
        %704 = vst [vmem:[%s448 + $0x48] sm:$0xff] %v586
        %705 = vst [vmem:[%s448 + $0x50] sm:$0xff] %v612
        %706 = vst [vmem:[%s448 + $0x58] sm:$0xff] %v638
        %707 = vst [vmem:[%s448 + $0x60] sm:$0xff] %v664
        %708 = vst [vmem:[%s448 + $0x68] sm:$0xff] %v690
        %709 = vst [vmem:[%s448 + $0x70] sm:$0xff] %v537
        %710 = vst [vmem:[%s448 + $0x78] sm:$0xff] %v563
        %711 = vst [vmem:[%s448 + $0x80] sm:$0xff] %v589
        %712 = vst [vmem:[%s448 + $0x88] sm:$0xff] %v615
        %713 = vst [vmem:[%s448 + $0x90] sm:$0xff] %v641
        %714 = vst [vmem:[%s448 + $0x98] sm:$0xff] %v667
        %715 = vst [vmem:[%s448 + $0xa0] sm:$0xff] %v693
        %v716 = vxor.u32 %v531, 2147483648
        %v717 = vxor.u32 %v557, 2147483648
        %v718 = vxor.u32 %v583, 2147483648
        %v719 = vxor.u32 %v609, 2147483648
        %v720 = vxor.u32 %v635, 2147483648
        %v721 = vxor.u32 %v661, 2147483648
        %v722 = vxor.u32 %v687, 2147483648
        %v723 = vxor.u32 %v534, 2147483648
        %v724 = vxor.u32 %v560, 2147483648
        %v725 = vxor.u32 %v586, 2147483648
        %v726 = vxor.u32 %v612, 2147483648
        %v727 = vxor.u32 %v638, 2147483648
        %v728 = vxor.u32 %v664, 2147483648
        %v729 = vxor.u32 %v690, 2147483648
        %v730 = vxor.u32 %v537, 2147483648
        %v731 = vxor.u32 %v563, 2147483648
        %v732 = vxor.u32 %v589, 2147483648
        %v733 = vxor.u32 %v615, 2147483648
        %v734 = vxor.u32 %v641, 2147483648
        %v735 = vxor.u32 %v667, 2147483648
        %v736 = vxor.u32 %v693, 2147483648
        %v737 = vmul.f32 %v716, 1.442695
        %v738 = vpow.pop %v737
        %v739 = vmul.f32 %v717, 1.442695
        %v740 = vpow.pop %v739
        %v741 = vmul.f32 %v718, 1.442695
        %v742 = vpow.pop %v741
        %v743 = vmul.f32 %v719, 1.442695
        %v744 = vpow.pop %v743
        %v745 = vmul.f32 %v720, 1.442695
        %v746 = vpow.pop %v745
        %v747 = vmul.f32 %v721, 1.442695
        %v748 = vpow.pop %v747
        %v749 = vmul.f32 %v722, 1.442695
        %v750 = vpow.pop %v749
        %v751 = vmul.f32 %v723, 1.442695
        %v752 = vpow.pop %v751
        %v753 = vmul.f32 %v724, 1.442695
        %v754 = vpow.pop %v753
        %v755 = vmul.f32 %v725, 1.442695
        %v756 = vpow.pop %v755
        %v757 = vmul.f32 %v726, 1.442695
        %v758 = vpow.pop %v757
        %v759 = vmul.f32 %v727, 1.442695
        %v760 = vpow.pop %v759
        %v761 = vmul.f32 %v728, 1.442695
        %v762 = vpow.pop %v761
        %v763 = vmul.f32 %v729, 1.442695
        %v764 = vpow.pop %v763
        %v765 = vmul.f32 %v730, 1.442695
        %v766 = vpow.pop %v765
        %v767 = vmul.f32 %v731, 1.442695
        %v768 = vpow.pop %v767
        %v769 = vmul.f32 %v732, 1.442695
        %v770 = vpow.pop %v769
        %v771 = vmul.f32 %v733, 1.442695
        %v772 = vpow.pop %v771
        %v773 = vmul.f32 %v734, 1.442695
        %v774 = vpow.pop %v773
        %v775 = vmul.f32 %v735, 1.442695
        %v776 = vpow.pop %v775
        %v777 = vmul.f32 %v736, 1.442695
        %v778 = vpow.pop %v777
        %v779 = vadd.f32 %v738, 1.0
        %v780 = vadd.f32 %v740, 1.0
        %v781 = vadd.f32 %v742, 1.0
        %v782 = vadd.f32 %v744, 1.0
        %v783 = vadd.f32 %v746, 1.0
        %v784 = vadd.f32 %v748, 1.0
        %v785 = vadd.f32 %v750, 1.0
        %v786 = vadd.f32 %v752, 1.0
        %v787 = vadd.f32 %v754, 1.0
        %v788 = vadd.f32 %v756, 1.0
        %v789 = vadd.f32 %v758, 1.0
        %v790 = vadd.f32 %v760, 1.0
        %v791 = vadd.f32 %v762, 1.0
        %v792 = vadd.f32 %v764, 1.0
        %v793 = vadd.f32 %v766, 1.0
        %v794 = vadd.f32 %v768, 1.0
        %v795 = vadd.f32 %v770, 1.0
        %v796 = vadd.f32 %v772, 1.0
        %v797 = vadd.f32 %v774, 1.0
        %v798 = vadd.f32 %v776, 1.0
        %v799 = vadd.f32 %v778, 1.0
        %v800 = vrcp.pop %v779
        %v801 = vmul.f32 %v779, %v800
        %v802 = vsub.f32 1.0, %v801
        %v803 = vmul.f32 %v800, %v802
        %v804 = vadd.f32 %v800, %v803
        %vm805 = vweird.f32 %v779
        %vm806 = vweird.f32 %v800
        %vm807 = vmor %vm805, %vm806
        %v808 = vsel %vm807, %v800, %v804
        %v809 = vand.u32 2147483647, %v779
        %vm810 = vcmp.eq.f32.partialorder %v809, 8.507059e+37
        %v811 = vand.u32 %v779, 2147483648
        %v812 = vor.u32 1.1754944e-38, %v811
        %v813 = vsel %vm810, %v812, %v808
        %v814 = vmul.f32 1.0, %v813
        %v815 = vrcp.pop %v780
        %v816 = vmul.f32 %v780, %v815
        %v817 = vsub.f32 1.0, %v816
        %v818 = vmul.f32 %v815, %v817
        %v819 = vadd.f32 %v815, %v818
        %vm820 = vweird.f32 %v780
        %vm821 = vweird.f32 %v815
        %vm822 = vmor %vm820, %vm821
        %v823 = vsel %vm822, %v815, %v819
        %v824 = vand.u32 2147483647, %v780
        %vm825 = vcmp.eq.f32.partialorder %v824, 8.507059e+37
        %v826 = vand.u32 %v780, 2147483648
        %v827 = vor.u32 1.1754944e-38, %v826
        %v828 = vsel %vm825, %v827, %v823
        %v829 = vmul.f32 1.0, %v828
        %v830 = vrcp.pop %v781
        %v831 = vmul.f32 %v781, %v830
        %v832 = vsub.f32 1.0, %v831
        %v833 = vmul.f32 %v830, %v832
        %v834 = vadd.f32 %v830, %v833
        %vm835 = vweird.f32 %v781
        %vm836 = vweird.f32 %v830
        %vm837 = vmor %vm835, %vm836
        %v838 = vsel %vm837, %v830, %v834
        %v839 = vand.u32 2147483647, %v781
        %vm840 = vcmp.eq.f32.partialorder %v839, 8.507059e+37
        %v841 = vand.u32 %v781, 2147483648
        %v842 = vor.u32 1.1754944e-38, %v841
        %v843 = vsel %vm840, %v842, %v838
        %v844 = vmul.f32 1.0, %v843
        %v845 = vrcp.pop %v782
        %v846 = vmul.f32 %v782, %v845
        %v847 = vsub.f32 1.0, %v846
        %v848 = vmul.f32 %v845, %v847
        %v849 = vadd.f32 %v845, %v848
        %vm850 = vweird.f32 %v782
        %vm851 = vweird.f32 %v845
        %vm852 = vmor %vm850, %vm851
        %v853 = vsel %vm852, %v845, %v849
        %v854 = vand.u32 2147483647, %v782
        %vm855 = vcmp.eq.f32.partialorder %v854, 8.507059e+37
        %v856 = vand.u32 %v782, 2147483648
        %v857 = vor.u32 1.1754944e-38, %v856
        %v858 = vsel %vm855, %v857, %v853
        %v859 = vmul.f32 1.0, %v858
        %v860 = vrcp.pop %v783
        %v861 = vmul.f32 %v783, %v860
        %v862 = vsub.f32 1.0, %v861
        %v863 = vmul.f32 %v860, %v862
        %v864 = vadd.f32 %v860, %v863
        %vm865 = vweird.f32 %v783
        %vm866 = vweird.f32 %v860
        %vm867 = vmor %vm865, %vm866
        %v868 = vsel %vm867, %v860, %v864
        %v869 = vand.u32 2147483647, %v783
        %vm870 = vcmp.eq.f32.partialorder %v869, 8.507059e+37
        %v871 = vand.u32 %v783, 2147483648
        %v872 = vor.u32 1.1754944e-38, %v871
        %v873 = vsel %vm870, %v872, %v868
        %v874 = vmul.f32 1.0, %v873
        %v875 = vrcp.pop %v784
        %v876 = vmul.f32 %v784, %v875
        %v877 = vsub.f32 1.0, %v876
        %v878 = vmul.f32 %v875, %v877
        %v879 = vadd.f32 %v875, %v878
        %vm880 = vweird.f32 %v784
        %vm881 = vweird.f32 %v875
        %vm882 = vmor %vm880, %vm881
        %v883 = vsel %vm882, %v875, %v879
        %v884 = vand.u32 2147483647, %v784
        %vm885 = vcmp.eq.f32.partialorder %v884, 8.507059e+37
        %v886 = vand.u32 %v784, 2147483648
        %v887 = vor.u32 1.1754944e-38, %v886
        %v888 = vsel %vm885, %v887, %v883
        %v889 = vmul.f32 1.0, %v888
        %v890 = vrcp.pop %v785
        %v891 = vmul.f32 %v785, %v890
        %v892 = vsub.f32 1.0, %v891
        %v893 = vmul.f32 %v890, %v892
        %v894 = vadd.f32 %v890, %v893
        %vm895 = vweird.f32 %v785
        %vm896 = vweird.f32 %v890
        %vm897 = vmor %vm895, %vm896
        %v898 = vsel %vm897, %v890, %v894
        %v899 = vand.u32 2147483647, %v785
        %vm900 = vcmp.eq.f32.partialorder %v899, 8.507059e+37
        %v901 = vand.u32 %v785, 2147483648
        %v902 = vor.u32 1.1754944e-38, %v901
        %v903 = vsel %vm900, %v902, %v898
        %v904 = vmul.f32 1.0, %v903
        %v905 = vrcp.pop %v786
        %v906 = vmul.f32 %v786, %v905
        %v907 = vsub.f32 1.0, %v906
        %v908 = vmul.f32 %v905, %v907
        %v909 = vadd.f32 %v905, %v908
        %vm910 = vweird.f32 %v786
        %vm911 = vweird.f32 %v905
        %vm912 = vmor %vm910, %vm911
        %v913 = vsel %vm912, %v905, %v909
        %v914 = vand.u32 2147483647, %v786
        %vm915 = vcmp.eq.f32.partialorder %v914, 8.507059e+37
        %v916 = vand.u32 %v786, 2147483648
        %v917 = vor.u32 1.1754944e-38, %v916
        %v918 = vsel %vm915, %v917, %v913
        %v919 = vmul.f32 1.0, %v918
        %v920 = vrcp.pop %v787
        %v921 = vmul.f32 %v787, %v920
        %v922 = vsub.f32 1.0, %v921
        %v923 = vmul.f32 %v920, %v922
        %v924 = vadd.f32 %v920, %v923
        %vm925 = vweird.f32 %v787
        %vm926 = vweird.f32 %v920
        %vm927 = vmor %vm925, %vm926
        %v928 = vsel %vm927, %v920, %v924
        %v929 = vand.u32 2147483647, %v787
        %vm930 = vcmp.eq.f32.partialorder %v929, 8.507059e+37
        %v931 = vand.u32 %v787, 2147483648
        %v932 = vor.u32 1.1754944e-38, %v931
        %v933 = vsel %vm930, %v932, %v928
        %v934 = vmul.f32 1.0, %v933
        %v935 = vrcp.pop %v788
        %v936 = vmul.f32 %v788, %v935
        %v937 = vsub.f32 1.0, %v936
        %v938 = vmul.f32 %v935, %v937
        %v939 = vadd.f32 %v935, %v938
        %vm940 = vweird.f32 %v788
        %vm941 = vweird.f32 %v935
        %vm942 = vmor %vm940, %vm941
        %v943 = vsel %vm942, %v935, %v939
        %v944 = vand.u32 2147483647, %v788
        %vm945 = vcmp.eq.f32.partialorder %v944, 8.507059e+37
        %v946 = vand.u32 %v788, 2147483648
        %v947 = vor.u32 1.1754944e-38, %v946
        %v948 = vsel %vm945, %v947, %v943
        %v949 = vmul.f32 1.0, %v948
        %v950 = vrcp.pop %v789
        %v951 = vmul.f32 %v789, %v950
        %v952 = vsub.f32 1.0, %v951
        %v953 = vmul.f32 %v950, %v952
        %v954 = vadd.f32 %v950, %v953
        %vm955 = vweird.f32 %v789
        %vm956 = vweird.f32 %v950
        %vm957 = vmor %vm955, %vm956
        %v958 = vsel %vm957, %v950, %v954
        %v959 = vand.u32 2147483647, %v789
        %vm960 = vcmp.eq.f32.partialorder %v959, 8.507059e+37
        %v961 = vand.u32 %v789, 2147483648
        %v962 = vor.u32 1.1754944e-38, %v961
        %v963 = vsel %vm960, %v962, %v958
        %v964 = vmul.f32 1.0, %v963
        %v965 = vrcp.pop %v790
        %v966 = vmul.f32 %v790, %v965
        %v967 = vsub.f32 1.0, %v966
        %v968 = vmul.f32 %v965, %v967
        %v969 = vadd.f32 %v965, %v968
        %vm970 = vweird.f32 %v790
        %vm971 = vweird.f32 %v965
        %vm972 = vmor %vm970, %vm971
        %v973 = vsel %vm972, %v965, %v969
        %v974 = vand.u32 2147483647, %v790
        %vm975 = vcmp.eq.f32.partialorder %v974, 8.507059e+37
        %v976 = vand.u32 %v790, 2147483648
        %v977 = vor.u32 1.1754944e-38, %v976
        %v978 = vsel %vm975, %v977, %v973
        %v979 = vmul.f32 1.0, %v978
        %v980 = vrcp.pop %v791
        %v981 = vmul.f32 %v791, %v980
        %v982 = vsub.f32 1.0, %v981
        %v983 = vmul.f32 %v980, %v982
        %v984 = vadd.f32 %v980, %v983
        %vm985 = vweird.f32 %v791
        %vm986 = vweird.f32 %v980
        %vm987 = vmor %vm985, %vm986
        %v988 = vsel %vm987, %v980, %v984
        %v989 = vand.u32 2147483647, %v791
        %vm990 = vcmp.eq.f32.partialorder %v989, 8.507059e+37
        %v991 = vand.u32 %v791, 2147483648
        %v992 = vor.u32 1.1754944e-38, %v991
        %v993 = vsel %vm990, %v992, %v988
        %v994 = vmul.f32 1.0, %v993
        %v995 = vrcp.pop %v792
        %v996 = vmul.f32 %v792, %v995
        %v997 = vsub.f32 1.0, %v996
        %v998 = vmul.f32 %v995, %v997
        %v999 = vadd.f32 %v995, %v998
        %vm1000 = vweird.f32 %v792
        %vm1001 = vweird.f32 %v995
        %vm1002 = vmor %vm1000, %vm1001
        %v1003 = vsel %vm1002, %v995, %v999
        %v1004 = vand.u32 2147483647, %v792
        %vm1005 = vcmp.eq.f32.partialorder %v1004, 8.507059e+37
        %v1006 = vand.u32 %v792, 2147483648
        %v1007 = vor.u32 1.1754944e-38, %v1006
        %v1008 = vsel %vm1005, %v1007, %v1003
        %v1009 = vmul.f32 1.0, %v1008
        %v1010 = vrcp.pop %v793
        %v1011 = vmul.f32 %v793, %v1010
        %v1012 = vsub.f32 1.0, %v1011
        %v1013 = vmul.f32 %v1010, %v1012
        %v1014 = vadd.f32 %v1010, %v1013
        %vm1015 = vweird.f32 %v793
        %vm1016 = vweird.f32 %v1010
        %vm1017 = vmor %vm1015, %vm1016
        %v1018 = vsel %vm1017, %v1010, %v1014
        %v1019 = vand.u32 2147483647, %v793
        %vm1020 = vcmp.eq.f32.partialorder %v1019, 8.507059e+37
        %v1021 = vand.u32 %v793, 2147483648
        %v1022 = vor.u32 1.1754944e-38, %v1021
        %v1023 = vsel %vm1020, %v1022, %v1018
        %v1024 = vmul.f32 1.0, %v1023
        %v1025 = vrcp.pop %v794
        %v1026 = vmul.f32 %v794, %v1025
        %v1027 = vsub.f32 1.0, %v1026
        %v1028 = vmul.f32 %v1025, %v1027
        %v1029 = vadd.f32 %v1025, %v1028
        %vm1030 = vweird.f32 %v794
        %vm1031 = vweird.f32 %v1025
        %vm1032 = vmor %vm1030, %vm1031
        %v1033 = vsel %vm1032, %v1025, %v1029
        %v1034 = vand.u32 2147483647, %v794
        %vm1035 = vcmp.eq.f32.partialorder %v1034, 8.507059e+37
        %v1036 = vand.u32 %v794, 2147483648
        %v1037 = vor.u32 1.1754944e-38, %v1036
        %v1038 = vsel %vm1035, %v1037, %v1033
        %v1039 = vmul.f32 1.0, %v1038
        %v1040 = vrcp.pop %v795
        %v1041 = vmul.f32 %v795, %v1040
        %v1042 = vsub.f32 1.0, %v1041
        %v1043 = vmul.f32 %v1040, %v1042
        %v1044 = vadd.f32 %v1040, %v1043
        %vm1045 = vweird.f32 %v795
        %vm1046 = vweird.f32 %v1040
        %vm1047 = vmor %vm1045, %vm1046
        %v1048 = vsel %vm1047, %v1040, %v1044
        %v1049 = vand.u32 2147483647, %v795
        %vm1050 = vcmp.eq.f32.partialorder %v1049, 8.507059e+37
        %v1051 = vand.u32 %v795, 2147483648
        %v1052 = vor.u32 1.1754944e-38, %v1051
        %v1053 = vsel %vm1050, %v1052, %v1048
        %v1054 = vmul.f32 1.0, %v1053
        %v1055 = vrcp.pop %v796
        %v1056 = vmul.f32 %v796, %v1055
        %v1057 = vsub.f32 1.0, %v1056
        %v1058 = vmul.f32 %v1055, %v1057
        %v1059 = vadd.f32 %v1055, %v1058
        %vm1060 = vweird.f32 %v796
        %vm1061 = vweird.f32 %v1055
        %vm1062 = vmor %vm1060, %vm1061
        %v1063 = vsel %vm1062, %v1055, %v1059
        %v1064 = vand.u32 2147483647, %v796
        %vm1065 = vcmp.eq.f32.partialorder %v1064, 8.507059e+37
        %v1066 = vand.u32 %v796, 2147483648
        %v1067 = vor.u32 1.1754944e-38, %v1066
        %v1068 = vsel %vm1065, %v1067, %v1063
        %v1069 = vmul.f32 1.0, %v1068
        %v1070 = vrcp.pop %v797
        %v1071 = vmul.f32 %v797, %v1070
        %v1072 = vsub.f32 1.0, %v1071
        %v1073 = vmul.f32 %v1070, %v1072
        %v1074 = vadd.f32 %v1070, %v1073
        %vm1075 = vweird.f32 %v797
        %vm1076 = vweird.f32 %v1070
        %vm1077 = vmor %vm1075, %vm1076
        %v1078 = vsel %vm1077, %v1070, %v1074
        %v1079 = vand.u32 2147483647, %v797
        %vm1080 = vcmp.eq.f32.partialorder %v1079, 8.507059e+37
        %v1081 = vand.u32 %v797, 2147483648
        %v1082 = vor.u32 1.1754944e-38, %v1081
        %v1083 = vsel %vm1080, %v1082, %v1078
        %v1084 = vmul.f32 1.0, %v1083
        %v1085 = vrcp.pop %v798
        %v1086 = vmul.f32 %v798, %v1085
        %v1087 = vsub.f32 1.0, %v1086
        %v1088 = vmul.f32 %v1085, %v1087
        %v1089 = vadd.f32 %v1085, %v1088
        %vm1090 = vweird.f32 %v798
        %vm1091 = vweird.f32 %v1085
        %vm1092 = vmor %vm1090, %vm1091
        %v1093 = vsel %vm1092, %v1085, %v1089
        %v1094 = vand.u32 2147483647, %v798
        %vm1095 = vcmp.eq.f32.partialorder %v1094, 8.507059e+37
        %v1096 = vand.u32 %v798, 2147483648
        %v1097 = vor.u32 1.1754944e-38, %v1096
        %v1098 = vsel %vm1095, %v1097, %v1093
        %v1099 = vmul.f32 1.0, %v1098
        %v1100 = vrcp.pop %v799
        %v1101 = vmul.f32 %v799, %v1100
        %v1102 = vsub.f32 1.0, %v1101
        %v1103 = vmul.f32 %v1100, %v1102
        %v1104 = vadd.f32 %v1100, %v1103
        %vm1105 = vweird.f32 %v799
        %vm1106 = vweird.f32 %v1100
        %vm1107 = vmor %vm1105, %vm1106
        %v1108 = vsel %vm1107, %v1100, %v1104
        %v1109 = vand.u32 2147483647, %v799
        %vm1110 = vcmp.eq.f32.partialorder %v1109, 8.507059e+37
        %v1111 = vand.u32 %v799, 2147483648
        %v1112 = vor.u32 1.1754944e-38, %v1111
        %v1113 = vsel %vm1110, %v1112, %v1108
        %v1114 = vmul.f32 1.0, %v1113
        %v1115 = vld [vmem:[%s5] sm:$0xff]
        %v1116 = vld [vmem:[%s5 + $0x8] sm:$0xff]
        %v1117 = vld [vmem:[%s5 + $0x10] sm:$0xff]
        %v1118 = vld [vmem:[%s459] sm:$0xff]
        %1120 = vset.pattern.permute.xlu0 0
        %1121 = vperm.xlu0 %1120, %v1115
        %v1122 = vpop.permute.xlu0 %1121
        %1125 = vset.pattern.permute.xlu0 0
        %1126 = vperm.xlu0 %1125, %v1116
        %v1127 = vpop.permute.xlu0 %1126
        %1130 = vset.pattern.permute.xlu0 0
        %1131 = vperm.xlu0 %1130, %v1117
        %v1132 = vpop.permute.xlu0 %1131
        %v1135 = vperm.slane %v1118, 0
        %v1136 = vperm.slane %v1118, 1
        %v1137 = vperm.slane %v1118, 2
        %v1138 = vperm.slane %v1118, 3
        %v1139 = vperm.slane %v1118, 4
        %v1140 = vperm.slane %v1118, 5
        %v1141 = vperm.slane %v1118, 6
        %v1149 = vmul.f32 %v1122, %v1135
        %v1150 = vmul.f32 %v1122, %v1136
        %v1151 = vmul.f32 %v1122, %v1137
        %v1152 = vmul.f32 %v1122, %v1138
        %v1153 = vmul.f32 %v1122, %v1139
        %v1154 = vmul.f32 %v1122, %v1140
        %v1155 = vmul.f32 %v1122, %v1141
        %v1156 = vmul.f32 %v1127, %v1135
        %v1157 = vmul.f32 %v1127, %v1136
        %v1158 = vmul.f32 %v1127, %v1137
        %v1159 = vmul.f32 %v1127, %v1138
        %v1160 = vmul.f32 %v1127, %v1139
        %v1161 = vmul.f32 %v1127, %v1140
        %v1162 = vmul.f32 %v1127, %v1141
        %v1163 = vmul.f32 %v1132, %v1135
        %v1164 = vmul.f32 %v1132, %v1136
        %v1165 = vmul.f32 %v1132, %v1137
        %v1166 = vmul.f32 %v1132, %v1138
        %v1167 = vmul.f32 %v1132, %v1139
        %v1168 = vmul.f32 %v1132, %v1140
        %v1169 = vmul.f32 %v1132, %v1141
        %v1170 = vld [vmem:[%s6] sm:$0xff]
        %v1171 = vld [vmem:[%s6 + $0x8] sm:$0xff]
        %v1172 = vld [vmem:[%s6 + $0x10] sm:$0xff]
        %v1173 = vld [vmem:[%s464] sm:$0xff]
        %1175 = vset.pattern.permute.xlu0 0
        %1176 = vperm.xlu0 %1175, %v1170
        %v1177 = vpop.permute.xlu0 %1176
        %1180 = vset.pattern.permute.xlu0 0
        %1181 = vperm.xlu0 %1180, %v1171
        %v1182 = vpop.permute.xlu0 %1181
        %1185 = vset.pattern.permute.xlu0 0
        %1186 = vperm.xlu0 %1185, %v1172
        %v1187 = vpop.permute.xlu0 %1186
        %v1190 = vperm.slane %v1173, 0
        %v1191 = vperm.slane %v1173, 1
        %v1192 = vperm.slane %v1173, 2
        %v1193 = vperm.slane %v1173, 3
        %v1194 = vperm.slane %v1173, 4
        %v1195 = vperm.slane %v1173, 5
        %v1196 = vperm.slane %v1173, 6
        %v1204 = vmul.f32 %v1177, %v1190
        %v1205 = vmul.f32 %v1177, %v1191
        %v1206 = vmul.f32 %v1177, %v1192
        %v1207 = vmul.f32 %v1177, %v1193
        %v1208 = vmul.f32 %v1177, %v1194
        %v1209 = vmul.f32 %v1177, %v1195
        %v1210 = vmul.f32 %v1177, %v1196
        %v1211 = vmul.f32 %v1182, %v1190
        %v1212 = vmul.f32 %v1182, %v1191
        %v1213 = vmul.f32 %v1182, %v1192
        %v1214 = vmul.f32 %v1182, %v1193
        %v1215 = vmul.f32 %v1182, %v1194
        %v1216 = vmul.f32 %v1182, %v1195
        %v1217 = vmul.f32 %v1182, %v1196
        %v1218 = vmul.f32 %v1187, %v1190
        %v1219 = vmul.f32 %v1187, %v1191
        %v1220 = vmul.f32 %v1187, %v1192
        %v1221 = vmul.f32 %v1187, %v1193
        %v1222 = vmul.f32 %v1187, %v1194
        %v1223 = vmul.f32 %v1187, %v1195
        %v1224 = vmul.f32 %v1187, %v1196
        %v1225 = vadd.f32 %v1149, %v1204
        %v1226 = vadd.f32 %v1150, %v1205
        %v1227 = vadd.f32 %v1151, %v1206
        %v1228 = vadd.f32 %v1152, %v1207
        %v1229 = vadd.f32 %v1153, %v1208
        %v1230 = vadd.f32 %v1154, %v1209
        %v1231 = vadd.f32 %v1155, %v1210
        %v1232 = vadd.f32 %v1156, %v1211
        %v1233 = vadd.f32 %v1157, %v1212
        %v1234 = vadd.f32 %v1158, %v1213
        %v1235 = vadd.f32 %v1159, %v1214
        %v1236 = vadd.f32 %v1160, %v1215
        %v1237 = vadd.f32 %v1161, %v1216
        %v1238 = vadd.f32 %v1162, %v1217
        %v1239 = vadd.f32 %v1163, %v1218
        %v1240 = vadd.f32 %v1164, %v1219
        %v1241 = vadd.f32 %v1165, %v1220
        %v1242 = vadd.f32 %v1166, %v1221
        %v1243 = vadd.f32 %v1167, %v1222
        %v1244 = vadd.f32 %v1168, %v1223
        %v1245 = vadd.f32 %v1169, %v1224
        %v1246 = vld [vmem:[%s3] sm:$0xff]
        %v1247 = vld [vmem:[%s3 + $0x8] sm:$0xff]
        %v1248 = vld [vmem:[%s3 + $0x10] sm:$0xff]
        %v1249 = vld [vmem:[%s4] sm:$0xff]
        %v1250 = vld [vmem:[%s4 + $0x8] sm:$0xff]
        %v1251 = vld [vmem:[%s4 + $0x10] sm:$0xff]
        %1253 = vset.pattern.permute.xlu0 0
        %1254 = vperm.xlu0 %1253, %v1249
        %v1255 = vpop.permute.xlu0 %1254
        %1258 = vset.pattern.permute.xlu0 0
        %1259 = vperm.xlu0 %1258, %v1250
        %v1260 = vpop.permute.xlu0 %1259
        %1263 = vset.pattern.permute.xlu0 0
        %1264 = vperm.xlu0 %1263, %v1251
        %v1265 = vpop.permute.xlu0 %1264
        %v1267 = vmul.f32 %v814, %v1255
        %v1268 = vmul.f32 %v829, %v1255
        %v1269 = vmul.f32 %v844, %v1255
        %v1270 = vmul.f32 %v859, %v1255
        %v1271 = vmul.f32 %v874, %v1255
        %v1272 = vmul.f32 %v889, %v1255
        %v1273 = vmul.f32 %v904, %v1255
        %v1274 = vmul.f32 %v919, %v1260
        %v1275 = vmul.f32 %v934, %v1260
        %v1276 = vmul.f32 %v949, %v1260
        %v1277 = vmul.f32 %v964, %v1260
        %v1278 = vmul.f32 %v979, %v1260
        %v1279 = vmul.f32 %v994, %v1260
        %v1280 = vmul.f32 %v1009, %v1260
        %v1281 = vmul.f32 %v1024, %v1265
        %v1282 = vmul.f32 %v1039, %v1265
        %v1283 = vmul.f32 %v1054, %v1265
        %v1284 = vmul.f32 %v1069, %v1265
        %v1285 = vmul.f32 %v1084, %v1265
        %v1286 = vmul.f32 %v1099, %v1265
        %v1287 = vmul.f32 %v1114, %v1265
        %1289 = vset.pattern.permute.xlu0 0
        %1290 = vperm.xlu0 %1289, %v1246
        %v1291 = vpop.permute.xlu0 %1290
        %1294 = vset.pattern.permute.xlu0 0
        %1295 = vperm.xlu0 %1294, %v1247
        %v1296 = vpop.permute.xlu0 %1295
        %1299 = vset.pattern.permute.xlu0 0
        %1300 = vperm.xlu0 %1299, %v1248
        %v1301 = vpop.permute.xlu0 %1300
        %v1303 = vadd.f32 %v1291, %v1267
        %v1304 = vadd.f32 %v1291, %v1268
        %v1305 = vadd.f32 %v1291, %v1269
        %v1306 = vadd.f32 %v1291, %v1270
        %v1307 = vadd.f32 %v1291, %v1271
        %v1308 = vadd.f32 %v1291, %v1272
        %v1309 = vadd.f32 %v1291, %v1273
        %v1310 = vadd.f32 %v1296, %v1274
        %v1311 = vadd.f32 %v1296, %v1275
        %v1312 = vadd.f32 %v1296, %v1276
        %v1313 = vadd.f32 %v1296, %v1277
        %v1314 = vadd.f32 %v1296, %v1278
        %v1315 = vadd.f32 %v1296, %v1279
        %v1316 = vadd.f32 %v1296, %v1280
        %v1317 = vadd.f32 %v1301, %v1281
        %v1318 = vadd.f32 %v1301, %v1282
        %v1319 = vadd.f32 %v1301, %v1283
        %v1320 = vadd.f32 %v1301, %v1284
        %v1321 = vadd.f32 %v1301, %v1285
        %v1322 = vadd.f32 %v1301, %v1286
        %v1323 = vadd.f32 %v1301, %v1287
        %v1324 = vmul.f32 %v814, %v1303
        %v1325 = vmul.f32 %v829, %v1304
        %v1326 = vmul.f32 %v844, %v1305
        %v1327 = vmul.f32 %v859, %v1306
        %v1328 = vmul.f32 %v874, %v1307
        %v1329 = vmul.f32 %v889, %v1308
        %v1330 = vmul.f32 %v904, %v1309
        %v1331 = vmul.f32 %v919, %v1310
        %v1332 = vmul.f32 %v934, %v1311
        %v1333 = vmul.f32 %v949, %v1312
        %v1334 = vmul.f32 %v964, %v1313
        %v1335 = vmul.f32 %v979, %v1314
        %v1336 = vmul.f32 %v994, %v1315
        %v1337 = vmul.f32 %v1009, %v1316
        %v1338 = vmul.f32 %v1024, %v1317
        %v1339 = vmul.f32 %v1039, %v1318
        %v1340 = vmul.f32 %v1054, %v1319
        %v1341 = vmul.f32 %v1069, %v1320
        %v1342 = vmul.f32 %v1084, %v1321
        %v1343 = vmul.f32 %v1099, %v1322
        %v1344 = vmul.f32 %v1114, %v1323
        %v1345 = vadd.f32 %v1324, %v1225
        %v1346 = vadd.f32 %v1325, %v1226
        %v1347 = vadd.f32 %v1326, %v1227
        %v1348 = vadd.f32 %v1327, %v1228
        %v1349 = vadd.f32 %v1328, %v1229
        %v1350 = vadd.f32 %v1329, %v1230
        %v1351 = vadd.f32 %v1330, %v1231
        %v1352 = vadd.f32 %v1331, %v1232
        %v1353 = vadd.f32 %v1332, %v1233
        %v1354 = vadd.f32 %v1333, %v1234
        %v1355 = vadd.f32 %v1334, %v1235
        %v1356 = vadd.f32 %v1335, %v1236
        %v1357 = vadd.f32 %v1336, %v1237
        %v1358 = vadd.f32 %v1337, %v1238
        %v1359 = vadd.f32 %v1338, %v1239
        %v1360 = vadd.f32 %v1339, %v1240
        %v1361 = vadd.f32 %v1340, %v1241
        %v1362 = vadd.f32 %v1341, %v1242
        %v1363 = vadd.f32 %v1342, %v1243
        %v1364 = vadd.f32 %v1343, %v1244
        %v1365 = vadd.f32 %v1344, %v1245
        %1366 = vst [vmem:[%s454] sm:$0xff] %v1345
        %1367 = vst [vmem:[%s454 + $0x8] sm:$0xff] %v1346
        %1368 = vst [vmem:[%s454 + $0x10] sm:$0xff] %v1347
        %1369 = vst [vmem:[%s454 + $0x18] sm:$0xff] %v1348
        %1370 = vst [vmem:[%s454 + $0x20] sm:$0xff] %v1349
        %1371 = vst [vmem:[%s454 + $0x28] sm:$0xff] %v1350
        %1372 = vst [vmem:[%s454 + $0x30] sm:$0xff] %v1351
        %1373 = vst [vmem:[%s454 + $0x38] sm:$0xff] %v1352
        %1374 = vst [vmem:[%s454 + $0x40] sm:$0xff] %v1353
        %1375 = vst [vmem:[%s454 + $0x48] sm:$0xff] %v1354
        %1376 = vst [vmem:[%s454 + $0x50] sm:$0xff] %v1355
        %1377 = vst [vmem:[%s454 + $0x58] sm:$0xff] %v1356
        %1378 = vst [vmem:[%s454 + $0x60] sm:$0xff] %v1357
        %1379 = vst [vmem:[%s454 + $0x68] sm:$0xff] %v1358
        %1380 = vst [vmem:[%s454 + $0x70] sm:$0xff] %v1359
        %1381 = vst [vmem:[%s454 + $0x78] sm:$0xff] %v1360
        %1382 = vst [vmem:[%s454 + $0x80] sm:$0xff] %v1361
        %1383 = vst [vmem:[%s454 + $0x88] sm:$0xff] %v1362
        %1384 = vst [vmem:[%s454 + $0x90] sm:$0xff] %v1363
        %1385 = vst [vmem:[%s454 + $0x98] sm:$0xff] %v1364
        %1386 = vst [vmem:[%s454 + $0xa0] sm:$0xff] %v1365
        %s1387 = sand.u32 %s250, 1
        %s1388 = sand.u32 %s250, 1
        %s1389 = smul.addr %s1388, 168
        %s1390 = scalar_lea.vmem [#allocation3], %s1389
        %s1391 = sand.u32 %s278, 1
        %s1392 = sand.u32 %s278, 1
        %s1393 = smul.addr %s1392, 168
        %s1394 = scalar_lea.vmem [#allocation4], %s1393
        // Predicated region
        $region80: #{detect_forward.3} parent=74 // pred_check
          %p1395 = pneg %p260
        $region81: #{detect_forward.3} parent=74 // pred_check_branch
          %1397 = sbr.rel (%p1395) target = $region83
        $region82: #{detect_forward.3} parent=74 // pred_region
          %s1398 = smul.u32 7, %s27
          %s1399 = smul.addr %s26, 42
          %s1400 = sadd.s32 %s1398, %s1399
          %s1401 = smul.addr %s1400, 8
          %s1402 = scalar_lea.vmem %s9, %s1401
          // Predicated region
          $region84: #{detect_forward.3} parent=82 // pred_check
            _
          $region85: #{detect_forward.3} parent=82 // pred_check_branch
            %1404 = sbr.rel (0) target = $region87
          $region86: #{detect_forward.3} parent=82 // pred_region
            // Predicated region
            $region88: #{detect_forward.3} parent=86 // pred_check
              _
            $region89: #{detect_forward.3} parent=86 // pred_check_branch
              %1406 = sbr.rel (0) target = $region91
            $region90: #{detect_forward.3} parent=86 // pred_region
              loop: start=0, step=1, limit=1
              $region92: #{detect_forward.3} parent=90 // loop_pre_header
                _
              $region93: #{detect_forward.3} parent=90 // loop_header
                %s1408 = sphi 0, %s1412
                %p1409 = scmp.ge.s32.totalorder %s1408, 1
                %s1413 = sphi %s1390, %s1390
                %s1414 = sphi %s1402, %s1402
              $region94: #{detect_forward.3} parent=90 // loop_header_branch
                %1411 = sbr.rel (%p1409) target = $region98
              $region95: #{detect_forward.3} parent=90 // loop_body
                %v1415 = vld [vmem:[%s1413] sm:$0xff]
                %1416 = vst [vmem:[%s1414] sm:$0xff] %v1415
                %v1417 = vld [vmem:[%s1413 + $0x8] sm:$0xff]
                %1418 = vst [vmem:[%s1414 + $0x8] sm:$0xff] %v1417
                %v1419 = vld [vmem:[%s1413 + $0x10] sm:$0xff]
                %1420 = vst [vmem:[%s1414 + $0x10] sm:$0xff] %v1419
                %v1421 = vld [vmem:[%s1413 + $0x18] sm:$0xff]
                %1422 = vst [vmem:[%s1414 + $0x18] sm:$0xff] %v1421
                %v1423 = vld [vmem:[%s1413 + $0x20] sm:$0xff]
                %1424 = vst [vmem:[%s1414 + $0x20] sm:$0xff] %v1423
                %v1425 = vld [vmem:[%s1413 + $0x28] sm:$0xff]
                %1426 = vst [vmem:[%s1414 + $0x28] sm:$0xff] %v1425
                %v1427 = vld [vmem:[%s1413 + $0x30] sm:$0xff]
                %1428 = vst [vmem:[%s1414 + $0x30] sm:$0xff] %v1427
                %v1429 = vld [vmem:[%s1413 + $0x38] sm:$0xff]
                %1430 = vst [vmem:[%s1414 + $0x70] sm:$0xff] %v1429
                %v1431 = vld [vmem:[%s1413 + $0x40] sm:$0xff]
                %1432 = vst [vmem:[%s1414 + $0x78] sm:$0xff] %v1431
                %v1433 = vld [vmem:[%s1413 + $0x48] sm:$0xff]
                %1434 = vst [vmem:[%s1414 + $0x80] sm:$0xff] %v1433
                %v1435 = vld [vmem:[%s1413 + $0x50] sm:$0xff]
                %1436 = vst [vmem:[%s1414 + $0x88] sm:$0xff] %v1435
                %v1437 = vld [vmem:[%s1413 + $0x58] sm:$0xff]
                %1438 = vst [vmem:[%s1414 + $0x90] sm:$0xff] %v1437
                %v1439 = vld [vmem:[%s1413 + $0x60] sm:$0xff]
                %1440 = vst [vmem:[%s1414 + $0x98] sm:$0xff] %v1439
                %v1441 = vld [vmem:[%s1413 + $0x68] sm:$0xff]
                %1442 = vst [vmem:[%s1414 + $0xa0] sm:$0xff] %v1441
                %v1443 = vld [vmem:[%s1413 + $0x70] sm:$0xff]
                %1444 = vst [vmem:[%s1414 + $0xe0] sm:$0xff] %v1443
                %v1445 = vld [vmem:[%s1413 + $0x78] sm:$0xff]
                %1446 = vst [vmem:[%s1414 + $0xe8] sm:$0xff] %v1445
                %v1447 = vld [vmem:[%s1413 + $0x80] sm:$0xff]
                %1448 = vst [vmem:[%s1414 + $0xf0] sm:$0xff] %v1447
                %v1449 = vld [vmem:[%s1413 + $0x88] sm:$0xff]
                %1450 = vst [vmem:[%s1414 + $0xf8] sm:$0xff] %v1449
                %v1451 = vld [vmem:[%s1413 + $0x90] sm:$0xff]
                %1452 = vst [vmem:[%s1414 + $0x100] sm:$0xff] %v1451
                %v1453 = vld [vmem:[%s1413 + $0x98] sm:$0xff]
                %1454 = vst [vmem:[%s1414 + $0x108] sm:$0xff] %v1453
                %v1455 = vld [vmem:[%s1413 + $0xa0] sm:$0xff]
                %1456 = vst [vmem:[%s1414 + $0x110] sm:$0xff] %v1455
              $region96: #{detect_forward.3} parent=90 // loop_footer
                %s1412 = sadd.s32 1, %s1408
              $region97: #{detect_forward.3} parent=90 // loop_footer_branch
                %1407 = sbr.rel target = $region93
              $region98: #{detect_forward.3} parent=90 // loop_exit
                _
            $region91: #{detect_forward.3} parent=86 // pred_fallthru
              _
            // Predicated region
            $region99: #{detect_forward.3} parent=86 // pred_check
              _
            $region100: #{detect_forward.3} parent=86 // pred_check_branch
              %1458 = sbr.rel target = $region102
            $region101: #{detect_forward.3} parent=86 // pred_region
              _
            $region102: #{detect_forward.3} parent=86 // pred_fallthru
              _
          $region87: #{detect_forward.3} parent=82 // pred_fallthru
            _
          %1459 = vnop
        $region83: #{detect_forward.3} parent=74 // pred_fallthru
          _
        // Predicated region
        $region103: #{detect_forward.3} parent=74 // pred_check
          %p1460 = pneg %p288
        $region104: #{detect_forward.3} parent=74 // pred_check_branch
          %1462 = sbr.rel (%p1460) target = $region106
        $region105: #{detect_forward.3} parent=74 // pred_region
          %s1463 = smul.u32 7, %s27
          %s1464 = smul.addr %s26, 42
          %s1465 = sadd.s32 %s1463, %s1464
          %s1466 = smul.addr %s1465, 8
          %s1467 = scalar_lea.vmem %s10, %s1466
          // Predicated region
          $region107: #{detect_forward.3} parent=105 // pred_check
            _
          $region108: #{detect_forward.3} parent=105 // pred_check_branch
            %1469 = sbr.rel (0) target = $region110
          $region109: #{detect_forward.3} parent=105 // pred_region
            // Predicated region
            $region111: #{detect_forward.3} parent=109 // pred_check
              _
            $region112: #{detect_forward.3} parent=109 // pred_check_branch
              %1471 = sbr.rel (0) target = $region114
            $region113: #{detect_forward.3} parent=109 // pred_region
              loop: start=0, step=1, limit=1
              $region115: #{detect_forward.3} parent=113 // loop_pre_header
                _
              $region116: #{detect_forward.3} parent=113 // loop_header
                %s1473 = sphi 0, %s1477
                %p1474 = scmp.ge.s32.totalorder %s1473, 1
                %s1478 = sphi %s1394, %s1394
                %s1479 = sphi %s1467, %s1467
              $region117: #{detect_forward.3} parent=113 // loop_header_branch
                %1476 = sbr.rel (%p1474) target = $region121
              $region118: #{detect_forward.3} parent=113 // loop_body
                %v1480 = vld [vmem:[%s1478] sm:$0xff]
                %1481 = vst [vmem:[%s1479] sm:$0xff] %v1480
                %v1482 = vld [vmem:[%s1478 + $0x8] sm:$0xff]
                %1483 = vst [vmem:[%s1479 + $0x8] sm:$0xff] %v1482
                %v1484 = vld [vmem:[%s1478 + $0x10] sm:$0xff]
                %1485 = vst [vmem:[%s1479 + $0x10] sm:$0xff] %v1484
                %v1486 = vld [vmem:[%s1478 + $0x18] sm:$0xff]
                %1487 = vst [vmem:[%s1479 + $0x18] sm:$0xff] %v1486
                %v1488 = vld [vmem:[%s1478 + $0x20] sm:$0xff]
                %1489 = vst [vmem:[%s1479 + $0x20] sm:$0xff] %v1488
                %v1490 = vld [vmem:[%s1478 + $0x28] sm:$0xff]
                %1491 = vst [vmem:[%s1479 + $0x28] sm:$0xff] %v1490
                %v1492 = vld [vmem:[%s1478 + $0x30] sm:$0xff]
                %1493 = vst [vmem:[%s1479 + $0x30] sm:$0xff] %v1492
                %v1494 = vld [vmem:[%s1478 + $0x38] sm:$0xff]
                %1495 = vst [vmem:[%s1479 + $0x70] sm:$0xff] %v1494
                %v1496 = vld [vmem:[%s1478 + $0x40] sm:$0xff]
                %1497 = vst [vmem:[%s1479 + $0x78] sm:$0xff] %v1496
                %v1498 = vld [vmem:[%s1478 + $0x48] sm:$0xff]
                %1499 = vst [vmem:[%s1479 + $0x80] sm:$0xff] %v1498
                %v1500 = vld [vmem:[%s1478 + $0x50] sm:$0xff]
                %1501 = vst [vmem:[%s1479 + $0x88] sm:$0xff] %v1500
                %v1502 = vld [vmem:[%s1478 + $0x58] sm:$0xff]
                %1503 = vst [vmem:[%s1479 + $0x90] sm:$0xff] %v1502
                %v1504 = vld [vmem:[%s1478 + $0x60] sm:$0xff]
                %1505 = vst [vmem:[%s1479 + $0x98] sm:$0xff] %v1504
                %v1506 = vld [vmem:[%s1478 + $0x68] sm:$0xff]
                %1507 = vst [vmem:[%s1479 + $0xa0] sm:$0xff] %v1506
                %v1508 = vld [vmem:[%s1478 + $0x70] sm:$0xff]
                %1509 = vst [vmem:[%s1479 + $0xe0] sm:$0xff] %v1508
                %v1510 = vld [vmem:[%s1478 + $0x78] sm:$0xff]
                %1511 = vst [vmem:[%s1479 + $0xe8] sm:$0xff] %v1510
                %v1512 = vld [vmem:[%s1478 + $0x80] sm:$0xff]
                %1513 = vst [vmem:[%s1479 + $0xf0] sm:$0xff] %v1512
                %v1514 = vld [vmem:[%s1478 + $0x88] sm:$0xff]
                %1515 = vst [vmem:[%s1479 + $0xf8] sm:$0xff] %v1514
                %v1516 = vld [vmem:[%s1478 + $0x90] sm:$0xff]
                %1517 = vst [vmem:[%s1479 + $0x100] sm:$0xff] %v1516
                %v1518 = vld [vmem:[%s1478 + $0x98] sm:$0xff]
                %1519 = vst [vmem:[%s1479 + $0x108] sm:$0xff] %v1518
                %v1520 = vld [vmem:[%s1478 + $0xa0] sm:$0xff]
                %1521 = vst [vmem:[%s1479 + $0x110] sm:$0xff] %v1520
              $region119: #{detect_forward.3} parent=113 // loop_footer
                %s1477 = sadd.s32 1, %s1473
              $region120: #{detect_forward.3} parent=113 // loop_footer_branch
                %1472 = sbr.rel target = $region116
              $region121: #{detect_forward.3} parent=113 // loop_exit
                _
            $region114: #{detect_forward.3} parent=109 // pred_fallthru
              _
            // Predicated region
            $region122: #{detect_forward.3} parent=109 // pred_check
              _
            $region123: #{detect_forward.3} parent=109 // pred_check_branch
              %1523 = sbr.rel target = $region125
            $region124: #{detect_forward.3} parent=109 // pred_region
              _
            $region125: #{detect_forward.3} parent=109 // pred_fallthru
              _
          $region110: #{detect_forward.3} parent=105 // pred_fallthru
            _
          %1524 = vnop
        $region106: #{detect_forward.3} parent=74 // pred_fallthru
          _
      $region75: #{detect_forward.3} parent=5 // pred_fallthru
        _
      %p1525 = scmp.le.s32.totalorder 2, %s17
      // Predicated region
      $region126: #{detect_forward.3} parent=5 // pred_check
        %p1526 = pneg %p1525
      $region127: #{detect_forward.3} parent=5 // pred_check_branch
        %1528 = sbr.rel (%p1526) target = $region129
      $region128: #{detect_forward.3} parent=5 // pred_region
        %s1529 = ssub.s32 %s17, 2
        // Predicated region
        $region130: #{detect_forward.3} parent=128 // pred_check
          %p1530 = pneg %p266
        $region131: #{detect_forward.3} parent=128 // pred_check_branch
          %1532 = sbr.rel (%p1530) target = $region133
        $region132: #{detect_forward.3} parent=128 // pred_region
          %s1533 = sand.u32 %s251, 1
          %s1534 = sand.u32 %s251, 1
          %s1535 = smul.addr %s1534, 168
          %s1536 = scalar_lea.vmem [#allocation3], %s1535
        $region133: #{detect_forward.3} parent=128 // pred_fallthru
          _
        // Predicated region
        $region134: #{detect_forward.3} parent=128 // pred_check
          %p1537 = pneg %p294
        $region135: #{detect_forward.3} parent=128 // pred_check_branch
          %1539 = sbr.rel (%p1537) target = $region137
        $region136: #{detect_forward.3} parent=128 // pred_region
          %s1540 = sand.u32 %s279, 1
          %s1541 = sand.u32 %s279, 1
          %s1542 = smul.addr %s1541, 168
          %s1543 = scalar_lea.vmem [#allocation4], %s1542
        $region137: #{detect_forward.3} parent=128 // pred_fallthru
          _
      $region129: #{detect_forward.3} parent=5 // pred_fallthru
        _
    $region6: #{detect_forward.3} parent=1 // loop_footer
      %s21 = sadd.s32 1, %s17
    $region7: #{detect_forward.3} parent=1 // loop_footer_branch
      %16 = sbr.rel target = $region3
    $region8: #{detect_forward.3} parent=1 // loop_exit
      _

// kernel: detect_forward.4
$region0: #{detect_forward.4}
  #allocation0 [shape = 'u32[]', space=smem, size = 0x4, offset = 0x4, fixed_abs, tag = 'smem constant byte address 0x4 - core index']
  #allocation1 [shape = 'u32[72,128]{1,0:T(1,128)}', space=vmem, size = 0x9000, scoped, tag = 'internal scratch']
  %s0 = inlined_call_operand.vmem [shape: f32[2,32,256], index: 0, kind: input, shape index: {}]
  %s1 = inlined_call_operand.vmem [shape: f32[24,32], index: 1, kind: input, shape index: {}]
  %s2 = inlined_call_operand.vmem [shape: f32[24,1], index: 2, kind: input, shape index: {}]
  %s3 = inlined_call_operand.vmem [shape: f32[24,1], index: 3, kind: input, shape index: {}]
  %s4 = inlined_call_operand.vmem [shape: f32[24,1], index: 4, kind: input, shape index: {}]
  %s5 = inlined_call_operand.vmem [shape: f32[24,1], index: 5, kind: input, shape index: {}]
  %s6 = inlined_call_operand.vmem [shape: f32[24,1], index: 6, kind: input, shape index: {}]
  %s7 = inlined_call_operand.vmem [shape: f32[1,256], index: 7, kind: input, shape index: {}]
  %s8 = inlined_call_operand.vmem [shape: f32[1,256], index: 8, kind: input, shape index: {}]
  %s9 = inlined_call_operand.vmem [shape: f32[2,24,256], index: 9, kind: output, shape index: {0}]
  %s10 = inlined_call_operand.vmem [shape: f32[2,24,256], index: 10, kind: output, shape index: {1}]
  %11 = xla_tuple %s9, %s10
  %s12 = sld [smem:[#allocation0]]
  $region77: #{detect_forward.4} parent=0
    _
  %s14 = ssub.s32 1, %s12
  %s15 = scalar_select 0, %s14, %s12
  loop: start=0, step=1, limit=4
  $region2: #{detect_forward.4} parent=0 // loop_pre_header
    _
  $region3: #{detect_forward.4} parent=0 // loop_header
    %s17 = sphi 0, %s21
    %p18 = scmp.ge.s32.totalorder %s17, 4
    %s24 = sphi 0, %s36
    %s25 = sphi 0, %s32
    %s26 = sphi 0, %s24
    %s27 = sphi 0, %s25
    %s28 = sphi 0, %s26
    %s29 = sphi 0, %s27
    %s41 = sphi 0, %s43
    %s44 = sphi 0, %s41
    %s45 = sphi 0, %s44
    %s61 = sphi 0, %s45
    %s65 = sphi 0, %s65
    %s67 = sphi 0, %s65
    %s68 = sphi 0, %s67
    %s82 = sphi 0, %s68
    %s86 = sphi 0, %s86
    %s88 = sphi 0, %s86
    %s89 = sphi 0, %s88
    %s103 = sphi 0, %s89
    %s107 = sphi 0, %s107
    %s109 = sphi 0, %s107
    %s110 = sphi 0, %s109
    %s124 = sphi 0, %s110
    %s128 = sphi 0, %s128
    %s130 = sphi 0, %s128
    %s131 = sphi 0, %s130
    %s145 = sphi 0, %s131
    %s149 = sphi 0, %s149
    %s151 = sphi 0, %s149
    %s152 = sphi 0, %s151
    %s166 = sphi 0, %s152
    %s170 = sphi 0, %s170
    %s172 = sphi 0, %s170
    %s173 = sphi 0, %s172
    %s187 = sphi 0, %s173
    %s193 = sphi 0, %s195
    %s196 = sphi 0, %s193
    %s197 = sphi 0, %s196
    %s213 = sphi 0, %s197
    %s219 = sphi 0, %s221
    %s222 = sphi 0, %s219
    %s223 = sphi 0, %s222
    %s239 = sphi 0, %s223
    %s247 = sphi 0, %s249
    %s250 = sphi 0, %s247
    %s251 = sphi 0, %s250
    %s267 = sphi 0, %s251
    %s275 = sphi 0, %s277
    %s278 = sphi 0, %s275
    %s279 = sphi 0, %s278
    %s295 = sphi 0, %s279
  $region4: #{detect_forward.4} parent=0 // loop_header_branch
    %20 = sbr.rel (%p18) target = $region8
  $region5: #{detect_forward.4} parent=0 // loop_body
    %s22 = ssub.s32 %s17, 1
    %s23 = ssub.s32 %s17, 2
    %s30 = sadd.s32 1, %s25
    %p31 = scmp.ge.s32.totalorder %s30, 1
    %s32 = scalar_select %p31, 0, %s30
    %s33 = sadd.s32 1, %s24
    %s34 = scalar_select %p31, %s33, %s24
    %p35 = scmp.ge.s32.totalorder %s34, 2
    %s36 = scalar_select %p35, 0, %s34
    %s37 = ssub.s32 %s24, %s36
    %s38 = ssub.s32 %s25, %s32
    %s39 = sor.u32 %s37, %s38
    %p40 = scmp.eq.s32.totalorder %s39, 0
    %s42 = sadd.s32 %s41, 1
    %s43 = scalar_select %p40, %s41, %s42
    %p46 = pneg %p40
    %p47 = scmp.eq.s32.totalorder %s17, 1
    %p48 = por %p46, %p47
    %p49 = scmp.ne.s32.totalorder %s41, %s44
    %p50 = scmp.eq.s32.totalorder %s17, 0
    %p51 = por %p49, %p50
    %p52 = scmp.ne.s32.totalorder %s41, %s44
    %p53 = scmp.eq.s32.totalorder %s22, 1
    %p54 = por %p52, %p53
    %p55 = scmp.ne.s32.totalorder %s44, %s45
    %p56 = scmp.eq.s32.totalorder %s22, 0
    %p57 = por %p55, %p56
    %p58 = scmp.ne.s32.totalorder %s44, %s45
    %p59 = scmp.eq.s32.totalorder %s23, 1
    %p60 = por %p58, %p59
    %p62 = scmp.ne.s32.totalorder %s45, %s61
    %p63 = scmp.eq.s32.totalorder %s23, 0
    %p64 = por %p62, %p63
    %s66 = sadd.s32 %s65, 1
    %p69 = scmp.eq.s32.totalorder %s17, 1
    %p70 = scmp.ne.s32.totalorder %s65, %s67
    %p71 = scmp.eq.s32.totalorder %s17, 0
    %p72 = por %p70, %p71
    %p73 = scmp.ne.s32.totalorder %s65, %s67
    %p74 = scmp.eq.s32.totalorder %s22, 1
    %p75 = por %p73, %p74
    %p76 = scmp.ne.s32.totalorder %s67, %s68
    %p77 = scmp.eq.s32.totalorder %s22, 0
    %p78 = por %p76, %p77
    %p79 = scmp.ne.s32.totalorder %s67, %s68
    %p80 = scmp.eq.s32.totalorder %s23, 1
    %p81 = por %p79, %p80
    %p83 = scmp.ne.s32.totalorder %s68, %s82
    %p84 = scmp.eq.s32.totalorder %s23, 0
    %p85 = por %p83, %p84
    %s87 = sadd.s32 %s86, 1
    %p90 = scmp.eq.s32.totalorder %s17, 1
    %p91 = scmp.ne.s32.totalorder %s86, %s88
    %p92 = scmp.eq.s32.totalorder %s17, 0
    %p93 = por %p91, %p92
    %p94 = scmp.ne.s32.totalorder %s86, %s88
    %p95 = scmp.eq.s32.totalorder %s22, 1
    %p96 = por %p94, %p95
    %p97 = scmp.ne.s32.totalorder %s88, %s89
    %p98 = scmp.eq.s32.totalorder %s22, 0
    %p99 = por %p97, %p98
    %p100 = scmp.ne.s32.totalorder %s88, %s89
    %p101 = scmp.eq.s32.totalorder %s23, 1
    %p102 = por %p100, %p101
    %p104 = scmp.ne.s32.totalorder %s89, %s103
    %p105 = scmp.eq.s32.totalorder %s23, 0
    %p106 = por %p104, %p105
    %s108 = sadd.s32 %s107, 1
    %p111 = scmp.eq.s32.totalorder %s17, 1
    %p112 = scmp.ne.s32.totalorder %s107, %s109
    %p113 = scmp.eq.s32.totalorder %s17, 0
    %p114 = por %p112, %p113
    %p115 = scmp.ne.s32.totalorder %s107, %s109
    %p116 = scmp.eq.s32.totalorder %s22, 1
    %p117 = por %p115, %p116
    %p118 = scmp.ne.s32.totalorder %s109, %s110
    %p119 = scmp.eq.s32.totalorder %s22, 0
    %p120 = por %p118, %p119
    %p121 = scmp.ne.s32.totalorder %s109, %s110
    %p122 = scmp.eq.s32.totalorder %s23, 1
    %p123 = por %p121, %p122
    %p125 = scmp.ne.s32.totalorder %s110, %s124
    %p126 = scmp.eq.s32.totalorder %s23, 0
    %p127 = por %p125, %p126
    %s129 = sadd.s32 %s128, 1
    %p132 = scmp.eq.s32.totalorder %s17, 1
    %p133 = scmp.ne.s32.totalorder %s128, %s130
    %p134 = scmp.eq.s32.totalorder %s17, 0
    %p135 = por %p133, %p134
    %p136 = scmp.ne.s32.totalorder %s128, %s130
    %p137 = scmp.eq.s32.totalorder %s22, 1
    %p138 = por %p136, %p137
    %p139 = scmp.ne.s32.totalorder %s130, %s131
    %p140 = scmp.eq.s32.totalorder %s22, 0
    %p141 = por %p139, %p140
    %p142 = scmp.ne.s32.totalorder %s130, %s131
    %p143 = scmp.eq.s32.totalorder %s23, 1
    %p144 = por %p142, %p143
    %p146 = scmp.ne.s32.totalorder %s131, %s145
    %p147 = scmp.eq.s32.totalorder %s23, 0
    %p148 = por %p146, %p147
    %s150 = sadd.s32 %s149, 1
    %p153 = scmp.eq.s32.totalorder %s17, 1
    %p154 = scmp.ne.s32.totalorder %s149, %s151
    %p155 = scmp.eq.s32.totalorder %s17, 0
    %p156 = por %p154, %p155
    %p157 = scmp.ne.s32.totalorder %s149, %s151
    %p158 = scmp.eq.s32.totalorder %s22, 1
    %p159 = por %p157, %p158
    %p160 = scmp.ne.s32.totalorder %s151, %s152
    %p161 = scmp.eq.s32.totalorder %s22, 0
    %p162 = por %p160, %p161
    %p163 = scmp.ne.s32.totalorder %s151, %s152
    %p164 = scmp.eq.s32.totalorder %s23, 1
    %p165 = por %p163, %p164
    %p167 = scmp.ne.s32.totalorder %s152, %s166
    %p168 = scmp.eq.s32.totalorder %s23, 0
    %p169 = por %p167, %p168
    %s171 = sadd.s32 %s170, 1
    %p174 = scmp.eq.s32.totalorder %s17, 1
    %p175 = scmp.ne.s32.totalorder %s170, %s172
    %p176 = scmp.eq.s32.totalorder %s17, 0
    %p177 = por %p175, %p176
    %p178 = scmp.ne.s32.totalorder %s170, %s172
    %p179 = scmp.eq.s32.totalorder %s22, 1
    %p180 = por %p178, %p179
    %p181 = scmp.ne.s32.totalorder %s172, %s173
    %p182 = scmp.eq.s32.totalorder %s22, 0
    %p183 = por %p181, %p182
    %p184 = scmp.ne.s32.totalorder %s172, %s173
    %p185 = scmp.eq.s32.totalorder %s23, 1
    %p186 = por %p184, %p185
    %p188 = scmp.ne.s32.totalorder %s173, %s187
    %p189 = scmp.eq.s32.totalorder %s23, 0
    %p190 = por %p188, %p189
    %s191 = ssub.s32 %s25, %s32
    %p192 = scmp.eq.s32.totalorder %s191, 0
    %s194 = sadd.s32 %s193, 1
    %s195 = scalar_select %p192, %s193, %s194
    %p198 = pneg %p192
    %p199 = scmp.eq.s32.totalorder %s17, 1
    %p200 = por %p198, %p199
    %p201 = scmp.ne.s32.totalorder %s193, %s196
    %p202 = scmp.eq.s32.totalorder %s17, 0
    %p203 = por %p201, %p202
    %p204 = scmp.ne.s32.totalorder %s193, %s196
    %p205 = scmp.eq.s32.totalorder %s22, 1
    %p206 = por %p204, %p205
    %p207 = scmp.ne.s32.totalorder %s196, %s197
    %p208 = scmp.eq.s32.totalorder %s22, 0
    %p209 = por %p207, %p208
    %p210 = scmp.ne.s32.totalorder %s196, %s197
    %p211 = scmp.eq.s32.totalorder %s23, 1
    %p212 = por %p210, %p211
    %p214 = scmp.ne.s32.totalorder %s197, %s213
    %p215 = scmp.eq.s32.totalorder %s23, 0
    %p216 = por %p214, %p215
    %s217 = ssub.s32 %s25, %s32
    %p218 = scmp.eq.s32.totalorder %s217, 0
    %s220 = sadd.s32 %s219, 1
    %s221 = scalar_select %p218, %s219, %s220
    %p224 = pneg %p218
    %p225 = scmp.eq.s32.totalorder %s17, 1
    %p226 = por %p224, %p225
    %p227 = scmp.ne.s32.totalorder %s219, %s222
    %p228 = scmp.eq.s32.totalorder %s17, 0
    %p229 = por %p227, %p228
    %p230 = scmp.ne.s32.totalorder %s219, %s222
    %p231 = scmp.eq.s32.totalorder %s22, 1
    %p232 = por %p230, %p231
    %p233 = scmp.ne.s32.totalorder %s222, %s223
    %p234 = scmp.eq.s32.totalorder %s22, 0
    %p235 = por %p233, %p234
    %p236 = scmp.ne.s32.totalorder %s222, %s223
    %p237 = scmp.eq.s32.totalorder %s23, 1
    %p238 = por %p236, %p237
    %p240 = scmp.ne.s32.totalorder %s223, %s239
    %p241 = scmp.eq.s32.totalorder %s23, 0
    %p242 = por %p240, %p241
    %s243 = ssub.s32 %s24, %s36
    %s244 = ssub.s32 %s25, %s32
    %s245 = sor.u32 %s243, %s244
    %p246 = scmp.eq.s32.totalorder %s245, 0
    %s248 = sadd.s32 %s247, 1
    %s249 = scalar_select %p246, %s247, %s248
    %p252 = pneg %p246
    %p253 = scmp.eq.s32.totalorder %s17, 1
    %p254 = por %p252, %p253
    %p255 = scmp.ne.s32.totalorder %s247, %s250
    %p256 = scmp.eq.s32.totalorder %s17, 0
    %p257 = por %p255, %p256
    %p258 = scmp.ne.s32.totalorder %s247, %s250
    %p259 = scmp.eq.s32.totalorder %s22, 1
    %p260 = por %p258, %p259
    %p261 = scmp.ne.s32.totalorder %s250, %s251
    %p262 = scmp.eq.s32.totalorder %s22, 0
    %p263 = por %p261, %p262
    %p264 = scmp.ne.s32.totalorder %s250, %s251
    %p265 = scmp.eq.s32.totalorder %s23, 1
    %p266 = por %p264, %p265
    %p268 = scmp.ne.s32.totalorder %s251, %s267
    %p269 = scmp.eq.s32.totalorder %s23, 0
    %p270 = por %p268, %p269
    %s271 = ssub.s32 %s24, %s36
    %s272 = ssub.s32 %s25, %s32
    %s273 = sor.u32 %s271, %s272
    %p274 = scmp.eq.s32.totalorder %s273, 0
    %s276 = sadd.s32 %s275, 1
    %s277 = scalar_select %p274, %s275, %s276
    %p280 = pneg %p274
    %p281 = scmp.eq.s32.totalorder %s17, 1
    %p282 = por %p280, %p281
    %p283 = scmp.ne.s32.totalorder %s275, %s278
    %p284 = scmp.eq.s32.totalorder %s17, 0
    %p285 = por %p283, %p284
    %p286 = scmp.ne.s32.totalorder %s275, %s278
    %p287 = scmp.eq.s32.totalorder %s22, 1
    %p288 = por %p286, %p287
    %p289 = scmp.ne.s32.totalorder %s278, %s279
    %p290 = scmp.eq.s32.totalorder %s22, 0
    %p291 = por %p289, %p290
    %p292 = scmp.ne.s32.totalorder %s278, %s279
    %p293 = scmp.eq.s32.totalorder %s23, 1
    %p294 = por %p292, %p293
    %p296 = scmp.ne.s32.totalorder %s279, %s295
    %p297 = scmp.eq.s32.totalorder %s23, 0
    %p298 = por %p296, %p297
    %p299 = scmp.le.s32.totalorder 1, %s17
    %p300 = scmp.lt.s32.totalorder %s17, 3
    %p301 = pnand %p299, %p300
    %p302 = pneg %p301
    // Predicated region
    $region9: #{detect_forward.4} parent=5 // pred_check
      _
    $region10: #{detect_forward.4} parent=5 // pred_check_branch
      %304 = sbr.rel (%p301) target = $region12
    $region11: #{detect_forward.4} parent=5 // pred_region
      %s305 = ssub.s32 %s17, 1
      // Predicated region
      $region13: #{detect_forward.4} parent=11 // pred_check
        %p306 = pneg %p78
      $region14: #{detect_forward.4} parent=11 // pred_check_branch
        %308 = sbr.rel (%p306) target = $region16
      $region15: #{detect_forward.4} parent=11 // pred_region
        _
      $region16: #{detect_forward.4} parent=11 // pred_fallthru
        _
      // Predicated region
      $region17: #{detect_forward.4} parent=11 // pred_check
        %p309 = pneg %p99
      $region18: #{detect_forward.4} parent=11 // pred_check_branch
        %311 = sbr.rel (%p309) target = $region20
      $region19: #{detect_forward.4} parent=11 // pred_region
        _
      $region20: #{detect_forward.4} parent=11 // pred_fallthru
        _
      // Predicated region
      $region21: #{detect_forward.4} parent=11 // pred_check
        %p312 = pneg %p120
      $region22: #{detect_forward.4} parent=11 // pred_check_branch
        %314 = sbr.rel (%p312) target = $region24
      $region23: #{detect_forward.4} parent=11 // pred_region
        _
      $region24: #{detect_forward.4} parent=11 // pred_fallthru
        _
      // Predicated region
      $region25: #{detect_forward.4} parent=11 // pred_check
        %p315 = pneg %p141
      $region26: #{detect_forward.4} parent=11 // pred_check_branch
        %317 = sbr.rel (%p315) target = $region28
      $region27: #{detect_forward.4} parent=11 // pred_region
        _
      $region28: #{detect_forward.4} parent=11 // pred_fallthru
        _
      // Predicated region
      $region29: #{detect_forward.4} parent=11 // pred_check
        %p318 = pneg %p162
      $region30: #{detect_forward.4} parent=11 // pred_check_branch
        %320 = sbr.rel (%p318) target = $region32
      $region31: #{detect_forward.4} parent=11 // pred_region
        _
      $region32: #{detect_forward.4} parent=11 // pred_fallthru
        _
      // Predicated region
      $region33: #{detect_forward.4} parent=11 // pred_check
        %p321 = pneg %p183
      $region34: #{detect_forward.4} parent=11 // pred_check_branch
        %323 = sbr.rel (%p321) target = $region36
      $region35: #{detect_forward.4} parent=11 // pred_region
        _
      $region36: #{detect_forward.4} parent=11 // pred_fallthru
        _
      // Predicated region
      $region37: #{detect_forward.4} parent=11 // pred_check
        %p324 = pneg %p209
      $region38: #{detect_forward.4} parent=11 // pred_check_branch
        %326 = sbr.rel (%p324) target = $region40
      $region39: #{detect_forward.4} parent=11 // pred_region
        %s327 = smul.u32 2, %s27
        %p328 = scmp.lt.s32.totalorder %s327, 1
        %s329 = scalar_select %p328, %s327, 1
        %s330 = scalar_lea.vmem %s7, %s329
        %s331 = smul.u32 2, %s27
      $region40: #{detect_forward.4} parent=11 // pred_fallthru
        _
      // Predicated region
      $region41: #{detect_forward.4} parent=11 // pred_check
        %p332 = pneg %p235
      $region42: #{detect_forward.4} parent=11 // pred_check_branch
        %334 = sbr.rel (%p332) target = $region44
      $region43: #{detect_forward.4} parent=11 // pred_region
        %s335 = smul.u32 2, %s27
        %p336 = scmp.lt.s32.totalorder %s335, 1
        %s337 = scalar_select %p336, %s335, 1
        %s338 = scalar_lea.vmem %s8, %s337
        %s339 = smul.u32 2, %s27
      $region44: #{detect_forward.4} parent=11 // pred_fallthru
        _
    $region12: #{detect_forward.4} parent=5 // pred_fallthru
      _
    %p340 = scmp.lt.s32.totalorder %s17, 2
    // Predicated region
    $region45: #{detect_forward.4} parent=5 // pred_check
      %p341 = pneg %p340
    $region46: #{detect_forward.4} parent=5 // pred_check_branch
      %343 = sbr.rel (%p341) target = $region48
    $region47: #{detect_forward.4} parent=5 // pred_region
      // Predicated region
      $region49: #{detect_forward.4} parent=47 // pred_check
        %p344 = pneg %p51
      $region50: #{detect_forward.4} parent=47 // pred_check_branch
        %346 = sbr.rel (%p344) target = $region52
      $region51: #{detect_forward.4} parent=47 // pred_region
        %s347 = smul.u32 2, %s25
        %p348 = scmp.lt.s32.totalorder %s24, 1
        %s349 = scalar_select %p348, %s24, 1
        %p350 = scmp.lt.s32.totalorder %s347, 1
        %s351 = scalar_select %p350, %s347, 1
        %s352 = smul.addr %s349, 8
        %s353 = sadd.s32 %s351, %s352
        %s354 = smul.addr %s353, 8
        %s355 = scalar_lea.vmem %s0, %s354
        %s356 = smul.u32 2, %s25
      $region52: #{detect_forward.4} parent=47 // pred_fallthru
        _
    $region48: #{detect_forward.4} parent=5 // pred_fallthru
      _
    %p357 = scmp.le.s32.totalorder 1, %s17
    %p358 = scmp.lt.s32.totalorder %s17, 3
    %p359 = pnand %p357, %p358
    %p360 = pneg %p359
    // Predicated region
    $region53: #{detect_forward.4} parent=5 // pred_check
      _
    $region54: #{detect_forward.4} parent=5 // pred_check_branch
      %362 = sbr.rel (%p359) target = $region56
    $region55: #{detect_forward.4} parent=5 // pred_region
      %s363 = ssub.s32 %s17, 1
      %s364 = smul.u32 2, %s27
      %p365 = scmp.lt.s32.totalorder %s26, 1
      %s366 = scalar_select %p365, %s26, 1
      %p367 = scmp.lt.s32.totalorder %s364, 1
      %s368 = scalar_select %p367, %s364, 1
      %s369 = smul.addr %s366, 8
      %s370 = sadd.s32 %s368, %s369
      %s371 = smul.addr %s370, 8
      %s372 = scalar_lea.vmem %s0, %s371
      %p373 = pneg %p57
      %p374 = pneg %p54
      %p375 = pneg %p78
      %p376 = pneg %p75
      %p377 = pneg %p99
      %p378 = pneg %p96
      %p379 = pneg %p120
      %p380 = pneg %p117
      %p381 = pneg %p141
      %p382 = pneg %p138
      %p383 = pneg %p162
      %p384 = pneg %p159
      %p385 = pneg %p183
      %p386 = pneg %p180
      %s387 = smul.u32 2, %s27
      %p388 = scmp.lt.s32.totalorder %s387, 1
      %s389 = scalar_select %p388, %s387, 1
      %s390 = scalar_lea.vmem %s7, %s389
      %p391 = pneg %p209
      %p392 = pneg %p206
      %s393 = smul.u32 2, %s27
      %p394 = scmp.lt.s32.totalorder %s393, 1
      %s395 = scalar_select %p394, %s393, 1
      %s396 = scalar_lea.vmem %s8, %s395
      %p397 = pneg %p235
      %p398 = pneg %p232
      %p399 = pneg %p263
      %p400 = pneg %p260
      %s401 = smul.u32 2, %s27
      %p402 = scmp.lt.s32.totalorder %s26, 1
      %s403 = scalar_select %p402, %s26, 1
      %p404 = scmp.lt.s32.totalorder %s401, 1
      %s405 = scalar_select %p404, %s401, 1
      %s406 = smul.addr %s403, 6
      %s407 = sadd.s32 %s405, %s406
      %s408 = smul.addr %s407, 8
      %s409 = scalar_lea.vmem %s9, %s408
      %p410 = pneg %p291
      %p411 = pneg %p288
      %s412 = smul.u32 2, %s27
      %p413 = scmp.lt.s32.totalorder %s26, 1
      %s414 = scalar_select %p413, %s26, 1
      %p415 = scmp.lt.s32.totalorder %s412, 1
      %s416 = scalar_select %p415, %s412, 1
      %s417 = smul.addr %s414, 6
      %s418 = sadd.s32 %s416, %s417
      %s419 = smul.addr %s418, 8
      %s420 = scalar_lea.vmem %s10, %s419
      %s421 = smul.u32 2, %s27
      %p422 = scmp.lt.s32.totalorder %s26, 1
      %s423 = scalar_select %p422, %s26, 1
      %p424 = scmp.lt.s32.totalorder %s421, 1
      %s425 = scalar_select %p424, %s421, 1
      %s426 = smul.addr %s423, 8
      %s427 = sadd.s32 %s425, %s426
      %s428 = smul.addr %s427, 8
      %s429 = scalar_lea.vmem %s0, %s428
      %s430 = smul.u32 2, %s27
      %s431 = smul.u32 2, %s27
      %p432 = scmp.lt.s32.totalorder %s431, 1
      %s433 = scalar_select %p432, %s431, 1
      %s434 = scalar_lea.vmem %s7, %s433
      %s435 = smul.u32 2, %s27
      %s436 = smul.u32 2, %s27
      %p437 = scmp.lt.s32.totalorder %s436, 1
      %s438 = scalar_select %p437, %s436, 1
      %s439 = scalar_lea.vmem %s8, %s438
      %s440 = smul.u32 2, %s27
      %s441 = smul.u32 2, %s27
      %p442 = scmp.lt.s32.totalorder %s26, 1
      %s443 = scalar_select %p442, %s26, 1
      %p444 = scmp.lt.s32.totalorder %s441, 1
      %s445 = scalar_select %p444, %s441, 1
      %s446 = smul.addr %s443, 6
      %s447 = sadd.s32 %s445, %s446
      %s448 = smul.addr %s447, 8
      %s449 = scalar_lea.vmem %s9, %s448
      %s450 = smul.u32 2, %s27
      %s451 = smul.u32 2, %s27
      %p452 = scmp.lt.s32.totalorder %s26, 1
      %s453 = scalar_select %p452, %s26, 1
      %p454 = scmp.lt.s32.totalorder %s451, 1
      %s455 = scalar_select %p454, %s451, 1
      %s456 = smul.addr %s453, 6
      %s457 = sadd.s32 %s455, %s456
      %s458 = smul.addr %s457, 8
      %s459 = scalar_lea.vmem %s10, %s458
      %s460 = smul.u32 2, %s27
      %v461 = vld [vmem:[%s1] sm:$0xff]
      %v462 = vld [vmem:[%s1 + $0x8] sm:$0xff]
      %v463 = vld [vmem:[%s1 + $0x10] sm:$0xff]
      %v464 = vld [vmem:[%s429] sm:$0xff]
      %v465 = vld [vmem:[%s429 + $0x8] sm:$0xff]
      %v466 = vld [vmem:[%s429 + $0x10] sm:$0xff]
      %v467 = vld [vmem:[%s429 + $0x18] sm:$0xff]
      %v468 = vld [vmem:[%s429 + $0x20] sm:$0xff]
      %v469 = vld [vmem:[%s429 + $0x28] sm:$0xff]
      %v470 = vld [vmem:[%s429 + $0x30] sm:$0xff]
      %v471 = vld [vmem:[%s429 + $0x38] sm:$0xff]
      %v472 = vld [vmem:[%s2] sm:$0xff]
      %v473 = vld [vmem:[%s2 + $0x8] sm:$0xff]
      %v474 = vld [vmem:[%s2 + $0x10] sm:$0xff]
      %476 = vset.pattern.permute.xlu0 0
      %477 = vperm.xlu0 %476, %v472
      %v478 = vpop.permute.xlu0 %477
      %481 = vset.pattern.permute.xlu0 0
      %482 = vperm.xlu0 %481, %v473
      %v483 = vpop.permute.xlu0 %482
      %486 = vset.pattern.permute.xlu0 0
      %487 = vperm.xlu0 %486, %v474
      %v488 = vpop.permute.xlu0 %487
      %vm490 = vcmask 261120
      %v492 = vsel %vm490, %v461, 0
      %v495 = vsel %vm490, %v462, 0
      %v498 = vsel %vm490, %v463, 0
      %500 = vmatpush.msra.mxu0 0.0
      %501 = vmatpush.msra.mxu0 0.0
      %502 = vmatpush.msra.mxu0 0.0
      %503 = vmatpush.msra.mxu0 0.0
      %504 = vmatpush.msra.mxu0 0.0
      %505 = vmatpush.msra.mxu0 0.0
      %506 = vmatpush.msra.mxu0 0.0
      %507 = vmatpush.msra.mxu0 0.0
      %508 = vmatpush.msra.mxu0 0.0
      %509 = vmatpush.msra.mxu0 0.0
      %510 = vmatpush.msra.mxu0 0.0
      %511 = vmatpush.msra.mxu0 0.0
      %512 = vmatpush.msra.mxu0 %v470
      %513 = vmatpush.msra.mxu0 %v468
      %514 = vmatpush.msra.mxu0 %v466
      %515 = vmatpush.msra.mxu0 %v464
      %516 = vmatmul.f32.gmra.mxu0 %v492
      %v517 = vpop.f32.mrf.mxu0
      %v518 = vadd.f32 %v478, %v517
      %519 = vmatmul.f32.gmra.mxu0 %v495
      %v520 = vpop.f32.mrf.mxu0
      %v521 = vadd.f32 %v483, %v520
      %522 = vmatmul.f32.gmra.mxu0 %v498
      %v523 = vpop.f32.mrf.mxu0
      %v524 = vadd.f32 %v488, %v523
      %525 = vdwg.mxu0
      %526 = vmatpush.msra.mxu0 0.0
      %527 = vmatpush.msra.mxu0 0.0
      %528 = vmatpush.msra.mxu0 0.0
      %529 = vmatpush.msra.mxu0 0.0
      %530 = vmatpush.msra.mxu0 0.0
      %531 = vmatpush.msra.mxu0 0.0
      %532 = vmatpush.msra.mxu0 0.0
      %533 = vmatpush.msra.mxu0 0.0
      %534 = vmatpush.msra.mxu0 0.0
      %535 = vmatpush.msra.mxu0 0.0
      %536 = vmatpush.msra.mxu0 0.0
      %537 = vmatpush.msra.mxu0 0.0
      %538 = vmatpush.msra.mxu0 %v471
      %539 = vmatpush.msra.mxu0 %v469
      %540 = vmatpush.msra.mxu0 %v467
      %541 = vmatpush.msra.mxu0 %v465
      %542 = vmatmul.f32.gmra.mxu0 %v492
      %v543 = vpop.f32.mrf.mxu0
      %v544 = vadd.f32 %v478, %v543
      %545 = vmatmul.f32.gmra.mxu0 %v495
      %v546 = vpop.f32.mrf.mxu0
      %v547 = vadd.f32 %v483, %v546
      %548 = vmatmul.f32.gmra.mxu0 %v498
      %v549 = vpop.f32.mrf.mxu0
      %v550 = vadd.f32 %v488, %v549
      %551 = vdwg.mxu0
      %552 = vst [vmem:[%s449] sm:$0xff] %v518
      %553 = vst [vmem:[%s449 + $0x8] sm:$0xff] %v544
      %554 = vst [vmem:[%s449 + $0x10] sm:$0xff] %v521
      %555 = vst [vmem:[%s449 + $0x18] sm:$0xff] %v547
      %556 = vst [vmem:[%s449 + $0x20] sm:$0xff] %v524
      %557 = vst [vmem:[%s449 + $0x28] sm:$0xff] %v550
      %v558 = vxor.u32 %v518, 2147483648
      %v559 = vxor.u32 %v544, 2147483648
      %v560 = vxor.u32 %v521, 2147483648
      %v561 = vxor.u32 %v547, 2147483648
      %v562 = vxor.u32 %v524, 2147483648
      %v563 = vxor.u32 %v550, 2147483648
      %v564 = vmul.f32 %v558, 1.442695
      %v565 = vpow.pop %v564
      %v566 = vmul.f32 %v559, 1.442695
      %v567 = vpow.pop %v566
      %v568 = vmul.f32 %v560, 1.442695
      %v569 = vpow.pop %v568
      %v570 = vmul.f32 %v561, 1.442695
      %v571 = vpow.pop %v570
      %v572 = vmul.f32 %v562, 1.442695
      %v573 = vpow.pop %v572
      %v574 = vmul.f32 %v563, 1.442695
      %v575 = vpow.pop %v574
      %v576 = vadd.f32 %v565, 1.0
      %v577 = vadd.f32 %v567, 1.0
      %v578 = vadd.f32 %v569, 1.0
      %v579 = vadd.f32 %v571, 1.0
      %v580 = vadd.f32 %v573, 1.0
      %v581 = vadd.f32 %v575, 1.0
      %v582 = vrcp.pop %v576
      %v583 = vmul.f32 %v576, %v582
      %v584 = vsub.f32 1.0, %v583
      %v585 = vmul.f32 %v582, %v584
      %v586 = vadd.f32 %v582, %v585
      %vm587 = vweird.f32 %v576
      %vm588 = vweird.f32 %v582
      %vm589 = vmor %vm587, %vm588
      %v590 = vsel %vm589, %v582, %v586
      %v591 = vand.u32 2147483647, %v576
      %vm592 = vcmp.eq.f32.partialorder %v591, 8.507059e+37
      %v593 = vand.u32 %v576, 2147483648
      %v594 = vor.u32 1.1754944e-38, %v593
      %v595 = vsel %vm592, %v594, %v590
      %v596 = vmul.f32 1.0, %v595
      %v597 = vrcp.pop %v577
      %v598 = vmul.f32 %v577, %v597
      %v599 = vsub.f32 1.0, %v598
      %v600 = vmul.f32 %v597, %v599
      %v601 = vadd.f32 %v597, %v600
      %vm602 = vweird.f32 %v577
      %vm603 = vweird.f32 %v597
      %vm604 = vmor %vm602, %vm603
      %v605 = vsel %vm604, %v597, %v601
      %v606 = vand.u32 2147483647, %v577
      %vm607 = vcmp.eq.f32.partialorder %v606, 8.507059e+37
      %v608 = vand.u32 %v577, 2147483648
      %v609 = vor.u32 1.1754944e-38, %v608
      %v610 = vsel %vm607, %v609, %v605
      %v611 = vmul.f32 1.0, %v610
      %v612 = vrcp.pop %v578
      %v613 = vmul.f32 %v578, %v612
      %v614 = vsub.f32 1.0, %v613
      %v615 = vmul.f32 %v612, %v614
      %v616 = vadd.f32 %v612, %v615
      %vm617 = vweird.f32 %v578
      %vm618 = vweird.f32 %v612
      %vm619 = vmor %vm617, %vm618
      %v620 = vsel %vm619, %v612, %v616
      %v621 = vand.u32 2147483647, %v578
      %vm622 = vcmp.eq.f32.partialorder %v621, 8.507059e+37
      %v623 = vand.u32 %v578, 2147483648
      %v624 = vor.u32 1.1754944e-38, %v623
      %v625 = vsel %vm622, %v624, %v620
      %v626 = vmul.f32 1.0, %v625
      %v627 = vrcp.pop %v579
      %v628 = vmul.f32 %v579, %v627
      %v629 = vsub.f32 1.0, %v628
      %v630 = vmul.f32 %v627, %v629
      %v631 = vadd.f32 %v627, %v630
      %vm632 = vweird.f32 %v579
      %vm633 = vweird.f32 %v627
      %vm634 = vmor %vm632, %vm633
      %v635 = vsel %vm634, %v627, %v631
      %v636 = vand.u32 2147483647, %v579
      %vm637 = vcmp.eq.f32.partialorder %v636, 8.507059e+37
      %v638 = vand.u32 %v579, 2147483648
      %v639 = vor.u32 1.1754944e-38, %v638
      %v640 = vsel %vm637, %v639, %v635
      %v641 = vmul.f32 1.0, %v640
      %v642 = vrcp.pop %v580
      %v643 = vmul.f32 %v580, %v642
      %v644 = vsub.f32 1.0, %v643
      %v645 = vmul.f32 %v642, %v644
      %v646 = vadd.f32 %v642, %v645
      %vm647 = vweird.f32 %v580
      %vm648 = vweird.f32 %v642
      %vm649 = vmor %vm647, %vm648
      %v650 = vsel %vm649, %v642, %v646
      %v651 = vand.u32 2147483647, %v580
      %vm652 = vcmp.eq.f32.partialorder %v651, 8.507059e+37
      %v653 = vand.u32 %v580, 2147483648
      %v654 = vor.u32 1.1754944e-38, %v653
      %v655 = vsel %vm652, %v654, %v650
      %v656 = vmul.f32 1.0, %v655
      %v657 = vrcp.pop %v581
      %v658 = vmul.f32 %v581, %v657
      %v659 = vsub.f32 1.0, %v658
      %v660 = vmul.f32 %v657, %v659
      %v661 = vadd.f32 %v657, %v660
      %vm662 = vweird.f32 %v581
      %vm663 = vweird.f32 %v657
      %vm664 = vmor %vm662, %vm663
      %v665 = vsel %vm664, %v657, %v661
      %v666 = vand.u32 2147483647, %v581
      %vm667 = vcmp.eq.f32.partialorder %v666, 8.507059e+37
      %v668 = vand.u32 %v581, 2147483648
      %v669 = vor.u32 1.1754944e-38, %v668
      %v670 = vsel %vm667, %v669, %v665
      %v671 = vmul.f32 1.0, %v670
      %v672 = vld [vmem:[%s5] sm:$0xff]
      %v673 = vld [vmem:[%s5 + $0x8] sm:$0xff]
      %v674 = vld [vmem:[%s5 + $0x10] sm:$0xff]
      %v675 = vld [vmem:[%s434] sm:$0x3]
      %677 = vset.pattern.permute.xlu0 0
      %678 = vperm.xlu0 %677, %v672
      %v679 = vpop.permute.xlu0 %678
      %682 = vset.pattern.permute.xlu0 0
      %683 = vperm.xlu0 %682, %v673
      %v684 = vpop.permute.xlu0 %683
      %687 = vset.pattern.permute.xlu0 0
      %688 = vperm.xlu0 %687, %v674
      %v689 = vpop.permute.xlu0 %688
      %v692 = vperm.slane %v675, 0
      %v693 = vperm.slane %v675, 1
      %v696 = vmul.f32 %v679, %v692
      %v697 = vmul.f32 %v679, %v693
      %v698 = vmul.f32 %v684, %v692
      %v699 = vmul.f32 %v684, %v693
      %v700 = vmul.f32 %v689, %v692
      %v701 = vmul.f32 %v689, %v693
      %v702 = vld [vmem:[%s6] sm:$0xff]
      %v703 = vld [vmem:[%s6 + $0x8] sm:$0xff]
      %v704 = vld [vmem:[%s6 + $0x10] sm:$0xff]
      %v705 = vld [vmem:[%s439] sm:$0x3]
      %707 = vset.pattern.permute.xlu0 0
      %708 = vperm.xlu0 %707, %v702
      %v709 = vpop.permute.xlu0 %708
      %712 = vset.pattern.permute.xlu0 0
      %713 = vperm.xlu0 %712, %v703
      %v714 = vpop.permute.xlu0 %713
      %717 = vset.pattern.permute.xlu0 0
      %718 = vperm.xlu0 %717, %v704
      %v719 = vpop.permute.xlu0 %718
      %v722 = vperm.slane %v705, 0
      %v723 = vperm.slane %v705, 1
      %v726 = vmul.f32 %v709, %v722
      %v727 = vmul.f32 %v709, %v723
      %v728 = vmul.f32 %v714, %v722
      %v729 = vmul.f32 %v714, %v723
      %v730 = vmul.f32 %v719, %v722
      %v731 = vmul.f32 %v719, %v723
      %v732 = vadd.f32 %v696, %v726
      %v733 = vadd.f32 %v697, %v727
      %v734 = vadd.f32 %v698, %v728
      %v735 = vadd.f32 %v699, %v729
      %v736 = vadd.f32 %v700, %v730
      %v737 = vadd.f32 %v701, %v731
      %v738 = vld [vmem:[%s3] sm:$0xff]
      %v739 = vld [vmem:[%s3 + $0x8] sm:$0xff]
      %v740 = vld [vmem:[%s3 + $0x10] sm:$0xff]
      %v741 = vld [vmem:[%s4] sm:$0xff]
      %v742 = vld [vmem:[%s4 + $0x8] sm:$0xff]
      %v743 = vld [vmem:[%s4 + $0x10] sm:$0xff]
      %745 = vset.pattern.permute.xlu0 0
      %746 = vperm.xlu0 %745, %v741
      %v747 = vpop.permute.xlu0 %746
      %750 = vset.pattern.permute.xlu0 0
      %751 = vperm.xlu0 %750, %v742
      %v752 = vpop.permute.xlu0 %751
      %755 = vset.pattern.permute.xlu0 0
      %756 = vperm.xlu0 %755, %v743
      %v757 = vpop.permute.xlu0 %756
      %v759 = vmul.f32 %v596, %v747
      %v760 = vmul.f32 %v611, %v747
      %v761 = vmul.f32 %v626, %v752
      %v762 = vmul.f32 %v641, %v752
      %v763 = vmul.f32 %v656, %v757
      %v764 = vmul.f32 %v671, %v757
      %766 = vset.pattern.permute.xlu0 0
      %767 = vperm.xlu0 %766, %v738
      %v768 = vpop.permute.xlu0 %767
      %771 = vset.pattern.permute.xlu0 0
      %772 = vperm.xlu0 %771, %v739
      %v773 = vpop.permute.xlu0 %772
      %776 = vset.pattern.permute.xlu0 0
      %777 = vperm.xlu0 %776, %v740
      %v778 = vpop.permute.xlu0 %777
      %v780 = vadd.f32 %v768, %v759
      %v781 = vadd.f32 %v768, %v760
      %v782 = vadd.f32 %v773, %v761
      %v783 = vadd.f32 %v773, %v762
      %v784 = vadd.f32 %v778, %v763
      %v785 = vadd.f32 %v778, %v764
      %v786 = vmul.f32 %v596, %v780
      %v787 = vmul.f32 %v611, %v781
      %v788 = vmul.f32 %v626, %v782
      %v789 = vmul.f32 %v641, %v783
      %v790 = vmul.f32 %v656, %v784
      %v791 = vmul.f32 %v671, %v785
      %v792 = vadd.f32 %v786, %v732
      %v793 = vadd.f32 %v787, %v733
      %v794 = vadd.f32 %v788, %v734
      %v795 = vadd.f32 %v789, %v735
      %v796 = vadd.f32 %v790, %v736
      %v797 = vadd.f32 %v791, %v737
      %798 = vst [vmem:[%s459] sm:$0xff] %v792
      %799 = vst [vmem:[%s459 + $0x8] sm:$0xff] %v793
      %800 = vst [vmem:[%s459 + $0x10] sm:$0xff] %v794
      %801 = vst [vmem:[%s459 + $0x18] sm:$0xff] %v795
      %802 = vst [vmem:[%s459 + $0x20] sm:$0xff] %v796
      %803 = vst [vmem:[%s459 + $0x28] sm:$0xff] %v797
      %s804 = smul.u32 2, %s27
      %p805 = scmp.lt.s32.totalorder %s26, 1
      %s806 = scalar_select %p805, %s26, 1
      %p807 = scmp.lt.s32.totalorder %s804, 1
      %s808 = scalar_select %p807, %s804, 1
      %s809 = smul.addr %s806, 6
      %s810 = sadd.s32 %s808, %s809
      %s811 = smul.addr %s810, 8
      %s812 = scalar_lea.vmem %s9, %s811
      %s813 = smul.u32 2, %s27
      %p814 = scmp.lt.s32.totalorder %s26, 1
      %s815 = scalar_select %p814, %s26, 1
      %p816 = scmp.lt.s32.totalorder %s813, 1
      %s817 = scalar_select %p816, %s813, 1
      %s818 = smul.addr %s815, 6
      %s819 = sadd.s32 %s817, %s818
      %s820 = smul.addr %s819, 8
      %s821 = scalar_lea.vmem %s10, %s820
      // Predicated region
      $region57: #{detect_forward.4} parent=55 // pred_check
        %p822 = pneg %p260
      $region58: #{detect_forward.4} parent=55 // pred_check_branch
        %824 = sbr.rel (%p822) target = $region60
      $region59: #{detect_forward.4} parent=55 // pred_region
        %s825 = smul.u32 2, %s27
      $region60: #{detect_forward.4} parent=55 // pred_fallthru
        _
      // Predicated region
      $region61: #{detect_forward.4} parent=55 // pred_check
        %p826 = pneg %p288
      $region62: #{detect_forward.4} parent=55 // pred_check_branch
        %828 = sbr.rel (%p826) target = $region64
      $region63: #{detect_forward.4} parent=55 // pred_region
        %s829 = smul.u32 2, %s27
      $region64: #{detect_forward.4} parent=55 // pred_fallthru
        _
    $region56: #{detect_forward.4} parent=5 // pred_fallthru
      _
    %p830 = scmp.le.s32.totalorder 2, %s17
    // Predicated region
    $region65: #{detect_forward.4} parent=5 // pred_check
      %p831 = pneg %p830
    $region66: #{detect_forward.4} parent=5 // pred_check_branch
      %833 = sbr.rel (%p831) target = $region68
    $region67: #{detect_forward.4} parent=5 // pred_region
      %s834 = ssub.s32 %s17, 2
      // Predicated region
      $region69: #{detect_forward.4} parent=67 // pred_check
        %p835 = pneg %p266
      $region70: #{detect_forward.4} parent=67 // pred_check_branch
        %837 = sbr.rel (%p835) target = $region72
      $region71: #{detect_forward.4} parent=67 // pred_region
        %s838 = smul.u32 2, %s29
        %p839 = scmp.lt.s32.totalorder %s28, 1
        %s840 = scalar_select %p839, %s28, 1
        %p841 = scmp.lt.s32.totalorder %s838, 1
        %s842 = scalar_select %p841, %s838, 1
        %s843 = smul.addr %s840, 6
        %s844 = sadd.s32 %s842, %s843
        %s845 = smul.addr %s844, 8
        %s846 = scalar_lea.vmem %s9, %s845
      $region72: #{detect_forward.4} parent=67 // pred_fallthru
        _
      // Predicated region
      $region73: #{detect_forward.4} parent=67 // pred_check
        %p847 = pneg %p294
      $region74: #{detect_forward.4} parent=67 // pred_check_branch
        %849 = sbr.rel (%p847) target = $region76
      $region75: #{detect_forward.4} parent=67 // pred_region
        %s850 = smul.u32 2, %s29
        %p851 = scmp.lt.s32.totalorder %s28, 1
        %s852 = scalar_select %p851, %s28, 1
        %p853 = scmp.lt.s32.totalorder %s850, 1
        %s854 = scalar_select %p853, %s850, 1
        %s855 = smul.addr %s852, 6
        %s856 = sadd.s32 %s854, %s855
        %s857 = smul.addr %s856, 8
        %s858 = scalar_lea.vmem %s10, %s857
      $region76: #{detect_forward.4} parent=67 // pred_fallthru
        _
    $region68: #{detect_forward.4} parent=5 // pred_fallthru
      _
  $region6: #{detect_forward.4} parent=0 // loop_footer
    %s21 = sadd.s32 1, %s17
  $region7: #{detect_forward.4} parent=0 // loop_footer_branch
    %16 = sbr.rel target = $region3
  $region8: #{detect_forward.4} parent=0 // loop_exit
    _

</llo_original>
